<compile_context>
chip_gen: v7x
topology: tpu7x:2x2x1
jax: 0.10.0
libtpu: 0.0.40
codegen_flags: <defaults>
</compile_context>

<pallas_src>
import jax
import jax.numpy as jnp
from jax.experimental import pallas as pl
from jax.experimental.pallas import tpu as pltpu


def _same_padding(local_size):
    # Same padding computation as the PyTorch module; F.pad order is
    # (w_left, w_right, h_top, h_bottom).
    padding = sum(([t - 1 - t // 2, t // 2] for t in local_size[::-1]), [])
    pad_wl, pad_wr, pad_ht, pad_hb = padding
    return pad_wl, pad_wr, pad_ht, pad_hb


def _pick_channel_tile(C, Hp, Wp, KH, KW, L, itemsize,
                       budget_bytes=16 * 1024 * 1024):
    """Largest channel tile (divisor of C) whose per-step VMEM stays in budget.

    Per-step estimate: double-buffered input block + double-buffered output
    block + the live (tc, KH*KW, L) slab built in the kernel body.
    The 16 MiB default leaves headroom on v7x (64 MiB physical VMEM) while
    still giving large tiles on v5e/v6e (128 MiB).
    """
    per_channel = itemsize * (2 * Hp * Wp + 3 * KH * KW * L)
    max_tc = max(1, budget_bytes // per_channel)
    best = 1
    for tc in range(1, C + 1):
        if C % tc == 0 and tc <= max_tc:
            best = tc
    return best


def _make_unfold_kernel(tc, H_out, W_out, KH, KW):
    L = H_out * W_out

    def kernel(xp_ref, out_ref):
        # xp_ref : (1, tc, Hp, Wp)    padded input tile (one batch elem, tc channels)
        # out_ref: (1, tc, KH*KW, L)  unfold output tile (channel-major rows)
        x = xp_ref[0]                                    # (tc, Hp, Wp)
        rows = []
        for i in range(KH):
            for j in range(KW):
                # static slice: window shifted by kernel offset (i, j)
                win = x[:, i:i + H_out, j:j + W_out]     # (tc, H_out, W_out)
                rows.append(win.reshape(tc, L))          # lane-dense (tc, L)
        # Small channel-tiled slab (tc, KH*KW, L); one dense full-block store.
        out_ref[0] = jnp.stack(rows, axis=1)

    return kernel


def global_local_converter(x, local_size, vmem_budget_bytes=16 * 1024 * 1024):
    """JAX/Pallas equivalent of GlobalLocalConverter.forward (NCHW input)."""
    n, c, h, w = x.shape
    kh, kw = local_size

    pad_wl, pad_wr, pad_ht, pad_hb = _same_padding(local_size)

    # TODO(synk): fuse this halo padding into the kernel to avoid the extra
    # HBM read+write of the full input that jnp.pad performs.
    xp = jnp.pad(x, ((0, 0), (0, 0), (pad_ht, pad_hb), (pad_wl, pad_wr)))
    hp = h + pad_ht + pad_hb
    wp = w + pad_wl + pad_wr
    out_h = hp - kh + 1
    out_w = wp - kw + 1
    L = out_h * out_w

    tc = _pick_channel_tile(c, hp, wp, kh, kw, L, x.dtype.itemsize,
                            budget_bytes=vmem_budget_bytes)

    kernel = _make_unfold_kernel(tc, out_h, out_w, kh, kw)

    out4 = pl.pallas_call(
        kernel,
        out_shape=jax.ShapeDtypeStruct((n, c, kh * kw, L), x.dtype),
        grid=(n, c // tc),
        in_specs=[pl.BlockSpec((1, tc, hp, wp), lambda b, ci: (b, ci, 0, 0))],
        out_specs=pl.BlockSpec((1, tc, kh * kw, L), lambda b, ci: (b, ci, 0, 0)),
        compiler_params=pltpu.CompilerParams(
            dimension_semantics=("parallel", "parallel"),
            vmem_limit_bytes=64 * 1024 * 1024,
        ),
    )(xp)

    # (n, C, KH*KW, L) -> (n, C*KH*KW, L): adjacent dims, free outside the kernel,
    # and rows stay channel-major (c*KH*KW + k), matching F.unfold exactly.
    return out4.reshape(n, c * kh * kw, L)


def _unfold_reference(x, local_size):
    """Pure-JAX reference reproducing F.pad + F.unfold semantics."""
    n, c, h, w = x.shape
    kh, kw = local_size
    pad_wl, pad_wr, pad_ht, pad_hb = _same_padding(local_size)
    xp = jnp.pad(x, ((0, 0), (0, 0), (pad_ht, pad_hb), (pad_wl, pad_wr)))
    hp = h + pad_ht + pad_hb
    wp = w + pad_wl + pad_wr
    out_h = hp - kh + 1
    out_w = wp - kw + 1
    patches = []
    for i in range(kh):
        for j in range(kw):
            patches.append(xp[:, :, i:i + out_h, j:j + out_w])
    stacked = jnp.stack(patches, axis=2)  # (n, c, kh*kw, out_h, out_w)
    return stacked.reshape(n, c * kh * kw, out_h * out_w)


if __name__ == "__main__":
    # GlobalLocalConverter has no learnable parameters; only local_size config.
    local_size = (3, 3)

    key = jax.random.PRNGKey(0)
    x = jax.random.normal(key, (2, 4, 16, 16), dtype=jnp.float32)

    out = global_local_converter(x, local_size)
    out = jax.block_until_ready(out)

    ref = _unfold_reference(x, local_size)
    assert out.shape == (2, 4 * 3 * 3, 16 * 16), out.shape
    assert jnp.allclose(out, ref, atol=1e-6), "mismatch vs reference unfold"

    print("KERNEL_OK")
</pallas_src>

<mosaic_0001>
module attributes {stable_mosaic.version = 11 : i64} {
  func.func @kernel(%arg0: i32, %arg1: i32, %arg2: memref<1x4x18x18xf32, #tpu.memory_space<vmem>>, %arg3: memref<1x4x9x256xf32, #tpu.memory_space<vmem>>) attributes {dimension_semantics = [#tpu.dimension_semantics<parallel>, #tpu.dimension_semantics<parallel>], iteration_bounds = array<i64: 2, 1>, scalar_prefetch = 0 : i64, scratch_operands = 0 : i64, tpu.core_type = #tpu.core_type<tc>, window_params = [{transform_indices = @transform_0, window_bounds = array<i64: 1, 4, 18, 18>}, {transform_indices = @transform_1, window_bounds = array<i64: 1, 4, 9, 256>}]} {
    %c0 = arith.constant 0 : index
    %c0_0 = arith.constant 0 : index
    %c0_1 = arith.constant 0 : index
    %c0_2 = arith.constant 0 : index
    %0 = vector.load %arg2[%c0, %c0_0, %c0_1, %c0_2] : memref<1x4x18x18xf32, #tpu.memory_space<vmem>>, vector<1x4x18x18xf32>
    %1 = vector.shape_cast %0 : vector<1x4x18x18xf32> to vector<4x18x18xf32>
    %2 = vector.extract_strided_slice %1 {offsets = [0, 0, 0], sizes = [4, 16, 16], strides = [1, 1, 1]} : vector<4x18x18xf32> to vector<4x16x16xf32>
    %3 = vector.shape_cast %2 : vector<4x16x16xf32> to vector<4x256xf32>
    %4 = vector.extract_strided_slice %1 {offsets = [0, 0, 1], sizes = [4, 16, 16], strides = [1, 1, 1]} : vector<4x18x18xf32> to vector<4x16x16xf32>
    %5 = vector.shape_cast %4 : vector<4x16x16xf32> to vector<4x256xf32>
    %6 = vector.extract_strided_slice %1 {offsets = [0, 0, 2], sizes = [4, 16, 16], strides = [1, 1, 1]} : vector<4x18x18xf32> to vector<4x16x16xf32>
    %7 = vector.shape_cast %6 : vector<4x16x16xf32> to vector<4x256xf32>
    %8 = vector.extract_strided_slice %1 {offsets = [0, 1, 0], sizes = [4, 16, 16], strides = [1, 1, 1]} : vector<4x18x18xf32> to vector<4x16x16xf32>
    %9 = vector.shape_cast %8 : vector<4x16x16xf32> to vector<4x256xf32>
    %10 = vector.extract_strided_slice %1 {offsets = [0, 1, 1], sizes = [4, 16, 16], strides = [1, 1, 1]} : vector<4x18x18xf32> to vector<4x16x16xf32>
    %11 = vector.shape_cast %10 : vector<4x16x16xf32> to vector<4x256xf32>
    %12 = vector.extract_strided_slice %1 {offsets = [0, 1, 2], sizes = [4, 16, 16], strides = [1, 1, 1]} : vector<4x18x18xf32> to vector<4x16x16xf32>
    %13 = vector.shape_cast %12 : vector<4x16x16xf32> to vector<4x256xf32>
    %14 = vector.extract_strided_slice %1 {offsets = [0, 2, 0], sizes = [4, 16, 16], strides = [1, 1, 1]} : vector<4x18x18xf32> to vector<4x16x16xf32>
    %15 = vector.shape_cast %14 : vector<4x16x16xf32> to vector<4x256xf32>
    %16 = vector.extract_strided_slice %1 {offsets = [0, 2, 1], sizes = [4, 16, 16], strides = [1, 1, 1]} : vector<4x18x18xf32> to vector<4x16x16xf32>
    %17 = vector.shape_cast %16 : vector<4x16x16xf32> to vector<4x256xf32>
    %18 = vector.extract_strided_slice %1 {offsets = [0, 2, 2], sizes = [4, 16, 16], strides = [1, 1, 1]} : vector<4x18x18xf32> to vector<4x16x16xf32>
    %19 = vector.shape_cast %18 : vector<4x16x16xf32> to vector<4x256xf32>
    %20 = vector.shape_cast %3 : vector<4x256xf32> to vector<4x1x256xf32>
    %21 = vector.shape_cast %5 : vector<4x256xf32> to vector<4x1x256xf32>
    %22 = vector.shape_cast %7 : vector<4x256xf32> to vector<4x1x256xf32>
    %23 = vector.shape_cast %9 : vector<4x256xf32> to vector<4x1x256xf32>
    %24 = vector.shape_cast %11 : vector<4x256xf32> to vector<4x1x256xf32>
    %25 = vector.shape_cast %13 : vector<4x256xf32> to vector<4x1x256xf32>
    %26 = vector.shape_cast %15 : vector<4x256xf32> to vector<4x1x256xf32>
    %27 = vector.shape_cast %17 : vector<4x256xf32> to vector<4x1x256xf32>
    %28 = vector.shape_cast %19 : vector<4x256xf32> to vector<4x1x256xf32>
    %29 = tpu.concatenate %20, %21, %22, %23, %24, %25, %26, %27, %28 in 1 : vector<4x1x256xf32>, vector<4x1x256xf32>, vector<4x1x256xf32>, vector<4x1x256xf32>, vector<4x1x256xf32>, vector<4x1x256xf32>, vector<4x1x256xf32>, vector<4x1x256xf32>, vector<4x1x256xf32> -> vector<4x9x256xf32>
    %c0_3 = arith.constant 0 : index
    %c0_4 = arith.constant 0 : index
    %c0_5 = arith.constant 0 : index
    %c0_6 = arith.constant 0 : index
    %30 = vector.load %arg3[%c0_3, %c0_4, %c0_5, %c0_6] : memref<1x4x9x256xf32, #tpu.memory_space<vmem>>, vector<1x4x9x256xf32>
    %31 = vector.shape_cast %30 : vector<1x4x9x256xf32> to vector<4x9x256xf32>
    %32 = vector.shape_cast %29 : vector<4x9x256xf32> to vector<1x4x9x256xf32>
    tpu.vector_store %arg3[%c0_3, %c0_4, %c0_5, %c0_6], %32 {strides = array<i32>} : memref<1x4x9x256xf32, #tpu.memory_space<vmem>>, vector<1x4x9x256xf32>,
    return
  }
  func.func @transform_0(%arg0: i32, %arg1: i32) -> (i32, i32, i32, i32) {
    %c0_i32 = arith.constant 0 : i32
    %c0_i32_0 = arith.constant 0 : i32
    %c0_i32_1 = arith.constant 0 : i32
    return %arg0, %arg1, %c0_i32, %c0_i32_0 : i32, i32, i32, i32
  }
  func.func @transform_1(%arg0: i32, %arg1: i32) -> (i32, i32, i32, i32) {
    %c0_i32 = arith.constant 0 : i32
    %c0_i32_0 = arith.constant 0 : i32
    %c0_i32_1 = arith.constant 0 : i32
    return %arg0, %arg1, %c0_i32, %c0_i32_0 : i32, i32, i32, i32
  }
}

</mosaic_0001>

<llo_original>
// kernel: tpu_custom_call.1
$region0: #{tpu_custom_call.1}
  #allocation0 [shape = 'u32[]', space=smem, size = 0x4, offset = 0x4, fixed_abs, tag = 'smem constant byte address 0x4 - core index']
  #allocation1 [shape = 'u32[144,128]{1,0:T(1,128)}', space=vmem, size = 0x12000, scoped, tag = 'internal scratch']
  %s0 = inlined_call_operand.hbm [shape: f32[2,4,18,18], index: 0, kind: input, shape index: {}]
  %s1 = inlined_call_operand.hbm [shape: f32[2,4,9,256], index: 1, kind: output, shape index: {}]
  %s2 = sld [smem:[#allocation0]]
  $region41: #{tpu_custom_call.1} parent=0
    _
  %s4 = ssub.s32 1, %s2
  %s5 = scalar_select 0, %s4, %s2
  $region1: #{tpu_custom_call.1} parent=0
    #allocation2 [shape = 'u8[98304]{0}', space=vmem, size = 0x18000, scoped, tag = 'input window, operand 0']
    #allocation3 [shape = 's32[2]{0}', space=sflag, size = 0x8, scoped, tag = 'scoped memory for tpu_custom_call.1']
    #allocation4 [shape = 's32[2]{0}', space=sflag, size = 0x8, scoped, tag = 'scoped memory for tpu_custom_call.1']
    #allocation5 [shape = 'u8[131072]{0}', space=vmem, size = 0x20000, scoped, tag = 'output window, operand 0']
    %6 = vsyncpa [#allocation3], 0
    %s7 = scalar_lea.sflag [#allocation3], 1
    %8 = vsyncpa %s7, 0
    %9 = vsyncpa [#allocation4], 0
    %s10 = scalar_lea.sflag [#allocation4], 1
    %11 = vsyncpa %s10, 0
    loop: start=0, step=1, limit=4
    $region2: #{tpu_custom_call.1} parent=1 // loop_pre_header
      _
    $region3: #{tpu_custom_call.1} parent=1 // loop_header
      %s13 = sphi 0, %s17
      %p14 = scmp.ge.s32.totalorder %s13, 4
      %s20 = sphi 0, %s32
      %s21 = sphi 0, %s28
      %s22 = sphi 0, %s20
      %s23 = sphi 0, %s21
      %s24 = sphi 0, %s22
      %s25 = sphi 0, %s23
      %s37 = sphi 0, %s39
      %s40 = sphi 0, %s37
      %s41 = sphi 0, %s40
      %s57 = sphi 0, %s41
      %s65 = sphi 0, %s67
      %s68 = sphi 0, %s65
      %s69 = sphi 0, %s68
      %s85 = sphi 0, %s69
    $region4: #{tpu_custom_call.1} parent=1 // loop_header_branch
      %16 = sbr.rel (%p14) target = $region8
    $region5: #{tpu_custom_call.1} parent=1 // loop_body
      %s18 = ssub.s32 %s13, 1
      %s19 = ssub.s32 %s13, 2
      %s26 = sadd.s32 1, %s21
      %p27 = scmp.ge.s32.totalorder %s26, 1
      %s28 = scalar_select %p27, 0, %s26
      %s29 = sadd.s32 1, %s20
      %s30 = scalar_select %p27, %s29, %s20
      %p31 = scmp.ge.s32.totalorder %s30, 2
      %s32 = scalar_select %p31, 0, %s30
      %s33 = ssub.s32 %s20, %s32
      %s34 = ssub.s32 %s21, %s28
      %s35 = sor.u32 %s33, %s34
      %p36 = scmp.eq.s32.totalorder %s35, 0
      %s38 = sadd.s32 %s37, 1
      %s39 = scalar_select %p36, %s37, %s38
      %p42 = pneg %p36
      %p43 = scmp.eq.s32.totalorder %s13, 1
      %p44 = por %p42, %p43
      %p45 = scmp.ne.s32.totalorder %s37, %s40
      %p46 = scmp.eq.s32.totalorder %s13, 0
      %p47 = por %p45, %p46
      %p48 = scmp.ne.s32.totalorder %s37, %s40
      %p49 = scmp.eq.s32.totalorder %s18, 1
      %p50 = por %p48, %p49
      %p51 = scmp.ne.s32.totalorder %s40, %s41
      %p52 = scmp.eq.s32.totalorder %s18, 0
      %p53 = por %p51, %p52
      %p54 = scmp.ne.s32.totalorder %s40, %s41
      %p55 = scmp.eq.s32.totalorder %s19, 1
      %p56 = por %p54, %p55
      %p58 = scmp.ne.s32.totalorder %s41, %s57
      %p59 = scmp.eq.s32.totalorder %s19, 0
      %p60 = por %p58, %p59
      %s61 = ssub.s32 %s20, %s32
      %s62 = ssub.s32 %s21, %s28
      %s63 = sor.u32 %s61, %s62
      %p64 = scmp.eq.s32.totalorder %s63, 0
      %s66 = sadd.s32 %s65, 1
      %s67 = scalar_select %p64, %s65, %s66
      %p70 = pneg %p64
      %p71 = scmp.eq.s32.totalorder %s13, 1
      %p72 = por %p70, %p71
      %p73 = scmp.ne.s32.totalorder %s65, %s68
      %p74 = scmp.eq.s32.totalorder %s13, 0
      %p75 = por %p73, %p74
      %p76 = scmp.ne.s32.totalorder %s65, %s68
      %p77 = scmp.eq.s32.totalorder %s18, 1
      %p78 = por %p76, %p77
      %p79 = scmp.ne.s32.totalorder %s68, %s69
      %p80 = scmp.eq.s32.totalorder %s18, 0
      %p81 = por %p79, %p80
      %p82 = scmp.ne.s32.totalorder %s68, %s69
      %p83 = scmp.eq.s32.totalorder %s19, 1
      %p84 = por %p82, %p83
      %p86 = scmp.ne.s32.totalorder %s69, %s85
      %p87 = scmp.eq.s32.totalorder %s19, 0
      %p88 = por %p86, %p87
      %p89 = scmp.le.s32.totalorder 1, %s13
      %p90 = scmp.lt.s32.totalorder %s13, 3
      %p91 = pnand %p89, %p90
      %p92 = pneg %p91
      // Predicated region
      $region9: #{tpu_custom_call.1} parent=5 // pred_check
        _
      $region10: #{tpu_custom_call.1} parent=5 // pred_check_branch
        %94 = sbr.rel (%p91) target = $region12
      $region11: #{tpu_custom_call.1} parent=5 // pred_region
        %s95 = ssub.s32 %s13, 1
      $region12: #{tpu_custom_call.1} parent=5 // pred_fallthru
        _
      %p96 = scmp.lt.s32.totalorder %s13, 2
      // Predicated region
      $region13: #{tpu_custom_call.1} parent=5 // pred_check
        %p97 = pneg %p96
      $region14: #{tpu_custom_call.1} parent=5 // pred_check_branch
        %99 = sbr.rel (%p97) target = $region16
      $region15: #{tpu_custom_call.1} parent=5 // pred_region
        // Predicated region
        $region17: #{tpu_custom_call.1} parent=15 // pred_check
          %p100 = pneg %p47
        $region18: #{tpu_custom_call.1} parent=15 // pred_check_branch
          %102 = sbr.rel (%p100) target = $region20
        $region19: #{tpu_custom_call.1} parent=15 // pred_region
          %s103 = sand.u32 %s37, 1
          %s104 = scalar_lea.sflag [#allocation3], %s103
          %s105 = sand.u32 %s37, 1
          %s106 = smul.addr %s105, 96
          %s107 = scalar_lea.vmem [#allocation2], %s106
          %s108 = smul.u32 4, %s21
          %s110 = ssub.s32 1536, 1536
          %111 = vsyncadd %s104, %s110
          %s112 = smul.addr %s108, 3
          %s113 = smul.addr %s20, 12
          %s114 = sadd.s32 %s112, %s113
          %s115 = smul.addr %s114, 128
          %s116 = scalar_lea.hbm %s0, %s115
          %s117 = sshll.u32 %s107, 4
          %s118 = int_to_ptr.vmem [resolvable:$true] %s117
          %123 = dma.hbm_to_vmem [thread:$0]  %s116, 1536, %s118, %s104, 128, 128, 8
        $region20: #{tpu_custom_call.1} parent=15 // pred_fallthru
          _
      $region16: #{tpu_custom_call.1} parent=5 // pred_fallthru
        _
      %p124 = scmp.le.s32.totalorder 1, %s13
      %p125 = scmp.lt.s32.totalorder %s13, 3
      %p126 = pnand %p124, %p125
      %p127 = pneg %p126
      // Predicated region
      $region21: #{tpu_custom_call.1} parent=5 // pred_check
        _
      $region22: #{tpu_custom_call.1} parent=5 // pred_check_branch
        %129 = sbr.rel (%p126) target = $region24
      $region23: #{tpu_custom_call.1} parent=5 // pred_region
        %s130 = ssub.s32 %s13, 1
        %s131 = sand.u32 %s40, 1
        %s132 = scalar_lea.sflag [#allocation3], %s131
        %s133 = sand.u32 %s40, 1
        %s134 = smul.addr %s133, 96
        %s135 = scalar_lea.vmem [#allocation2], %s134
        // Predicated region
        $region25: #{tpu_custom_call.1} parent=23 // pred_check
          %p136 = pneg %p53
        $region26: #{tpu_custom_call.1} parent=23 // pred_check_branch
          %138 = sbr.rel (%p136) target = $region28
        $region27: #{tpu_custom_call.1} parent=23 // pred_region
          %139 = dma.done %s132, 1536
        $region28: #{tpu_custom_call.1} parent=23 // pred_fallthru
          _
        %s140 = sand.u32 %s40, 1
        %s141 = scalar_lea.sflag [#allocation3], %s140
        %s142 = sand.u32 %s40, 1
        %s143 = smul.addr %s142, 96
        %s144 = scalar_lea.vmem [#allocation2], %s143
        %p145 = pneg %p53
        %p146 = pneg %p50
        %p147 = pneg %p81
        %p148 = pneg %p78
        %s149 = sand.u32 %s68, 1
        %s150 = scalar_lea.sflag [#allocation4], %s149
        %s151 = sand.u32 %s68, 1
        %s152 = smul.addr %s151, 128
        %s153 = scalar_lea.vmem [#allocation5], %s152
        %s154 = smul.u32 4, %s23
        %s155 = smul.u32 4, %s23
        %v156 = vld [vmem:[%s135] sm:$0xff]
        %v157 = vld [vmem:[%s135 + $0x8] sm:$0xff]
        %v158 = vld [vmem:[%s135 + $0x10] sm:$0x3]
        %v159 = vld [vmem:[%s135 + $0x18] sm:$0xff]
        %v160 = vld [vmem:[%s135 + $0x20] sm:$0xff]
        %v161 = vld [vmem:[%s135 + $0x28] sm:$0x3]
        %v162 = vld [vmem:[%s135 + $0x30] sm:$0xff]
        %v163 = vld [vmem:[%s135 + $0x38] sm:$0xff]
        %v164 = vld [vmem:[%s135 + $0x40] sm:$0x3]
        %v165 = vld [vmem:[%s135 + $0x48] sm:$0xff]
        %v166 = vld [vmem:[%s135 + $0x50] sm:$0xff]
        %v167 = vld [vmem:[%s135 + $0x58] sm:$0x3]
        %v168 = vcombine.high %v156, 0.0
        %v170 = vunpack.c.l.s4 1983009808
        %v171 = vunpack.c.0.s8 %v170
        %v172 = vlaneseq
        %v173 = vshrl.u32 %v172, 7
        %v174 = vsub.s32 %v171, %v173
        %v175 = vrot.slane %v156, %v174
        %v177 = vunpack.c.l.s4 1983009808
        %v178 = vunpack.c.0.s8 %v177
        %v179 = vlaneseq
        %v180 = vshrl.u32 %v179, 7
        %v181 = vsub.s32 %v178, %v180
        %v182 = vrot.slane %v168, %v181
        %v183 = vcombine.high %v175, 0.0
        %v185 = vunpack.c.l.s4 1934713408
        %v186 = vunpack.c.0.s8 %v185
        %v187 = vlaneseq
        %v188 = vshrl.u32 %v187, 7
        %v189 = vsub.s32 %v186, %v188
        %v190 = vrot.slane %v175, %v189
        %v192 = vunpack.c.l.s4 1934713408
        %v193 = vunpack.c.0.s8 %v192
        %v194 = vlaneseq
        %v195 = vshrl.u32 %v194, 7
        %v196 = vsub.s32 %v193, %v195
        %v197 = vrot.slane %v183, %v196
        %v198 = vcombine.high %v182, 0.0
        %v200 = vunpack.c.l.s4 1934713408
        %v201 = vunpack.c.0.s8 %v200
        %v202 = vlaneseq
        %v203 = vshrl.u32 %v202, 7
        %v204 = vsub.s32 %v201, %v203
        %v205 = vrot.slane %v182, %v204
        %v207 = vunpack.c.l.s4 1934713408
        %v208 = vunpack.c.0.s8 %v207
        %v209 = vlaneseq
        %v210 = vshrl.u32 %v209, 7
        %v211 = vsub.s32 %v208, %v210
        %v212 = vrot.slane %v198, %v211
        %v213 = vcombine.high %v190, 0.0
        %v214 = vcombine.high %v197, 0.0
        %v215 = vcombine.high %v205, 0.0
        %v216 = vcombine.high %v212, 0.0
        %v217 = vcombine.high %v157, 0.0
        %v219 = vunpack.c.l.s4 1983009808
        %v220 = vunpack.c.0.s8 %v219
        %v221 = vlaneseq
        %v222 = vshrl.u32 %v221, 7
        %v223 = vsub.s32 %v220, %v222
        %v224 = vrot.slane %v157, %v223
        %v226 = vunpack.c.l.s4 1983009808
        %v227 = vunpack.c.0.s8 %v226
        %v228 = vlaneseq
        %v229 = vshrl.u32 %v228, 7
        %v230 = vsub.s32 %v227, %v229
        %v231 = vrot.slane %v217, %v230
        %v232 = vcombine.high %v224, 0.0
        %v234 = vunpack.c.l.s4 1934713408
        %v235 = vunpack.c.0.s8 %v234
        %v236 = vlaneseq
        %v237 = vshrl.u32 %v236, 7
        %v238 = vsub.s32 %v235, %v237
        %v239 = vrot.slane %v224, %v238
        %v241 = vunpack.c.l.s4 1934713408
        %v242 = vunpack.c.0.s8 %v241
        %v243 = vlaneseq
        %v244 = vshrl.u32 %v243, 7
        %v245 = vsub.s32 %v242, %v244
        %v246 = vrot.slane %v232, %v245
        %v247 = vcombine.high %v231, 0.0
        %v249 = vunpack.c.l.s4 1934713408
        %v250 = vunpack.c.0.s8 %v249
        %v251 = vlaneseq
        %v252 = vshrl.u32 %v251, 7
        %v253 = vsub.s32 %v250, %v252
        %v254 = vrot.slane %v231, %v253
        %v256 = vunpack.c.l.s4 1934713408
        %v257 = vunpack.c.0.s8 %v256
        %v258 = vlaneseq
        %v259 = vshrl.u32 %v258, 7
        %v260 = vsub.s32 %v257, %v259
        %v261 = vrot.slane %v247, %v260
        %v262 = vcombine.high %v239, 0.0
        %v263 = vcombine.high %v246, 0.0
        %v264 = vcombine.high %v254, 0.0
        %v265 = vcombine.high %v261, 0.0
        %v266 = vcombine.high %v159, 0.0
        %v268 = vunpack.c.l.s4 1983009808
        %v269 = vunpack.c.0.s8 %v268
        %v270 = vlaneseq
        %v271 = vshrl.u32 %v270, 7
        %v272 = vsub.s32 %v269, %v271
        %v273 = vrot.slane %v159, %v272
        %v275 = vunpack.c.l.s4 1983009808
        %v276 = vunpack.c.0.s8 %v275
        %v277 = vlaneseq
        %v278 = vshrl.u32 %v277, 7
        %v279 = vsub.s32 %v276, %v278
        %v280 = vrot.slane %v266, %v279
        %v281 = vcombine.high %v273, 0.0
        %v283 = vunpack.c.l.s4 1934713408
        %v284 = vunpack.c.0.s8 %v283
        %v285 = vlaneseq
        %v286 = vshrl.u32 %v285, 7
        %v287 = vsub.s32 %v284, %v286
        %v288 = vrot.slane %v273, %v287
        %v290 = vunpack.c.l.s4 1934713408
        %v291 = vunpack.c.0.s8 %v290
        %v292 = vlaneseq
        %v293 = vshrl.u32 %v292, 7
        %v294 = vsub.s32 %v291, %v293
        %v295 = vrot.slane %v281, %v294
        %v296 = vcombine.high %v280, 0.0
        %v298 = vunpack.c.l.s4 1934713408
        %v299 = vunpack.c.0.s8 %v298
        %v300 = vlaneseq
        %v301 = vshrl.u32 %v300, 7
        %v302 = vsub.s32 %v299, %v301
        %v303 = vrot.slane %v280, %v302
        %v305 = vunpack.c.l.s4 1934713408
        %v306 = vunpack.c.0.s8 %v305
        %v307 = vlaneseq
        %v308 = vshrl.u32 %v307, 7
        %v309 = vsub.s32 %v306, %v308
        %v310 = vrot.slane %v296, %v309
        %v311 = vcombine.high %v288, 0.0
        %v312 = vcombine.high %v295, 0.0
        %v313 = vcombine.high %v303, 0.0
        %v314 = vcombine.high %v310, 0.0
        %v315 = vcombine.high %v160, 0.0
        %v317 = vunpack.c.l.s4 1983009808
        %v318 = vunpack.c.0.s8 %v317
        %v319 = vlaneseq
        %v320 = vshrl.u32 %v319, 7
        %v321 = vsub.s32 %v318, %v320
        %v322 = vrot.slane %v160, %v321
        %v324 = vunpack.c.l.s4 1983009808
        %v325 = vunpack.c.0.s8 %v324
        %v326 = vlaneseq
        %v327 = vshrl.u32 %v326, 7
        %v328 = vsub.s32 %v325, %v327
        %v329 = vrot.slane %v315, %v328
        %v330 = vcombine.high %v322, 0.0
        %v332 = vunpack.c.l.s4 1934713408
        %v333 = vunpack.c.0.s8 %v332
        %v334 = vlaneseq
        %v335 = vshrl.u32 %v334, 7
        %v336 = vsub.s32 %v333, %v335
        %v337 = vrot.slane %v322, %v336
        %v339 = vunpack.c.l.s4 1934713408
        %v340 = vunpack.c.0.s8 %v339
        %v341 = vlaneseq
        %v342 = vshrl.u32 %v341, 7
        %v343 = vsub.s32 %v340, %v342
        %v344 = vrot.slane %v330, %v343
        %v345 = vcombine.high %v329, 0.0
        %v347 = vunpack.c.l.s4 1934713408
        %v348 = vunpack.c.0.s8 %v347
        %v349 = vlaneseq
        %v350 = vshrl.u32 %v349, 7
        %v351 = vsub.s32 %v348, %v350
        %v352 = vrot.slane %v329, %v351
        %v354 = vunpack.c.l.s4 1934713408
        %v355 = vunpack.c.0.s8 %v354
        %v356 = vlaneseq
        %v357 = vshrl.u32 %v356, 7
        %v358 = vsub.s32 %v355, %v357
        %v359 = vrot.slane %v345, %v358
        %v360 = vcombine.high %v337, 0.0
        %v361 = vcombine.high %v344, 0.0
        %v362 = vcombine.high %v352, 0.0
        %v363 = vcombine.high %v359, 0.0
        %v364 = vcombine.high %v162, 0.0
        %v366 = vunpack.c.l.s4 1983009808
        %v367 = vunpack.c.0.s8 %v366
        %v368 = vlaneseq
        %v369 = vshrl.u32 %v368, 7
        %v370 = vsub.s32 %v367, %v369
        %v371 = vrot.slane %v162, %v370
        %v373 = vunpack.c.l.s4 1983009808
        %v374 = vunpack.c.0.s8 %v373
        %v375 = vlaneseq
        %v376 = vshrl.u32 %v375, 7
        %v377 = vsub.s32 %v374, %v376
        %v378 = vrot.slane %v364, %v377
        %v379 = vcombine.high %v371, 0.0
        %v381 = vunpack.c.l.s4 1934713408
        %v382 = vunpack.c.0.s8 %v381
        %v383 = vlaneseq
        %v384 = vshrl.u32 %v383, 7
        %v385 = vsub.s32 %v382, %v384
        %v386 = vrot.slane %v371, %v385
        %v388 = vunpack.c.l.s4 1934713408
        %v389 = vunpack.c.0.s8 %v388
        %v390 = vlaneseq
        %v391 = vshrl.u32 %v390, 7
        %v392 = vsub.s32 %v389, %v391
        %v393 = vrot.slane %v379, %v392
        %v394 = vcombine.high %v378, 0.0
        %v396 = vunpack.c.l.s4 1934713408
        %v397 = vunpack.c.0.s8 %v396
        %v398 = vlaneseq
        %v399 = vshrl.u32 %v398, 7
        %v400 = vsub.s32 %v397, %v399
        %v401 = vrot.slane %v378, %v400
        %v403 = vunpack.c.l.s4 1934713408
        %v404 = vunpack.c.0.s8 %v403
        %v405 = vlaneseq
        %v406 = vshrl.u32 %v405, 7
        %v407 = vsub.s32 %v404, %v406
        %v408 = vrot.slane %v394, %v407
        %v409 = vcombine.high %v386, 0.0
        %v410 = vcombine.high %v393, 0.0
        %v411 = vcombine.high %v401, 0.0
        %v412 = vcombine.high %v408, 0.0
        %v413 = vcombine.high %v163, 0.0
        %v415 = vunpack.c.l.s4 1983009808
        %v416 = vunpack.c.0.s8 %v415
        %v417 = vlaneseq
        %v418 = vshrl.u32 %v417, 7
        %v419 = vsub.s32 %v416, %v418
        %v420 = vrot.slane %v163, %v419
        %v422 = vunpack.c.l.s4 1983009808
        %v423 = vunpack.c.0.s8 %v422
        %v424 = vlaneseq
        %v425 = vshrl.u32 %v424, 7
        %v426 = vsub.s32 %v423, %v425
        %v427 = vrot.slane %v413, %v426
        %v428 = vcombine.high %v420, 0.0
        %v430 = vunpack.c.l.s4 1934713408
        %v431 = vunpack.c.0.s8 %v430
        %v432 = vlaneseq
        %v433 = vshrl.u32 %v432, 7
        %v434 = vsub.s32 %v431, %v433
        %v435 = vrot.slane %v420, %v434
        %v437 = vunpack.c.l.s4 1934713408
        %v438 = vunpack.c.0.s8 %v437
        %v439 = vlaneseq
        %v440 = vshrl.u32 %v439, 7
        %v441 = vsub.s32 %v438, %v440
        %v442 = vrot.slane %v428, %v441
        %v443 = vcombine.high %v427, 0.0
        %v445 = vunpack.c.l.s4 1934713408
        %v446 = vunpack.c.0.s8 %v445
        %v447 = vlaneseq
        %v448 = vshrl.u32 %v447, 7
        %v449 = vsub.s32 %v446, %v448
        %v450 = vrot.slane %v427, %v449
        %v452 = vunpack.c.l.s4 1934713408
        %v453 = vunpack.c.0.s8 %v452
        %v454 = vlaneseq
        %v455 = vshrl.u32 %v454, 7
        %v456 = vsub.s32 %v453, %v455
        %v457 = vrot.slane %v443, %v456
        %v458 = vcombine.high %v435, 0.0
        %v459 = vcombine.high %v442, 0.0
        %v460 = vcombine.high %v450, 0.0
        %v461 = vcombine.high %v457, 0.0
        %v462 = vcombine.high %v165, 0.0
        %v464 = vunpack.c.l.s4 1983009808
        %v465 = vunpack.c.0.s8 %v464
        %v466 = vlaneseq
        %v467 = vshrl.u32 %v466, 7
        %v468 = vsub.s32 %v465, %v467
        %v469 = vrot.slane %v165, %v468
        %v471 = vunpack.c.l.s4 1983009808
        %v472 = vunpack.c.0.s8 %v471
        %v473 = vlaneseq
        %v474 = vshrl.u32 %v473, 7
        %v475 = vsub.s32 %v472, %v474
        %v476 = vrot.slane %v462, %v475
        %v477 = vcombine.high %v469, 0.0
        %v479 = vunpack.c.l.s4 1934713408
        %v480 = vunpack.c.0.s8 %v479
        %v481 = vlaneseq
        %v482 = vshrl.u32 %v481, 7
        %v483 = vsub.s32 %v480, %v482
        %v484 = vrot.slane %v469, %v483
        %v486 = vunpack.c.l.s4 1934713408
        %v487 = vunpack.c.0.s8 %v486
        %v488 = vlaneseq
        %v489 = vshrl.u32 %v488, 7
        %v490 = vsub.s32 %v487, %v489
        %v491 = vrot.slane %v477, %v490
        %v492 = vcombine.high %v476, 0.0
        %v494 = vunpack.c.l.s4 1934713408
        %v495 = vunpack.c.0.s8 %v494
        %v496 = vlaneseq
        %v497 = vshrl.u32 %v496, 7
        %v498 = vsub.s32 %v495, %v497
        %v499 = vrot.slane %v476, %v498
        %v501 = vunpack.c.l.s4 1934713408
        %v502 = vunpack.c.0.s8 %v501
        %v503 = vlaneseq
        %v504 = vshrl.u32 %v503, 7
        %v505 = vsub.s32 %v502, %v504
        %v506 = vrot.slane %v492, %v505
        %v507 = vcombine.high %v484, 0.0
        %v508 = vcombine.high %v491, 0.0
        %v509 = vcombine.high %v499, 0.0
        %v510 = vcombine.high %v506, 0.0
        %v511 = vcombine.high %v166, 0.0
        %v513 = vunpack.c.l.s4 1983009808
        %v514 = vunpack.c.0.s8 %v513
        %v515 = vlaneseq
        %v516 = vshrl.u32 %v515, 7
        %v517 = vsub.s32 %v514, %v516
        %v518 = vrot.slane %v166, %v517
        %v520 = vunpack.c.l.s4 1983009808
        %v521 = vunpack.c.0.s8 %v520
        %v522 = vlaneseq
        %v523 = vshrl.u32 %v522, 7
        %v524 = vsub.s32 %v521, %v523
        %v525 = vrot.slane %v511, %v524
        %v526 = vcombine.high %v518, 0.0
        %v528 = vunpack.c.l.s4 1934713408
        %v529 = vunpack.c.0.s8 %v528
        %v530 = vlaneseq
        %v531 = vshrl.u32 %v530, 7
        %v532 = vsub.s32 %v529, %v531
        %v533 = vrot.slane %v518, %v532
        %v535 = vunpack.c.l.s4 1934713408
        %v536 = vunpack.c.0.s8 %v535
        %v537 = vlaneseq
        %v538 = vshrl.u32 %v537, 7
        %v539 = vsub.s32 %v536, %v538
        %v540 = vrot.slane %v526, %v539
        %v541 = vcombine.high %v525, 0.0
        %v543 = vunpack.c.l.s4 1934713408
        %v544 = vunpack.c.0.s8 %v543
        %v545 = vlaneseq
        %v546 = vshrl.u32 %v545, 7
        %v547 = vsub.s32 %v544, %v546
        %v548 = vrot.slane %v525, %v547
        %v550 = vunpack.c.l.s4 1934713408
        %v551 = vunpack.c.0.s8 %v550
        %v552 = vlaneseq
        %v553 = vshrl.u32 %v552, 7
        %v554 = vsub.s32 %v551, %v553
        %v555 = vrot.slane %v541, %v554
        %v556 = vcombine.high %v533, 0.0
        %v557 = vcombine.high %v540, 0.0
        %v558 = vcombine.high %v548, 0.0
        %v559 = vcombine.high %v555, 0.0
        %564 = vrot.lane.b32.xlu0 %v213, 16
        %v565 = vpop.permute.xlu0 %564
        %566 = vrot.lane.b32.xlu0 %v311, 16
        %v567 = vpop.permute.xlu0 %566
        %568 = vrot.lane.b32.xlu0 %v409, 16
        %v569 = vpop.permute.xlu0 %568
        %570 = vrot.lane.b32.xlu0 %v507, 16
        %v571 = vpop.permute.xlu0 %570
        %580 = vrot.lane.b32.xlu0 %v197, 32
        %v581 = vpop.permute.xlu0 %580
        %582 = vrot.lane.b32.xlu0 %v295, 32
        %v583 = vpop.permute.xlu0 %582
        %584 = vrot.lane.b32.xlu0 %v393, 32
        %v585 = vpop.permute.xlu0 %584
        %586 = vrot.lane.b32.xlu0 %v491, 32
        %v587 = vpop.permute.xlu0 %586
        %596 = vrot.lane.b32.xlu0 %v214, 48
        %v597 = vpop.permute.xlu0 %596
        %598 = vrot.lane.b32.xlu0 %v312, 48
        %v599 = vpop.permute.xlu0 %598
        %600 = vrot.lane.b32.xlu0 %v410, 48
        %v601 = vpop.permute.xlu0 %600
        %602 = vrot.lane.b32.xlu0 %v508, 48
        %v603 = vpop.permute.xlu0 %602
        %612 = vrot.lane.b32.xlu0 %v205, 64
        %v613 = vpop.permute.xlu0 %612
        %614 = vrot.lane.b32.xlu0 %v303, 64
        %v615 = vpop.permute.xlu0 %614
        %616 = vrot.lane.b32.xlu0 %v401, 64
        %v617 = vpop.permute.xlu0 %616
        %618 = vrot.lane.b32.xlu0 %v499, 64
        %v619 = vpop.permute.xlu0 %618
        %628 = vrot.lane.b32.xlu0 %v215, 80
        %v629 = vpop.permute.xlu0 %628
        %630 = vrot.lane.b32.xlu0 %v313, 80
        %v631 = vpop.permute.xlu0 %630
        %632 = vrot.lane.b32.xlu0 %v411, 80
        %v633 = vpop.permute.xlu0 %632
        %634 = vrot.lane.b32.xlu0 %v509, 80
        %v635 = vpop.permute.xlu0 %634
        %644 = vrot.lane.b32.xlu0 %v212, 96
        %v645 = vpop.permute.xlu0 %644
        %646 = vrot.lane.b32.xlu0 %v310, 96
        %v647 = vpop.permute.xlu0 %646
        %648 = vrot.lane.b32.xlu0 %v408, 96
        %v649 = vpop.permute.xlu0 %648
        %650 = vrot.lane.b32.xlu0 %v506, 96
        %v651 = vpop.permute.xlu0 %650
        %660 = vrot.lane.b32.xlu0 %v216, 112
        %v661 = vpop.permute.xlu0 %660
        %662 = vrot.lane.b32.xlu0 %v314, 112
        %v663 = vpop.permute.xlu0 %662
        %664 = vrot.lane.b32.xlu0 %v412, 112
        %v665 = vpop.permute.xlu0 %664
        %666 = vrot.lane.b32.xlu0 %v510, 112
        %v667 = vpop.permute.xlu0 %666
        %676 = vrot.lane.b32.xlu0 %v262, 16
        %v677 = vpop.permute.xlu0 %676
        %678 = vrot.lane.b32.xlu0 %v360, 16
        %v679 = vpop.permute.xlu0 %678
        %680 = vrot.lane.b32.xlu0 %v458, 16
        %v681 = vpop.permute.xlu0 %680
        %682 = vrot.lane.b32.xlu0 %v556, 16
        %v683 = vpop.permute.xlu0 %682
        %692 = vrot.lane.b32.xlu0 %v246, 32
        %v693 = vpop.permute.xlu0 %692
        %694 = vrot.lane.b32.xlu0 %v344, 32
        %v695 = vpop.permute.xlu0 %694
        %696 = vrot.lane.b32.xlu0 %v442, 32
        %v697 = vpop.permute.xlu0 %696
        %698 = vrot.lane.b32.xlu0 %v540, 32
        %v699 = vpop.permute.xlu0 %698
        %708 = vrot.lane.b32.xlu0 %v263, 48
        %v709 = vpop.permute.xlu0 %708
        %710 = vrot.lane.b32.xlu0 %v361, 48
        %v711 = vpop.permute.xlu0 %710
        %712 = vrot.lane.b32.xlu0 %v459, 48
        %v713 = vpop.permute.xlu0 %712
        %714 = vrot.lane.b32.xlu0 %v557, 48
        %v715 = vpop.permute.xlu0 %714
        %724 = vrot.lane.b32.xlu0 %v254, 64
        %v725 = vpop.permute.xlu0 %724
        %726 = vrot.lane.b32.xlu0 %v352, 64
        %v727 = vpop.permute.xlu0 %726
        %728 = vrot.lane.b32.xlu0 %v450, 64
        %v729 = vpop.permute.xlu0 %728
        %730 = vrot.lane.b32.xlu0 %v548, 64
        %v731 = vpop.permute.xlu0 %730
        %740 = vrot.lane.b32.xlu0 %v264, 80
        %v741 = vpop.permute.xlu0 %740
        %742 = vrot.lane.b32.xlu0 %v362, 80
        %v743 = vpop.permute.xlu0 %742
        %744 = vrot.lane.b32.xlu0 %v460, 80
        %v745 = vpop.permute.xlu0 %744
        %746 = vrot.lane.b32.xlu0 %v558, 80
        %v747 = vpop.permute.xlu0 %746
        %756 = vrot.lane.b32.xlu0 %v261, 96
        %v757 = vpop.permute.xlu0 %756
        %758 = vrot.lane.b32.xlu0 %v359, 96
        %v759 = vpop.permute.xlu0 %758
        %760 = vrot.lane.b32.xlu0 %v457, 96
        %v761 = vpop.permute.xlu0 %760
        %762 = vrot.lane.b32.xlu0 %v555, 96
        %v763 = vpop.permute.xlu0 %762
        %772 = vrot.lane.b32.xlu0 %v265, 112
        %v773 = vpop.permute.xlu0 %772
        %774 = vrot.lane.b32.xlu0 %v363, 112
        %v775 = vpop.permute.xlu0 %774
        %776 = vrot.lane.b32.xlu0 %v461, 112
        %v777 = vpop.permute.xlu0 %776
        %778 = vrot.lane.b32.xlu0 %v559, 112
        %v779 = vpop.permute.xlu0 %778
        %vm784 = vcmask 130048
        %v785 = vsel %vm784, %v190, %v565
        %v786 = vsel %vm784, %v288, %v567
        %v787 = vsel %vm784, %v386, %v569
        %v788 = vsel %vm784, %v484, %v571
        %vm789 = vcmask 261120
        %v790 = vsel %vm789, %v785, %v581
        %v791 = vsel %vm789, %v786, %v583
        %v792 = vsel %vm789, %v787, %v585
        %v793 = vsel %vm789, %v788, %v587
        %vm794 = vcmask 392192
        %v795 = vsel %vm794, %v790, %v597
        %v796 = vsel %vm794, %v791, %v599
        %v797 = vsel %vm794, %v792, %v601
        %v798 = vsel %vm794, %v793, %v603
        %vm799 = vcmask 523264
        %v800 = vsel %vm799, %v795, %v613
        %v801 = vsel %vm799, %v796, %v615
        %v802 = vsel %vm799, %v797, %v617
        %v803 = vsel %vm799, %v798, %v619
        %vm804 = vcmask 654336
        %v805 = vsel %vm804, %v800, %v629
        %v806 = vsel %vm804, %v801, %v631
        %v807 = vsel %vm804, %v802, %v633
        %v808 = vsel %vm804, %v803, %v635
        %vm809 = vcmask 785408
        %v810 = vsel %vm809, %v805, %v645
        %v811 = vsel %vm809, %v806, %v647
        %v812 = vsel %vm809, %v807, %v649
        %v813 = vsel %vm809, %v808, %v651
        %vm814 = vcmask 916480
        %v815 = vsel %vm814, %v810, %v661
        %v816 = vsel %vm814, %v811, %v663
        %v817 = vsel %vm814, %v812, %v665
        %v818 = vsel %vm814, %v813, %v667
        %v819 = vsel %vm784, %v239, %v677
        %v820 = vsel %vm784, %v337, %v679
        %v821 = vsel %vm784, %v435, %v681
        %v822 = vsel %vm784, %v533, %v683
        %v823 = vsel %vm789, %v819, %v693
        %v824 = vsel %vm789, %v820, %v695
        %v825 = vsel %vm789, %v821, %v697
        %v826 = vsel %vm789, %v822, %v699
        %v827 = vsel %vm794, %v823, %v709
        %v828 = vsel %vm794, %v824, %v711
        %v829 = vsel %vm794, %v825, %v713
        %v830 = vsel %vm794, %v826, %v715
        %v831 = vsel %vm799, %v827, %v725
        %v832 = vsel %vm799, %v828, %v727
        %v833 = vsel %vm799, %v829, %v729
        %v834 = vsel %vm799, %v830, %v731
        %v835 = vsel %vm804, %v831, %v741
        %v836 = vsel %vm804, %v832, %v743
        %v837 = vsel %vm804, %v833, %v745
        %v838 = vsel %vm804, %v834, %v747
        %v839 = vsel %vm809, %v835, %v757
        %v840 = vsel %vm809, %v836, %v759
        %v841 = vsel %vm809, %v837, %v761
        %v842 = vsel %vm809, %v838, %v763
        %v843 = vsel %vm814, %v839, %v773
        %v844 = vsel %vm814, %v840, %v775
        %v845 = vsel %vm814, %v841, %v777
        %v846 = vsel %vm814, %v842, %v779
        %855 = vrot.lane.b32.xlu0 %v156, 127
        %v856 = vpop.permute.xlu0 %855
        %857 = vrot.lane.b32.xlu0 %v157, 127
        %v858 = vpop.permute.xlu0 %857
        %859 = vrot.lane.b32.xlu0 %v159, 127
        %v860 = vpop.permute.xlu0 %859
        %861 = vrot.lane.b32.xlu0 %v160, 127
        %v862 = vpop.permute.xlu0 %861
        %863 = vrot.lane.b32.xlu0 %v162, 127
        %v864 = vpop.permute.xlu0 %863
        %865 = vrot.lane.b32.xlu0 %v163, 127
        %v866 = vpop.permute.xlu0 %865
        %867 = vrot.lane.b32.xlu0 %v165, 127
        %v868 = vpop.permute.xlu0 %867
        %869 = vrot.lane.b32.xlu0 %v166, 127
        %v870 = vpop.permute.xlu0 %869
        %v879 = vcombine.high %v856, 0.0
        %v881 = vunpack.c.l.s4 1983009808
        %v882 = vunpack.c.0.s8 %v881
        %v883 = vlaneseq
        %v884 = vshrl.u32 %v883, 7
        %v885 = vsub.s32 %v882, %v884
        %v886 = vrot.slane %v856, %v885
        %v888 = vunpack.c.l.s4 1983009808
        %v889 = vunpack.c.0.s8 %v888
        %v890 = vlaneseq
        %v891 = vshrl.u32 %v890, 7
        %v892 = vsub.s32 %v889, %v891
        %v893 = vrot.slane %v879, %v892
        %v894 = vcombine.high %v886, 0.0
        %v896 = vunpack.c.l.s4 1934713408
        %v897 = vunpack.c.0.s8 %v896
        %v898 = vlaneseq
        %v899 = vshrl.u32 %v898, 7
        %v900 = vsub.s32 %v897, %v899
        %v901 = vrot.slane %v886, %v900
        %v903 = vunpack.c.l.s4 1934713408
        %v904 = vunpack.c.0.s8 %v903
        %v905 = vlaneseq
        %v906 = vshrl.u32 %v905, 7
        %v907 = vsub.s32 %v904, %v906
        %v908 = vrot.slane %v894, %v907
        %v909 = vcombine.high %v893, 0.0
        %v911 = vunpack.c.l.s4 1934713408
        %v912 = vunpack.c.0.s8 %v911
        %v913 = vlaneseq
        %v914 = vshrl.u32 %v913, 7
        %v915 = vsub.s32 %v912, %v914
        %v916 = vrot.slane %v893, %v915
        %v918 = vunpack.c.l.s4 1934713408
        %v919 = vunpack.c.0.s8 %v918
        %v920 = vlaneseq
        %v921 = vshrl.u32 %v920, 7
        %v922 = vsub.s32 %v919, %v921
        %v923 = vrot.slane %v909, %v922
        %v924 = vcombine.high %v901, 0.0
        %v925 = vcombine.high %v908, 0.0
        %v926 = vcombine.high %v916, 0.0
        %v927 = vcombine.high %v923, 0.0
        %v928 = vcombine.high %v858, 0.0
        %v930 = vunpack.c.l.s4 1983009808
        %v931 = vunpack.c.0.s8 %v930
        %v932 = vlaneseq
        %v933 = vshrl.u32 %v932, 7
        %v934 = vsub.s32 %v931, %v933
        %v935 = vrot.slane %v858, %v934
        %v937 = vunpack.c.l.s4 1983009808
        %v938 = vunpack.c.0.s8 %v937
        %v939 = vlaneseq
        %v940 = vshrl.u32 %v939, 7
        %v941 = vsub.s32 %v938, %v940
        %v942 = vrot.slane %v928, %v941
        %v943 = vcombine.high %v935, 0.0
        %v945 = vunpack.c.l.s4 1934713408
        %v946 = vunpack.c.0.s8 %v945
        %v947 = vlaneseq
        %v948 = vshrl.u32 %v947, 7
        %v949 = vsub.s32 %v946, %v948
        %v950 = vrot.slane %v935, %v949
        %v952 = vunpack.c.l.s4 1934713408
        %v953 = vunpack.c.0.s8 %v952
        %v954 = vlaneseq
        %v955 = vshrl.u32 %v954, 7
        %v956 = vsub.s32 %v953, %v955
        %v957 = vrot.slane %v943, %v956
        %v958 = vcombine.high %v942, 0.0
        %v960 = vunpack.c.l.s4 1934713408
        %v961 = vunpack.c.0.s8 %v960
        %v962 = vlaneseq
        %v963 = vshrl.u32 %v962, 7
        %v964 = vsub.s32 %v961, %v963
        %v965 = vrot.slane %v942, %v964
        %v967 = vunpack.c.l.s4 1934713408
        %v968 = vunpack.c.0.s8 %v967
        %v969 = vlaneseq
        %v970 = vshrl.u32 %v969, 7
        %v971 = vsub.s32 %v968, %v970
        %v972 = vrot.slane %v958, %v971
        %v973 = vcombine.high %v950, 0.0
        %v974 = vcombine.high %v957, 0.0
        %v975 = vcombine.high %v965, 0.0
        %v976 = vcombine.high %v972, 0.0
        %v977 = vcombine.high %v860, 0.0
        %v979 = vunpack.c.l.s4 1983009808
        %v980 = vunpack.c.0.s8 %v979
        %v981 = vlaneseq
        %v982 = vshrl.u32 %v981, 7
        %v983 = vsub.s32 %v980, %v982
        %v984 = vrot.slane %v860, %v983
        %v986 = vunpack.c.l.s4 1983009808
        %v987 = vunpack.c.0.s8 %v986
        %v988 = vlaneseq
        %v989 = vshrl.u32 %v988, 7
        %v990 = vsub.s32 %v987, %v989
        %v991 = vrot.slane %v977, %v990
        %v992 = vcombine.high %v984, 0.0
        %v994 = vunpack.c.l.s4 1934713408
        %v995 = vunpack.c.0.s8 %v994
        %v996 = vlaneseq
        %v997 = vshrl.u32 %v996, 7
        %v998 = vsub.s32 %v995, %v997
        %v999 = vrot.slane %v984, %v998
        %v1001 = vunpack.c.l.s4 1934713408
        %v1002 = vunpack.c.0.s8 %v1001
        %v1003 = vlaneseq
        %v1004 = vshrl.u32 %v1003, 7
        %v1005 = vsub.s32 %v1002, %v1004
        %v1006 = vrot.slane %v992, %v1005
        %v1007 = vcombine.high %v991, 0.0
        %v1009 = vunpack.c.l.s4 1934713408
        %v1010 = vunpack.c.0.s8 %v1009
        %v1011 = vlaneseq
        %v1012 = vshrl.u32 %v1011, 7
        %v1013 = vsub.s32 %v1010, %v1012
        %v1014 = vrot.slane %v991, %v1013
        %v1016 = vunpack.c.l.s4 1934713408
        %v1017 = vunpack.c.0.s8 %v1016
        %v1018 = vlaneseq
        %v1019 = vshrl.u32 %v1018, 7
        %v1020 = vsub.s32 %v1017, %v1019
        %v1021 = vrot.slane %v1007, %v1020
        %v1022 = vcombine.high %v999, 0.0
        %v1023 = vcombine.high %v1006, 0.0
        %v1024 = vcombine.high %v1014, 0.0
        %v1025 = vcombine.high %v1021, 0.0
        %v1026 = vcombine.high %v862, 0.0
        %v1028 = vunpack.c.l.s4 1983009808
        %v1029 = vunpack.c.0.s8 %v1028
        %v1030 = vlaneseq
        %v1031 = vshrl.u32 %v1030, 7
        %v1032 = vsub.s32 %v1029, %v1031
        %v1033 = vrot.slane %v862, %v1032
        %v1035 = vunpack.c.l.s4 1983009808
        %v1036 = vunpack.c.0.s8 %v1035
        %v1037 = vlaneseq
        %v1038 = vshrl.u32 %v1037, 7
        %v1039 = vsub.s32 %v1036, %v1038
        %v1040 = vrot.slane %v1026, %v1039
        %v1041 = vcombine.high %v1033, 0.0
        %v1043 = vunpack.c.l.s4 1934713408
        %v1044 = vunpack.c.0.s8 %v1043
        %v1045 = vlaneseq
        %v1046 = vshrl.u32 %v1045, 7
        %v1047 = vsub.s32 %v1044, %v1046
        %v1048 = vrot.slane %v1033, %v1047
        %v1050 = vunpack.c.l.s4 1934713408
        %v1051 = vunpack.c.0.s8 %v1050
        %v1052 = vlaneseq
        %v1053 = vshrl.u32 %v1052, 7
        %v1054 = vsub.s32 %v1051, %v1053
        %v1055 = vrot.slane %v1041, %v1054
        %v1056 = vcombine.high %v1040, 0.0
        %v1058 = vunpack.c.l.s4 1934713408
        %v1059 = vunpack.c.0.s8 %v1058
        %v1060 = vlaneseq
        %v1061 = vshrl.u32 %v1060, 7
        %v1062 = vsub.s32 %v1059, %v1061
        %v1063 = vrot.slane %v1040, %v1062
        %v1065 = vunpack.c.l.s4 1934713408
        %v1066 = vunpack.c.0.s8 %v1065
        %v1067 = vlaneseq
        %v1068 = vshrl.u32 %v1067, 7
        %v1069 = vsub.s32 %v1066, %v1068
        %v1070 = vrot.slane %v1056, %v1069
        %v1071 = vcombine.high %v1048, 0.0
        %v1072 = vcombine.high %v1055, 0.0
        %v1073 = vcombine.high %v1063, 0.0
        %v1074 = vcombine.high %v1070, 0.0
        %v1075 = vcombine.high %v864, 0.0
        %v1077 = vunpack.c.l.s4 1983009808
        %v1078 = vunpack.c.0.s8 %v1077
        %v1079 = vlaneseq
        %v1080 = vshrl.u32 %v1079, 7
        %v1081 = vsub.s32 %v1078, %v1080
        %v1082 = vrot.slane %v864, %v1081
        %v1084 = vunpack.c.l.s4 1983009808
        %v1085 = vunpack.c.0.s8 %v1084
        %v1086 = vlaneseq
        %v1087 = vshrl.u32 %v1086, 7
        %v1088 = vsub.s32 %v1085, %v1087
        %v1089 = vrot.slane %v1075, %v1088
        %v1090 = vcombine.high %v1082, 0.0
        %v1092 = vunpack.c.l.s4 1934713408
        %v1093 = vunpack.c.0.s8 %v1092
        %v1094 = vlaneseq
        %v1095 = vshrl.u32 %v1094, 7
        %v1096 = vsub.s32 %v1093, %v1095
        %v1097 = vrot.slane %v1082, %v1096
        %v1099 = vunpack.c.l.s4 1934713408
        %v1100 = vunpack.c.0.s8 %v1099
        %v1101 = vlaneseq
        %v1102 = vshrl.u32 %v1101, 7
        %v1103 = vsub.s32 %v1100, %v1102
        %v1104 = vrot.slane %v1090, %v1103
        %v1105 = vcombine.high %v1089, 0.0
        %v1107 = vunpack.c.l.s4 1934713408
        %v1108 = vunpack.c.0.s8 %v1107
        %v1109 = vlaneseq
        %v1110 = vshrl.u32 %v1109, 7
        %v1111 = vsub.s32 %v1108, %v1110
        %v1112 = vrot.slane %v1089, %v1111
        %v1114 = vunpack.c.l.s4 1934713408
        %v1115 = vunpack.c.0.s8 %v1114
        %v1116 = vlaneseq
        %v1117 = vshrl.u32 %v1116, 7
        %v1118 = vsub.s32 %v1115, %v1117
        %v1119 = vrot.slane %v1105, %v1118
        %v1120 = vcombine.high %v1097, 0.0
        %v1121 = vcombine.high %v1104, 0.0
        %v1122 = vcombine.high %v1112, 0.0
        %v1123 = vcombine.high %v1119, 0.0
        %v1124 = vcombine.high %v866, 0.0
        %v1126 = vunpack.c.l.s4 1983009808
        %v1127 = vunpack.c.0.s8 %v1126
        %v1128 = vlaneseq
        %v1129 = vshrl.u32 %v1128, 7
        %v1130 = vsub.s32 %v1127, %v1129
        %v1131 = vrot.slane %v866, %v1130
        %v1133 = vunpack.c.l.s4 1983009808
        %v1134 = vunpack.c.0.s8 %v1133
        %v1135 = vlaneseq
        %v1136 = vshrl.u32 %v1135, 7
        %v1137 = vsub.s32 %v1134, %v1136
        %v1138 = vrot.slane %v1124, %v1137
        %v1139 = vcombine.high %v1131, 0.0
        %v1141 = vunpack.c.l.s4 1934713408
        %v1142 = vunpack.c.0.s8 %v1141
        %v1143 = vlaneseq
        %v1144 = vshrl.u32 %v1143, 7
        %v1145 = vsub.s32 %v1142, %v1144
        %v1146 = vrot.slane %v1131, %v1145
        %v1148 = vunpack.c.l.s4 1934713408
        %v1149 = vunpack.c.0.s8 %v1148
        %v1150 = vlaneseq
        %v1151 = vshrl.u32 %v1150, 7
        %v1152 = vsub.s32 %v1149, %v1151
        %v1153 = vrot.slane %v1139, %v1152
        %v1154 = vcombine.high %v1138, 0.0
        %v1156 = vunpack.c.l.s4 1934713408
        %v1157 = vunpack.c.0.s8 %v1156
        %v1158 = vlaneseq
        %v1159 = vshrl.u32 %v1158, 7
        %v1160 = vsub.s32 %v1157, %v1159
        %v1161 = vrot.slane %v1138, %v1160
        %v1163 = vunpack.c.l.s4 1934713408
        %v1164 = vunpack.c.0.s8 %v1163
        %v1165 = vlaneseq
        %v1166 = vshrl.u32 %v1165, 7
        %v1167 = vsub.s32 %v1164, %v1166
        %v1168 = vrot.slane %v1154, %v1167
        %v1169 = vcombine.high %v1146, 0.0
        %v1170 = vcombine.high %v1153, 0.0
        %v1171 = vcombine.high %v1161, 0.0
        %v1172 = vcombine.high %v1168, 0.0
        %v1173 = vcombine.high %v868, 0.0
        %v1175 = vunpack.c.l.s4 1983009808
        %v1176 = vunpack.c.0.s8 %v1175
        %v1177 = vlaneseq
        %v1178 = vshrl.u32 %v1177, 7
        %v1179 = vsub.s32 %v1176, %v1178
        %v1180 = vrot.slane %v868, %v1179
        %v1182 = vunpack.c.l.s4 1983009808
        %v1183 = vunpack.c.0.s8 %v1182
        %v1184 = vlaneseq
        %v1185 = vshrl.u32 %v1184, 7
        %v1186 = vsub.s32 %v1183, %v1185
        %v1187 = vrot.slane %v1173, %v1186
        %v1188 = vcombine.high %v1180, 0.0
        %v1190 = vunpack.c.l.s4 1934713408
        %v1191 = vunpack.c.0.s8 %v1190
        %v1192 = vlaneseq
        %v1193 = vshrl.u32 %v1192, 7
        %v1194 = vsub.s32 %v1191, %v1193
        %v1195 = vrot.slane %v1180, %v1194
        %v1197 = vunpack.c.l.s4 1934713408
        %v1198 = vunpack.c.0.s8 %v1197
        %v1199 = vlaneseq
        %v1200 = vshrl.u32 %v1199, 7
        %v1201 = vsub.s32 %v1198, %v1200
        %v1202 = vrot.slane %v1188, %v1201
        %v1203 = vcombine.high %v1187, 0.0
        %v1205 = vunpack.c.l.s4 1934713408
        %v1206 = vunpack.c.0.s8 %v1205
        %v1207 = vlaneseq
        %v1208 = vshrl.u32 %v1207, 7
        %v1209 = vsub.s32 %v1206, %v1208
        %v1210 = vrot.slane %v1187, %v1209
        %v1212 = vunpack.c.l.s4 1934713408
        %v1213 = vunpack.c.0.s8 %v1212
        %v1214 = vlaneseq
        %v1215 = vshrl.u32 %v1214, 7
        %v1216 = vsub.s32 %v1213, %v1215
        %v1217 = vrot.slane %v1203, %v1216
        %v1218 = vcombine.high %v1195, 0.0
        %v1219 = vcombine.high %v1202, 0.0
        %v1220 = vcombine.high %v1210, 0.0
        %v1221 = vcombine.high %v1217, 0.0
        %v1222 = vcombine.high %v870, 0.0
        %v1224 = vunpack.c.l.s4 1983009808
        %v1225 = vunpack.c.0.s8 %v1224
        %v1226 = vlaneseq
        %v1227 = vshrl.u32 %v1226, 7
        %v1228 = vsub.s32 %v1225, %v1227
        %v1229 = vrot.slane %v870, %v1228
        %v1231 = vunpack.c.l.s4 1983009808
        %v1232 = vunpack.c.0.s8 %v1231
        %v1233 = vlaneseq
        %v1234 = vshrl.u32 %v1233, 7
        %v1235 = vsub.s32 %v1232, %v1234
        %v1236 = vrot.slane %v1222, %v1235
        %v1237 = vcombine.high %v1229, 0.0
        %v1239 = vunpack.c.l.s4 1934713408
        %v1240 = vunpack.c.0.s8 %v1239
        %v1241 = vlaneseq
        %v1242 = vshrl.u32 %v1241, 7
        %v1243 = vsub.s32 %v1240, %v1242
        %v1244 = vrot.slane %v1229, %v1243
        %v1246 = vunpack.c.l.s4 1934713408
        %v1247 = vunpack.c.0.s8 %v1246
        %v1248 = vlaneseq
        %v1249 = vshrl.u32 %v1248, 7
        %v1250 = vsub.s32 %v1247, %v1249
        %v1251 = vrot.slane %v1237, %v1250
        %v1252 = vcombine.high %v1236, 0.0
        %v1254 = vunpack.c.l.s4 1934713408
        %v1255 = vunpack.c.0.s8 %v1254
        %v1256 = vlaneseq
        %v1257 = vshrl.u32 %v1256, 7
        %v1258 = vsub.s32 %v1255, %v1257
        %v1259 = vrot.slane %v1236, %v1258
        %v1261 = vunpack.c.l.s4 1934713408
        %v1262 = vunpack.c.0.s8 %v1261
        %v1263 = vlaneseq
        %v1264 = vshrl.u32 %v1263, 7
        %v1265 = vsub.s32 %v1262, %v1264
        %v1266 = vrot.slane %v1252, %v1265
        %v1267 = vcombine.high %v1244, 0.0
        %v1268 = vcombine.high %v1251, 0.0
        %v1269 = vcombine.high %v1259, 0.0
        %v1270 = vcombine.high %v1266, 0.0
        %1275 = vrot.lane.b32.xlu0 %v924, 16
        %v1276 = vpop.permute.xlu0 %1275
        %1277 = vrot.lane.b32.xlu0 %v1022, 16
        %v1278 = vpop.permute.xlu0 %1277
        %1279 = vrot.lane.b32.xlu0 %v1120, 16
        %v1280 = vpop.permute.xlu0 %1279
        %1281 = vrot.lane.b32.xlu0 %v1218, 16
        %v1282 = vpop.permute.xlu0 %1281
        %1291 = vrot.lane.b32.xlu0 %v908, 32
        %v1292 = vpop.permute.xlu0 %1291
        %1293 = vrot.lane.b32.xlu0 %v1006, 32
        %v1294 = vpop.permute.xlu0 %1293
        %1295 = vrot.lane.b32.xlu0 %v1104, 32
        %v1296 = vpop.permute.xlu0 %1295
        %1297 = vrot.lane.b32.xlu0 %v1202, 32
        %v1298 = vpop.permute.xlu0 %1297
        %1307 = vrot.lane.b32.xlu0 %v925, 48
        %v1308 = vpop.permute.xlu0 %1307
        %1309 = vrot.lane.b32.xlu0 %v1023, 48
        %v1310 = vpop.permute.xlu0 %1309
        %1311 = vrot.lane.b32.xlu0 %v1121, 48
        %v1312 = vpop.permute.xlu0 %1311
        %1313 = vrot.lane.b32.xlu0 %v1219, 48
        %v1314 = vpop.permute.xlu0 %1313
        %1323 = vrot.lane.b32.xlu0 %v916, 64
        %v1324 = vpop.permute.xlu0 %1323
        %1325 = vrot.lane.b32.xlu0 %v1014, 64
        %v1326 = vpop.permute.xlu0 %1325
        %1327 = vrot.lane.b32.xlu0 %v1112, 64
        %v1328 = vpop.permute.xlu0 %1327
        %1329 = vrot.lane.b32.xlu0 %v1210, 64
        %v1330 = vpop.permute.xlu0 %1329
        %1339 = vrot.lane.b32.xlu0 %v926, 80
        %v1340 = vpop.permute.xlu0 %1339
        %1341 = vrot.lane.b32.xlu0 %v1024, 80
        %v1342 = vpop.permute.xlu0 %1341
        %1343 = vrot.lane.b32.xlu0 %v1122, 80
        %v1344 = vpop.permute.xlu0 %1343
        %1345 = vrot.lane.b32.xlu0 %v1220, 80
        %v1346 = vpop.permute.xlu0 %1345
        %1355 = vrot.lane.b32.xlu0 %v923, 96
        %v1356 = vpop.permute.xlu0 %1355
        %1357 = vrot.lane.b32.xlu0 %v1021, 96
        %v1358 = vpop.permute.xlu0 %1357
        %1359 = vrot.lane.b32.xlu0 %v1119, 96
        %v1360 = vpop.permute.xlu0 %1359
        %1361 = vrot.lane.b32.xlu0 %v1217, 96
        %v1362 = vpop.permute.xlu0 %1361
        %1371 = vrot.lane.b32.xlu0 %v927, 112
        %v1372 = vpop.permute.xlu0 %1371
        %1373 = vrot.lane.b32.xlu0 %v1025, 112
        %v1374 = vpop.permute.xlu0 %1373
        %1375 = vrot.lane.b32.xlu0 %v1123, 112
        %v1376 = vpop.permute.xlu0 %1375
        %1377 = vrot.lane.b32.xlu0 %v1221, 112
        %v1378 = vpop.permute.xlu0 %1377
        %1387 = vrot.lane.b32.xlu0 %v973, 16
        %v1388 = vpop.permute.xlu0 %1387
        %1389 = vrot.lane.b32.xlu0 %v1071, 16
        %v1390 = vpop.permute.xlu0 %1389
        %1391 = vrot.lane.b32.xlu0 %v1169, 16
        %v1392 = vpop.permute.xlu0 %1391
        %1393 = vrot.lane.b32.xlu0 %v1267, 16
        %v1394 = vpop.permute.xlu0 %1393
        %1403 = vrot.lane.b32.xlu0 %v957, 32
        %v1404 = vpop.permute.xlu0 %1403
        %1405 = vrot.lane.b32.xlu0 %v1055, 32
        %v1406 = vpop.permute.xlu0 %1405
        %1407 = vrot.lane.b32.xlu0 %v1153, 32
        %v1408 = vpop.permute.xlu0 %1407
        %1409 = vrot.lane.b32.xlu0 %v1251, 32
        %v1410 = vpop.permute.xlu0 %1409
        %1419 = vrot.lane.b32.xlu0 %v974, 48
        %v1420 = vpop.permute.xlu0 %1419
        %1421 = vrot.lane.b32.xlu0 %v1072, 48
        %v1422 = vpop.permute.xlu0 %1421
        %1423 = vrot.lane.b32.xlu0 %v1170, 48
        %v1424 = vpop.permute.xlu0 %1423
        %1425 = vrot.lane.b32.xlu0 %v1268, 48
        %v1426 = vpop.permute.xlu0 %1425
        %1435 = vrot.lane.b32.xlu0 %v965, 64
        %v1436 = vpop.permute.xlu0 %1435
        %1437 = vrot.lane.b32.xlu0 %v1063, 64
        %v1438 = vpop.permute.xlu0 %1437
        %1439 = vrot.lane.b32.xlu0 %v1161, 64
        %v1440 = vpop.permute.xlu0 %1439
        %1441 = vrot.lane.b32.xlu0 %v1259, 64
        %v1442 = vpop.permute.xlu0 %1441
        %1451 = vrot.lane.b32.xlu0 %v975, 80
        %v1452 = vpop.permute.xlu0 %1451
        %1453 = vrot.lane.b32.xlu0 %v1073, 80
        %v1454 = vpop.permute.xlu0 %1453
        %1455 = vrot.lane.b32.xlu0 %v1171, 80
        %v1456 = vpop.permute.xlu0 %1455
        %1457 = vrot.lane.b32.xlu0 %v1269, 80
        %v1458 = vpop.permute.xlu0 %1457
        %1467 = vrot.lane.b32.xlu0 %v972, 96
        %v1468 = vpop.permute.xlu0 %1467
        %1469 = vrot.lane.b32.xlu0 %v1070, 96
        %v1470 = vpop.permute.xlu0 %1469
        %1471 = vrot.lane.b32.xlu0 %v1168, 96
        %v1472 = vpop.permute.xlu0 %1471
        %1473 = vrot.lane.b32.xlu0 %v1266, 96
        %v1474 = vpop.permute.xlu0 %1473
        %1483 = vrot.lane.b32.xlu0 %v976, 112
        %v1484 = vpop.permute.xlu0 %1483
        %1485 = vrot.lane.b32.xlu0 %v1074, 112
        %v1486 = vpop.permute.xlu0 %1485
        %1487 = vrot.lane.b32.xlu0 %v1172, 112
        %v1488 = vpop.permute.xlu0 %1487
        %1489 = vrot.lane.b32.xlu0 %v1270, 112
        %v1490 = vpop.permute.xlu0 %1489
        %v1495 = vsel %vm784, %v901, %v1276
        %v1496 = vsel %vm784, %v999, %v1278
        %v1497 = vsel %vm784, %v1097, %v1280
        %v1498 = vsel %vm784, %v1195, %v1282
        %v1499 = vsel %vm789, %v1495, %v1292
        %v1500 = vsel %vm789, %v1496, %v1294
        %v1501 = vsel %vm789, %v1497, %v1296
        %v1502 = vsel %vm789, %v1498, %v1298
        %v1503 = vsel %vm794, %v1499, %v1308
        %v1504 = vsel %vm794, %v1500, %v1310
        %v1505 = vsel %vm794, %v1501, %v1312
        %v1506 = vsel %vm794, %v1502, %v1314
        %v1507 = vsel %vm799, %v1503, %v1324
        %v1508 = vsel %vm799, %v1504, %v1326
        %v1509 = vsel %vm799, %v1505, %v1328
        %v1510 = vsel %vm799, %v1506, %v1330
        %v1511 = vsel %vm804, %v1507, %v1340
        %v1512 = vsel %vm804, %v1508, %v1342
        %v1513 = vsel %vm804, %v1509, %v1344
        %v1514 = vsel %vm804, %v1510, %v1346
        %v1515 = vsel %vm809, %v1511, %v1356
        %v1516 = vsel %vm809, %v1512, %v1358
        %v1517 = vsel %vm809, %v1513, %v1360
        %v1518 = vsel %vm809, %v1514, %v1362
        %v1519 = vsel %vm814, %v1515, %v1372
        %v1520 = vsel %vm814, %v1516, %v1374
        %v1521 = vsel %vm814, %v1517, %v1376
        %v1522 = vsel %vm814, %v1518, %v1378
        %v1523 = vsel %vm784, %v950, %v1388
        %v1524 = vsel %vm784, %v1048, %v1390
        %v1525 = vsel %vm784, %v1146, %v1392
        %v1526 = vsel %vm784, %v1244, %v1394
        %v1527 = vsel %vm789, %v1523, %v1404
        %v1528 = vsel %vm789, %v1524, %v1406
        %v1529 = vsel %vm789, %v1525, %v1408
        %v1530 = vsel %vm789, %v1526, %v1410
        %v1531 = vsel %vm794, %v1527, %v1420
        %v1532 = vsel %vm794, %v1528, %v1422
        %v1533 = vsel %vm794, %v1529, %v1424
        %v1534 = vsel %vm794, %v1530, %v1426
        %v1535 = vsel %vm799, %v1531, %v1436
        %v1536 = vsel %vm799, %v1532, %v1438
        %v1537 = vsel %vm799, %v1533, %v1440
        %v1538 = vsel %vm799, %v1534, %v1442
        %v1539 = vsel %vm804, %v1535, %v1452
        %v1540 = vsel %vm804, %v1536, %v1454
        %v1541 = vsel %vm804, %v1537, %v1456
        %v1542 = vsel %vm804, %v1538, %v1458
        %v1543 = vsel %vm809, %v1539, %v1468
        %v1544 = vsel %vm809, %v1540, %v1470
        %v1545 = vsel %vm809, %v1541, %v1472
        %v1546 = vsel %vm809, %v1542, %v1474
        %v1547 = vsel %vm814, %v1543, %v1484
        %v1548 = vsel %vm814, %v1544, %v1486
        %v1549 = vsel %vm814, %v1545, %v1488
        %v1550 = vsel %vm814, %v1546, %v1490
        %1551 = vrot.lane.b32.xlu0 %v156, 126
        %v1552 = vpop.permute.xlu0 %1551
        %1553 = vrot.lane.b32.xlu0 %v157, 126
        %v1554 = vpop.permute.xlu0 %1553
        %1555 = vrot.lane.b32.xlu0 %v159, 126
        %v1556 = vpop.permute.xlu0 %1555
        %1557 = vrot.lane.b32.xlu0 %v160, 126
        %v1558 = vpop.permute.xlu0 %1557
        %1559 = vrot.lane.b32.xlu0 %v162, 126
        %v1560 = vpop.permute.xlu0 %1559
        %1561 = vrot.lane.b32.xlu0 %v163, 126
        %v1562 = vpop.permute.xlu0 %1561
        %1563 = vrot.lane.b32.xlu0 %v165, 126
        %v1564 = vpop.permute.xlu0 %1563
        %1565 = vrot.lane.b32.xlu0 %v166, 126
        %v1566 = vpop.permute.xlu0 %1565
        %v1575 = vcombine.high %v1552, 0.0
        %v1577 = vunpack.c.l.s4 1983009808
        %v1578 = vunpack.c.0.s8 %v1577
        %v1579 = vlaneseq
        %v1580 = vshrl.u32 %v1579, 7
        %v1581 = vsub.s32 %v1578, %v1580
        %v1582 = vrot.slane %v1552, %v1581
        %v1584 = vunpack.c.l.s4 1983009808
        %v1585 = vunpack.c.0.s8 %v1584
        %v1586 = vlaneseq
        %v1587 = vshrl.u32 %v1586, 7
        %v1588 = vsub.s32 %v1585, %v1587
        %v1589 = vrot.slane %v1575, %v1588
        %v1590 = vcombine.high %v1582, 0.0
        %v1592 = vunpack.c.l.s4 1934713408
        %v1593 = vunpack.c.0.s8 %v1592
        %v1594 = vlaneseq
        %v1595 = vshrl.u32 %v1594, 7
        %v1596 = vsub.s32 %v1593, %v1595
        %v1597 = vrot.slane %v1582, %v1596
        %v1599 = vunpack.c.l.s4 1934713408
        %v1600 = vunpack.c.0.s8 %v1599
        %v1601 = vlaneseq
        %v1602 = vshrl.u32 %v1601, 7
        %v1603 = vsub.s32 %v1600, %v1602
        %v1604 = vrot.slane %v1590, %v1603
        %v1605 = vcombine.high %v1589, 0.0
        %v1607 = vunpack.c.l.s4 1934713408
        %v1608 = vunpack.c.0.s8 %v1607
        %v1609 = vlaneseq
        %v1610 = vshrl.u32 %v1609, 7
        %v1611 = vsub.s32 %v1608, %v1610
        %v1612 = vrot.slane %v1589, %v1611
        %v1614 = vunpack.c.l.s4 1934713408
        %v1615 = vunpack.c.0.s8 %v1614
        %v1616 = vlaneseq
        %v1617 = vshrl.u32 %v1616, 7
        %v1618 = vsub.s32 %v1615, %v1617
        %v1619 = vrot.slane %v1605, %v1618
        %v1620 = vcombine.high %v1597, 0.0
        %v1621 = vcombine.high %v1604, 0.0
        %v1622 = vcombine.high %v1612, 0.0
        %v1623 = vcombine.high %v1619, 0.0
        %v1624 = vcombine.high %v1554, 0.0
        %v1626 = vunpack.c.l.s4 1983009808
        %v1627 = vunpack.c.0.s8 %v1626
        %v1628 = vlaneseq
        %v1629 = vshrl.u32 %v1628, 7
        %v1630 = vsub.s32 %v1627, %v1629
        %v1631 = vrot.slane %v1554, %v1630
        %v1633 = vunpack.c.l.s4 1983009808
        %v1634 = vunpack.c.0.s8 %v1633
        %v1635 = vlaneseq
        %v1636 = vshrl.u32 %v1635, 7
        %v1637 = vsub.s32 %v1634, %v1636
        %v1638 = vrot.slane %v1624, %v1637
        %v1639 = vcombine.high %v1631, 0.0
        %v1641 = vunpack.c.l.s4 1934713408
        %v1642 = vunpack.c.0.s8 %v1641
        %v1643 = vlaneseq
        %v1644 = vshrl.u32 %v1643, 7
        %v1645 = vsub.s32 %v1642, %v1644
        %v1646 = vrot.slane %v1631, %v1645
        %v1648 = vunpack.c.l.s4 1934713408
        %v1649 = vunpack.c.0.s8 %v1648
        %v1650 = vlaneseq
        %v1651 = vshrl.u32 %v1650, 7
        %v1652 = vsub.s32 %v1649, %v1651
        %v1653 = vrot.slane %v1639, %v1652
        %v1654 = vcombine.high %v1638, 0.0
        %v1656 = vunpack.c.l.s4 1934713408
        %v1657 = vunpack.c.0.s8 %v1656
        %v1658 = vlaneseq
        %v1659 = vshrl.u32 %v1658, 7
        %v1660 = vsub.s32 %v1657, %v1659
        %v1661 = vrot.slane %v1638, %v1660
        %v1663 = vunpack.c.l.s4 1934713408
        %v1664 = vunpack.c.0.s8 %v1663
        %v1665 = vlaneseq
        %v1666 = vshrl.u32 %v1665, 7
        %v1667 = vsub.s32 %v1664, %v1666
        %v1668 = vrot.slane %v1654, %v1667
        %v1669 = vcombine.high %v1646, 0.0
        %v1670 = vcombine.high %v1653, 0.0
        %v1671 = vcombine.high %v1661, 0.0
        %v1672 = vcombine.high %v1668, 0.0
        %v1673 = vcombine.high %v1556, 0.0
        %v1675 = vunpack.c.l.s4 1983009808
        %v1676 = vunpack.c.0.s8 %v1675
        %v1677 = vlaneseq
        %v1678 = vshrl.u32 %v1677, 7
        %v1679 = vsub.s32 %v1676, %v1678
        %v1680 = vrot.slane %v1556, %v1679
        %v1682 = vunpack.c.l.s4 1983009808
        %v1683 = vunpack.c.0.s8 %v1682
        %v1684 = vlaneseq
        %v1685 = vshrl.u32 %v1684, 7
        %v1686 = vsub.s32 %v1683, %v1685
        %v1687 = vrot.slane %v1673, %v1686
        %v1688 = vcombine.high %v1680, 0.0
        %v1690 = vunpack.c.l.s4 1934713408
        %v1691 = vunpack.c.0.s8 %v1690
        %v1692 = vlaneseq
        %v1693 = vshrl.u32 %v1692, 7
        %v1694 = vsub.s32 %v1691, %v1693
        %v1695 = vrot.slane %v1680, %v1694
        %v1697 = vunpack.c.l.s4 1934713408
        %v1698 = vunpack.c.0.s8 %v1697
        %v1699 = vlaneseq
        %v1700 = vshrl.u32 %v1699, 7
        %v1701 = vsub.s32 %v1698, %v1700
        %v1702 = vrot.slane %v1688, %v1701
        %v1703 = vcombine.high %v1687, 0.0
        %v1705 = vunpack.c.l.s4 1934713408
        %v1706 = vunpack.c.0.s8 %v1705
        %v1707 = vlaneseq
        %v1708 = vshrl.u32 %v1707, 7
        %v1709 = vsub.s32 %v1706, %v1708
        %v1710 = vrot.slane %v1687, %v1709
        %v1712 = vunpack.c.l.s4 1934713408
        %v1713 = vunpack.c.0.s8 %v1712
        %v1714 = vlaneseq
        %v1715 = vshrl.u32 %v1714, 7
        %v1716 = vsub.s32 %v1713, %v1715
        %v1717 = vrot.slane %v1703, %v1716
        %v1718 = vcombine.high %v1695, 0.0
        %v1719 = vcombine.high %v1702, 0.0
        %v1720 = vcombine.high %v1710, 0.0
        %v1721 = vcombine.high %v1717, 0.0
        %v1722 = vcombine.high %v1558, 0.0
        %v1724 = vunpack.c.l.s4 1983009808
        %v1725 = vunpack.c.0.s8 %v1724
        %v1726 = vlaneseq
        %v1727 = vshrl.u32 %v1726, 7
        %v1728 = vsub.s32 %v1725, %v1727
        %v1729 = vrot.slane %v1558, %v1728
        %v1731 = vunpack.c.l.s4 1983009808
        %v1732 = vunpack.c.0.s8 %v1731
        %v1733 = vlaneseq
        %v1734 = vshrl.u32 %v1733, 7
        %v1735 = vsub.s32 %v1732, %v1734
        %v1736 = vrot.slane %v1722, %v1735
        %v1737 = vcombine.high %v1729, 0.0
        %v1739 = vunpack.c.l.s4 1934713408
        %v1740 = vunpack.c.0.s8 %v1739
        %v1741 = vlaneseq
        %v1742 = vshrl.u32 %v1741, 7
        %v1743 = vsub.s32 %v1740, %v1742
        %v1744 = vrot.slane %v1729, %v1743
        %v1746 = vunpack.c.l.s4 1934713408
        %v1747 = vunpack.c.0.s8 %v1746
        %v1748 = vlaneseq
        %v1749 = vshrl.u32 %v1748, 7
        %v1750 = vsub.s32 %v1747, %v1749
        %v1751 = vrot.slane %v1737, %v1750
        %v1752 = vcombine.high %v1736, 0.0
        %v1754 = vunpack.c.l.s4 1934713408
        %v1755 = vunpack.c.0.s8 %v1754
        %v1756 = vlaneseq
        %v1757 = vshrl.u32 %v1756, 7
        %v1758 = vsub.s32 %v1755, %v1757
        %v1759 = vrot.slane %v1736, %v1758
        %v1761 = vunpack.c.l.s4 1934713408
        %v1762 = vunpack.c.0.s8 %v1761
        %v1763 = vlaneseq
        %v1764 = vshrl.u32 %v1763, 7
        %v1765 = vsub.s32 %v1762, %v1764
        %v1766 = vrot.slane %v1752, %v1765
        %v1767 = vcombine.high %v1744, 0.0
        %v1768 = vcombine.high %v1751, 0.0
        %v1769 = vcombine.high %v1759, 0.0
        %v1770 = vcombine.high %v1766, 0.0
        %v1771 = vcombine.high %v1560, 0.0
        %v1773 = vunpack.c.l.s4 1983009808
        %v1774 = vunpack.c.0.s8 %v1773
        %v1775 = vlaneseq
        %v1776 = vshrl.u32 %v1775, 7
        %v1777 = vsub.s32 %v1774, %v1776
        %v1778 = vrot.slane %v1560, %v1777
        %v1780 = vunpack.c.l.s4 1983009808
        %v1781 = vunpack.c.0.s8 %v1780
        %v1782 = vlaneseq
        %v1783 = vshrl.u32 %v1782, 7
        %v1784 = vsub.s32 %v1781, %v1783
        %v1785 = vrot.slane %v1771, %v1784
        %v1786 = vcombine.high %v1778, 0.0
        %v1788 = vunpack.c.l.s4 1934713408
        %v1789 = vunpack.c.0.s8 %v1788
        %v1790 = vlaneseq
        %v1791 = vshrl.u32 %v1790, 7
        %v1792 = vsub.s32 %v1789, %v1791
        %v1793 = vrot.slane %v1778, %v1792
        %v1795 = vunpack.c.l.s4 1934713408
        %v1796 = vunpack.c.0.s8 %v1795
        %v1797 = vlaneseq
        %v1798 = vshrl.u32 %v1797, 7
        %v1799 = vsub.s32 %v1796, %v1798
        %v1800 = vrot.slane %v1786, %v1799
        %v1801 = vcombine.high %v1785, 0.0
        %v1803 = vunpack.c.l.s4 1934713408
        %v1804 = vunpack.c.0.s8 %v1803
        %v1805 = vlaneseq
        %v1806 = vshrl.u32 %v1805, 7
        %v1807 = vsub.s32 %v1804, %v1806
        %v1808 = vrot.slane %v1785, %v1807
        %v1810 = vunpack.c.l.s4 1934713408
        %v1811 = vunpack.c.0.s8 %v1810
        %v1812 = vlaneseq
        %v1813 = vshrl.u32 %v1812, 7
        %v1814 = vsub.s32 %v1811, %v1813
        %v1815 = vrot.slane %v1801, %v1814
        %v1816 = vcombine.high %v1793, 0.0
        %v1817 = vcombine.high %v1800, 0.0
        %v1818 = vcombine.high %v1808, 0.0
        %v1819 = vcombine.high %v1815, 0.0
        %v1820 = vcombine.high %v1562, 0.0
        %v1822 = vunpack.c.l.s4 1983009808
        %v1823 = vunpack.c.0.s8 %v1822
        %v1824 = vlaneseq
        %v1825 = vshrl.u32 %v1824, 7
        %v1826 = vsub.s32 %v1823, %v1825
        %v1827 = vrot.slane %v1562, %v1826
        %v1829 = vunpack.c.l.s4 1983009808
        %v1830 = vunpack.c.0.s8 %v1829
        %v1831 = vlaneseq
        %v1832 = vshrl.u32 %v1831, 7
        %v1833 = vsub.s32 %v1830, %v1832
        %v1834 = vrot.slane %v1820, %v1833
        %v1835 = vcombine.high %v1827, 0.0
        %v1837 = vunpack.c.l.s4 1934713408
        %v1838 = vunpack.c.0.s8 %v1837
        %v1839 = vlaneseq
        %v1840 = vshrl.u32 %v1839, 7
        %v1841 = vsub.s32 %v1838, %v1840
        %v1842 = vrot.slane %v1827, %v1841
        %v1844 = vunpack.c.l.s4 1934713408
        %v1845 = vunpack.c.0.s8 %v1844
        %v1846 = vlaneseq
        %v1847 = vshrl.u32 %v1846, 7
        %v1848 = vsub.s32 %v1845, %v1847
        %v1849 = vrot.slane %v1835, %v1848
        %v1850 = vcombine.high %v1834, 0.0
        %v1852 = vunpack.c.l.s4 1934713408
        %v1853 = vunpack.c.0.s8 %v1852
        %v1854 = vlaneseq
        %v1855 = vshrl.u32 %v1854, 7
        %v1856 = vsub.s32 %v1853, %v1855
        %v1857 = vrot.slane %v1834, %v1856
        %v1859 = vunpack.c.l.s4 1934713408
        %v1860 = vunpack.c.0.s8 %v1859
        %v1861 = vlaneseq
        %v1862 = vshrl.u32 %v1861, 7
        %v1863 = vsub.s32 %v1860, %v1862
        %v1864 = vrot.slane %v1850, %v1863
        %v1865 = vcombine.high %v1842, 0.0
        %v1866 = vcombine.high %v1849, 0.0
        %v1867 = vcombine.high %v1857, 0.0
        %v1868 = vcombine.high %v1864, 0.0
        %v1869 = vcombine.high %v1564, 0.0
        %v1871 = vunpack.c.l.s4 1983009808
        %v1872 = vunpack.c.0.s8 %v1871
        %v1873 = vlaneseq
        %v1874 = vshrl.u32 %v1873, 7
        %v1875 = vsub.s32 %v1872, %v1874
        %v1876 = vrot.slane %v1564, %v1875
        %v1878 = vunpack.c.l.s4 1983009808
        %v1879 = vunpack.c.0.s8 %v1878
        %v1880 = vlaneseq
        %v1881 = vshrl.u32 %v1880, 7
        %v1882 = vsub.s32 %v1879, %v1881
        %v1883 = vrot.slane %v1869, %v1882
        %v1884 = vcombine.high %v1876, 0.0
        %v1886 = vunpack.c.l.s4 1934713408
        %v1887 = vunpack.c.0.s8 %v1886
        %v1888 = vlaneseq
        %v1889 = vshrl.u32 %v1888, 7
        %v1890 = vsub.s32 %v1887, %v1889
        %v1891 = vrot.slane %v1876, %v1890
        %v1893 = vunpack.c.l.s4 1934713408
        %v1894 = vunpack.c.0.s8 %v1893
        %v1895 = vlaneseq
        %v1896 = vshrl.u32 %v1895, 7
        %v1897 = vsub.s32 %v1894, %v1896
        %v1898 = vrot.slane %v1884, %v1897
        %v1899 = vcombine.high %v1883, 0.0
        %v1901 = vunpack.c.l.s4 1934713408
        %v1902 = vunpack.c.0.s8 %v1901
        %v1903 = vlaneseq
        %v1904 = vshrl.u32 %v1903, 7
        %v1905 = vsub.s32 %v1902, %v1904
        %v1906 = vrot.slane %v1883, %v1905
        %v1908 = vunpack.c.l.s4 1934713408
        %v1909 = vunpack.c.0.s8 %v1908
        %v1910 = vlaneseq
        %v1911 = vshrl.u32 %v1910, 7
        %v1912 = vsub.s32 %v1909, %v1911
        %v1913 = vrot.slane %v1899, %v1912
        %v1914 = vcombine.high %v1891, 0.0
        %v1915 = vcombine.high %v1898, 0.0
        %v1916 = vcombine.high %v1906, 0.0
        %v1917 = vcombine.high %v1913, 0.0
        %v1918 = vcombine.high %v1566, 0.0
        %v1920 = vunpack.c.l.s4 1983009808
        %v1921 = vunpack.c.0.s8 %v1920
        %v1922 = vlaneseq
        %v1923 = vshrl.u32 %v1922, 7
        %v1924 = vsub.s32 %v1921, %v1923
        %v1925 = vrot.slane %v1566, %v1924
        %v1927 = vunpack.c.l.s4 1983009808
        %v1928 = vunpack.c.0.s8 %v1927
        %v1929 = vlaneseq
        %v1930 = vshrl.u32 %v1929, 7
        %v1931 = vsub.s32 %v1928, %v1930
        %v1932 = vrot.slane %v1918, %v1931
        %v1933 = vcombine.high %v1925, 0.0
        %v1935 = vunpack.c.l.s4 1934713408
        %v1936 = vunpack.c.0.s8 %v1935
        %v1937 = vlaneseq
        %v1938 = vshrl.u32 %v1937, 7
        %v1939 = vsub.s32 %v1936, %v1938
        %v1940 = vrot.slane %v1925, %v1939
        %v1942 = vunpack.c.l.s4 1934713408
        %v1943 = vunpack.c.0.s8 %v1942
        %v1944 = vlaneseq
        %v1945 = vshrl.u32 %v1944, 7
        %v1946 = vsub.s32 %v1943, %v1945
        %v1947 = vrot.slane %v1933, %v1946
        %v1948 = vcombine.high %v1932, 0.0
        %v1950 = vunpack.c.l.s4 1934713408
        %v1951 = vunpack.c.0.s8 %v1950
        %v1952 = vlaneseq
        %v1953 = vshrl.u32 %v1952, 7
        %v1954 = vsub.s32 %v1951, %v1953
        %v1955 = vrot.slane %v1932, %v1954
        %v1957 = vunpack.c.l.s4 1934713408
        %v1958 = vunpack.c.0.s8 %v1957
        %v1959 = vlaneseq
        %v1960 = vshrl.u32 %v1959, 7
        %v1961 = vsub.s32 %v1958, %v1960
        %v1962 = vrot.slane %v1948, %v1961
        %v1963 = vcombine.high %v1940, 0.0
        %v1964 = vcombine.high %v1947, 0.0
        %v1965 = vcombine.high %v1955, 0.0
        %v1966 = vcombine.high %v1962, 0.0
        %1971 = vrot.lane.b32.xlu0 %v1620, 16
        %v1972 = vpop.permute.xlu0 %1971
        %1973 = vrot.lane.b32.xlu0 %v1718, 16
        %v1974 = vpop.permute.xlu0 %1973
        %1975 = vrot.lane.b32.xlu0 %v1816, 16
        %v1976 = vpop.permute.xlu0 %1975
        %1977 = vrot.lane.b32.xlu0 %v1914, 16
        %v1978 = vpop.permute.xlu0 %1977
        %1987 = vrot.lane.b32.xlu0 %v1604, 32
        %v1988 = vpop.permute.xlu0 %1987
        %1989 = vrot.lane.b32.xlu0 %v1702, 32
        %v1990 = vpop.permute.xlu0 %1989
        %1991 = vrot.lane.b32.xlu0 %v1800, 32
        %v1992 = vpop.permute.xlu0 %1991
        %1993 = vrot.lane.b32.xlu0 %v1898, 32
        %v1994 = vpop.permute.xlu0 %1993
        %2003 = vrot.lane.b32.xlu0 %v1621, 48
        %v2004 = vpop.permute.xlu0 %2003
        %2005 = vrot.lane.b32.xlu0 %v1719, 48
        %v2006 = vpop.permute.xlu0 %2005
        %2007 = vrot.lane.b32.xlu0 %v1817, 48
        %v2008 = vpop.permute.xlu0 %2007
        %2009 = vrot.lane.b32.xlu0 %v1915, 48
        %v2010 = vpop.permute.xlu0 %2009
        %2019 = vrot.lane.b32.xlu0 %v1612, 64
        %v2020 = vpop.permute.xlu0 %2019
        %2021 = vrot.lane.b32.xlu0 %v1710, 64
        %v2022 = vpop.permute.xlu0 %2021
        %2023 = vrot.lane.b32.xlu0 %v1808, 64
        %v2024 = vpop.permute.xlu0 %2023
        %2025 = vrot.lane.b32.xlu0 %v1906, 64
        %v2026 = vpop.permute.xlu0 %2025
        %2035 = vrot.lane.b32.xlu0 %v1622, 80
        %v2036 = vpop.permute.xlu0 %2035
        %2037 = vrot.lane.b32.xlu0 %v1720, 80
        %v2038 = vpop.permute.xlu0 %2037
        %2039 = vrot.lane.b32.xlu0 %v1818, 80
        %v2040 = vpop.permute.xlu0 %2039
        %2041 = vrot.lane.b32.xlu0 %v1916, 80
        %v2042 = vpop.permute.xlu0 %2041
        %2051 = vrot.lane.b32.xlu0 %v1619, 96
        %v2052 = vpop.permute.xlu0 %2051
        %2053 = vrot.lane.b32.xlu0 %v1717, 96
        %v2054 = vpop.permute.xlu0 %2053
        %2055 = vrot.lane.b32.xlu0 %v1815, 96
        %v2056 = vpop.permute.xlu0 %2055
        %2057 = vrot.lane.b32.xlu0 %v1913, 96
        %v2058 = vpop.permute.xlu0 %2057
        %2067 = vrot.lane.b32.xlu0 %v1623, 112
        %v2068 = vpop.permute.xlu0 %2067
        %2069 = vrot.lane.b32.xlu0 %v1721, 112
        %v2070 = vpop.permute.xlu0 %2069
        %2071 = vrot.lane.b32.xlu0 %v1819, 112
        %v2072 = vpop.permute.xlu0 %2071
        %2073 = vrot.lane.b32.xlu0 %v1917, 112
        %v2074 = vpop.permute.xlu0 %2073
        %2083 = vrot.lane.b32.xlu0 %v1669, 16
        %v2084 = vpop.permute.xlu0 %2083
        %2085 = vrot.lane.b32.xlu0 %v1767, 16
        %v2086 = vpop.permute.xlu0 %2085
        %2087 = vrot.lane.b32.xlu0 %v1865, 16
        %v2088 = vpop.permute.xlu0 %2087
        %2089 = vrot.lane.b32.xlu0 %v1963, 16
        %v2090 = vpop.permute.xlu0 %2089
        %2099 = vrot.lane.b32.xlu0 %v1653, 32
        %v2100 = vpop.permute.xlu0 %2099
        %2101 = vrot.lane.b32.xlu0 %v1751, 32
        %v2102 = vpop.permute.xlu0 %2101
        %2103 = vrot.lane.b32.xlu0 %v1849, 32
        %v2104 = vpop.permute.xlu0 %2103
        %2105 = vrot.lane.b32.xlu0 %v1947, 32
        %v2106 = vpop.permute.xlu0 %2105
        %2115 = vrot.lane.b32.xlu0 %v1670, 48
        %v2116 = vpop.permute.xlu0 %2115
        %2117 = vrot.lane.b32.xlu0 %v1768, 48
        %v2118 = vpop.permute.xlu0 %2117
        %2119 = vrot.lane.b32.xlu0 %v1866, 48
        %v2120 = vpop.permute.xlu0 %2119
        %2121 = vrot.lane.b32.xlu0 %v1964, 48
        %v2122 = vpop.permute.xlu0 %2121
        %2131 = vrot.lane.b32.xlu0 %v1661, 64
        %v2132 = vpop.permute.xlu0 %2131
        %2133 = vrot.lane.b32.xlu0 %v1759, 64
        %v2134 = vpop.permute.xlu0 %2133
        %2135 = vrot.lane.b32.xlu0 %v1857, 64
        %v2136 = vpop.permute.xlu0 %2135
        %2137 = vrot.lane.b32.xlu0 %v1955, 64
        %v2138 = vpop.permute.xlu0 %2137
        %2147 = vrot.lane.b32.xlu0 %v1671, 80
        %v2148 = vpop.permute.xlu0 %2147
        %2149 = vrot.lane.b32.xlu0 %v1769, 80
        %v2150 = vpop.permute.xlu0 %2149
        %2151 = vrot.lane.b32.xlu0 %v1867, 80
        %v2152 = vpop.permute.xlu0 %2151
        %2153 = vrot.lane.b32.xlu0 %v1965, 80
        %v2154 = vpop.permute.xlu0 %2153
        %2163 = vrot.lane.b32.xlu0 %v1668, 96
        %v2164 = vpop.permute.xlu0 %2163
        %2165 = vrot.lane.b32.xlu0 %v1766, 96
        %v2166 = vpop.permute.xlu0 %2165
        %2167 = vrot.lane.b32.xlu0 %v1864, 96
        %v2168 = vpop.permute.xlu0 %2167
        %2169 = vrot.lane.b32.xlu0 %v1962, 96
        %v2170 = vpop.permute.xlu0 %2169
        %2179 = vrot.lane.b32.xlu0 %v1672, 112
        %v2180 = vpop.permute.xlu0 %2179
        %2181 = vrot.lane.b32.xlu0 %v1770, 112
        %v2182 = vpop.permute.xlu0 %2181
        %2183 = vrot.lane.b32.xlu0 %v1868, 112
        %v2184 = vpop.permute.xlu0 %2183
        %2185 = vrot.lane.b32.xlu0 %v1966, 112
        %v2186 = vpop.permute.xlu0 %2185
        %v2191 = vsel %vm784, %v1597, %v1972
        %v2192 = vsel %vm784, %v1695, %v1974
        %v2193 = vsel %vm784, %v1793, %v1976
        %v2194 = vsel %vm784, %v1891, %v1978
        %v2195 = vsel %vm789, %v2191, %v1988
        %v2196 = vsel %vm789, %v2192, %v1990
        %v2197 = vsel %vm789, %v2193, %v1992
        %v2198 = vsel %vm789, %v2194, %v1994
        %v2199 = vsel %vm794, %v2195, %v2004
        %v2200 = vsel %vm794, %v2196, %v2006
        %v2201 = vsel %vm794, %v2197, %v2008
        %v2202 = vsel %vm794, %v2198, %v2010
        %v2203 = vsel %vm799, %v2199, %v2020
        %v2204 = vsel %vm799, %v2200, %v2022
        %v2205 = vsel %vm799, %v2201, %v2024
        %v2206 = vsel %vm799, %v2202, %v2026
        %v2207 = vsel %vm804, %v2203, %v2036
        %v2208 = vsel %vm804, %v2204, %v2038
        %v2209 = vsel %vm804, %v2205, %v2040
        %v2210 = vsel %vm804, %v2206, %v2042
        %v2211 = vsel %vm809, %v2207, %v2052
        %v2212 = vsel %vm809, %v2208, %v2054
        %v2213 = vsel %vm809, %v2209, %v2056
        %v2214 = vsel %vm809, %v2210, %v2058
        %v2215 = vsel %vm814, %v2211, %v2068
        %v2216 = vsel %vm814, %v2212, %v2070
        %v2217 = vsel %vm814, %v2213, %v2072
        %v2218 = vsel %vm814, %v2214, %v2074
        %v2219 = vsel %vm784, %v1646, %v2084
        %v2220 = vsel %vm784, %v1744, %v2086
        %v2221 = vsel %vm784, %v1842, %v2088
        %v2222 = vsel %vm784, %v1940, %v2090
        %v2223 = vsel %vm789, %v2219, %v2100
        %v2224 = vsel %vm789, %v2220, %v2102
        %v2225 = vsel %vm789, %v2221, %v2104
        %v2226 = vsel %vm789, %v2222, %v2106
        %v2227 = vsel %vm794, %v2223, %v2116
        %v2228 = vsel %vm794, %v2224, %v2118
        %v2229 = vsel %vm794, %v2225, %v2120
        %v2230 = vsel %vm794, %v2226, %v2122
        %v2231 = vsel %vm799, %v2227, %v2132
        %v2232 = vsel %vm799, %v2228, %v2134
        %v2233 = vsel %vm799, %v2229, %v2136
        %v2234 = vsel %vm799, %v2230, %v2138
        %v2235 = vsel %vm804, %v2231, %v2148
        %v2236 = vsel %vm804, %v2232, %v2150
        %v2237 = vsel %vm804, %v2233, %v2152
        %v2238 = vsel %vm804, %v2234, %v2154
        %v2239 = vsel %vm809, %v2235, %v2164
        %v2240 = vsel %vm809, %v2236, %v2166
        %v2241 = vsel %vm809, %v2237, %v2168
        %v2242 = vsel %vm809, %v2238, %v2170
        %v2243 = vsel %vm814, %v2239, %v2180
        %v2244 = vsel %vm814, %v2240, %v2182
        %v2245 = vsel %vm814, %v2241, %v2184
        %v2246 = vsel %vm814, %v2242, %v2186
        %vm2251 = vcmask 1046528
        %v2252 = vrot.slane %v156, 1
        %v2253 = vrot.slane %v157, 1
        %v2254 = vsel %vm2251, %v2252, %v2253
        %v2255 = vrot.slane %v158, 1
        %v2256 = vsel %vm2251, %v2253, %v2255
        %v2257 = vrot.slane %v159, 1
        %v2258 = vrot.slane %v160, 1
        %v2259 = vsel %vm2251, %v2257, %v2258
        %v2260 = vrot.slane %v161, 1
        %v2261 = vsel %vm2251, %v2258, %v2260
        %v2262 = vrot.slane %v162, 1
        %v2263 = vrot.slane %v163, 1
        %v2264 = vsel %vm2251, %v2262, %v2263
        %v2265 = vrot.slane %v164, 1
        %v2266 = vsel %vm2251, %v2263, %v2265
        %v2267 = vrot.slane %v165, 1
        %v2268 = vrot.slane %v166, 1
        %v2269 = vsel %vm2251, %v2267, %v2268
        %v2270 = vrot.slane %v167, 1
        %v2271 = vsel %vm2251, %v2268, %v2270
        %v2280 = vcombine.high %v2254, 0.0
        %v2282 = vunpack.c.l.s4 1983009808
        %v2283 = vunpack.c.0.s8 %v2282
        %v2284 = vlaneseq
        %v2285 = vshrl.u32 %v2284, 7
        %v2286 = vsub.s32 %v2283, %v2285
        %v2287 = vrot.slane %v2254, %v2286
        %v2289 = vunpack.c.l.s4 1983009808
        %v2290 = vunpack.c.0.s8 %v2289
        %v2291 = vlaneseq
        %v2292 = vshrl.u32 %v2291, 7
        %v2293 = vsub.s32 %v2290, %v2292
        %v2294 = vrot.slane %v2280, %v2293
        %v2295 = vcombine.high %v2287, 0.0
        %v2297 = vunpack.c.l.s4 1934713408
        %v2298 = vunpack.c.0.s8 %v2297
        %v2299 = vlaneseq
        %v2300 = vshrl.u32 %v2299, 7
        %v2301 = vsub.s32 %v2298, %v2300
        %v2302 = vrot.slane %v2287, %v2301
        %v2304 = vunpack.c.l.s4 1934713408
        %v2305 = vunpack.c.0.s8 %v2304
        %v2306 = vlaneseq
        %v2307 = vshrl.u32 %v2306, 7
        %v2308 = vsub.s32 %v2305, %v2307
        %v2309 = vrot.slane %v2295, %v2308
        %v2310 = vcombine.high %v2294, 0.0
        %v2312 = vunpack.c.l.s4 1934713408
        %v2313 = vunpack.c.0.s8 %v2312
        %v2314 = vlaneseq
        %v2315 = vshrl.u32 %v2314, 7
        %v2316 = vsub.s32 %v2313, %v2315
        %v2317 = vrot.slane %v2294, %v2316
        %v2319 = vunpack.c.l.s4 1934713408
        %v2320 = vunpack.c.0.s8 %v2319
        %v2321 = vlaneseq
        %v2322 = vshrl.u32 %v2321, 7
        %v2323 = vsub.s32 %v2320, %v2322
        %v2324 = vrot.slane %v2310, %v2323
        %v2325 = vcombine.high %v2302, 0.0
        %v2326 = vcombine.high %v2309, 0.0
        %v2327 = vcombine.high %v2317, 0.0
        %v2328 = vcombine.high %v2324, 0.0
        %v2329 = vcombine.high %v2256, 0.0
        %v2331 = vunpack.c.l.s4 1983009808
        %v2332 = vunpack.c.0.s8 %v2331
        %v2333 = vlaneseq
        %v2334 = vshrl.u32 %v2333, 7
        %v2335 = vsub.s32 %v2332, %v2334
        %v2336 = vrot.slane %v2256, %v2335
        %v2338 = vunpack.c.l.s4 1983009808
        %v2339 = vunpack.c.0.s8 %v2338
        %v2340 = vlaneseq
        %v2341 = vshrl.u32 %v2340, 7
        %v2342 = vsub.s32 %v2339, %v2341
        %v2343 = vrot.slane %v2329, %v2342
        %v2344 = vcombine.high %v2336, 0.0
        %v2346 = vunpack.c.l.s4 1934713408
        %v2347 = vunpack.c.0.s8 %v2346
        %v2348 = vlaneseq
        %v2349 = vshrl.u32 %v2348, 7
        %v2350 = vsub.s32 %v2347, %v2349
        %v2351 = vrot.slane %v2336, %v2350
        %v2353 = vunpack.c.l.s4 1934713408
        %v2354 = vunpack.c.0.s8 %v2353
        %v2355 = vlaneseq
        %v2356 = vshrl.u32 %v2355, 7
        %v2357 = vsub.s32 %v2354, %v2356
        %v2358 = vrot.slane %v2344, %v2357
        %v2359 = vcombine.high %v2343, 0.0
        %v2361 = vunpack.c.l.s4 1934713408
        %v2362 = vunpack.c.0.s8 %v2361
        %v2363 = vlaneseq
        %v2364 = vshrl.u32 %v2363, 7
        %v2365 = vsub.s32 %v2362, %v2364
        %v2366 = vrot.slane %v2343, %v2365
        %v2368 = vunpack.c.l.s4 1934713408
        %v2369 = vunpack.c.0.s8 %v2368
        %v2370 = vlaneseq
        %v2371 = vshrl.u32 %v2370, 7
        %v2372 = vsub.s32 %v2369, %v2371
        %v2373 = vrot.slane %v2359, %v2372
        %v2374 = vcombine.high %v2351, 0.0
        %v2375 = vcombine.high %v2358, 0.0
        %v2376 = vcombine.high %v2366, 0.0
        %v2377 = vcombine.high %v2373, 0.0
        %v2378 = vcombine.high %v2259, 0.0
        %v2380 = vunpack.c.l.s4 1983009808
        %v2381 = vunpack.c.0.s8 %v2380
        %v2382 = vlaneseq
        %v2383 = vshrl.u32 %v2382, 7
        %v2384 = vsub.s32 %v2381, %v2383
        %v2385 = vrot.slane %v2259, %v2384
        %v2387 = vunpack.c.l.s4 1983009808
        %v2388 = vunpack.c.0.s8 %v2387
        %v2389 = vlaneseq
        %v2390 = vshrl.u32 %v2389, 7
        %v2391 = vsub.s32 %v2388, %v2390
        %v2392 = vrot.slane %v2378, %v2391
        %v2393 = vcombine.high %v2385, 0.0
        %v2395 = vunpack.c.l.s4 1934713408
        %v2396 = vunpack.c.0.s8 %v2395
        %v2397 = vlaneseq
        %v2398 = vshrl.u32 %v2397, 7
        %v2399 = vsub.s32 %v2396, %v2398
        %v2400 = vrot.slane %v2385, %v2399
        %v2402 = vunpack.c.l.s4 1934713408
        %v2403 = vunpack.c.0.s8 %v2402
        %v2404 = vlaneseq
        %v2405 = vshrl.u32 %v2404, 7
        %v2406 = vsub.s32 %v2403, %v2405
        %v2407 = vrot.slane %v2393, %v2406
        %v2408 = vcombine.high %v2392, 0.0
        %v2410 = vunpack.c.l.s4 1934713408
        %v2411 = vunpack.c.0.s8 %v2410
        %v2412 = vlaneseq
        %v2413 = vshrl.u32 %v2412, 7
        %v2414 = vsub.s32 %v2411, %v2413
        %v2415 = vrot.slane %v2392, %v2414
        %v2417 = vunpack.c.l.s4 1934713408
        %v2418 = vunpack.c.0.s8 %v2417
        %v2419 = vlaneseq
        %v2420 = vshrl.u32 %v2419, 7
        %v2421 = vsub.s32 %v2418, %v2420
        %v2422 = vrot.slane %v2408, %v2421
        %v2423 = vcombine.high %v2400, 0.0
        %v2424 = vcombine.high %v2407, 0.0
        %v2425 = vcombine.high %v2415, 0.0
        %v2426 = vcombine.high %v2422, 0.0
        %v2427 = vcombine.high %v2261, 0.0
        %v2429 = vunpack.c.l.s4 1983009808
        %v2430 = vunpack.c.0.s8 %v2429
        %v2431 = vlaneseq
        %v2432 = vshrl.u32 %v2431, 7
        %v2433 = vsub.s32 %v2430, %v2432
        %v2434 = vrot.slane %v2261, %v2433
        %v2436 = vunpack.c.l.s4 1983009808
        %v2437 = vunpack.c.0.s8 %v2436
        %v2438 = vlaneseq
        %v2439 = vshrl.u32 %v2438, 7
        %v2440 = vsub.s32 %v2437, %v2439
        %v2441 = vrot.slane %v2427, %v2440
        %v2442 = vcombine.high %v2434, 0.0
        %v2444 = vunpack.c.l.s4 1934713408
        %v2445 = vunpack.c.0.s8 %v2444
        %v2446 = vlaneseq
        %v2447 = vshrl.u32 %v2446, 7
        %v2448 = vsub.s32 %v2445, %v2447
        %v2449 = vrot.slane %v2434, %v2448
        %v2451 = vunpack.c.l.s4 1934713408
        %v2452 = vunpack.c.0.s8 %v2451
        %v2453 = vlaneseq
        %v2454 = vshrl.u32 %v2453, 7
        %v2455 = vsub.s32 %v2452, %v2454
        %v2456 = vrot.slane %v2442, %v2455
        %v2457 = vcombine.high %v2441, 0.0
        %v2459 = vunpack.c.l.s4 1934713408
        %v2460 = vunpack.c.0.s8 %v2459
        %v2461 = vlaneseq
        %v2462 = vshrl.u32 %v2461, 7
        %v2463 = vsub.s32 %v2460, %v2462
        %v2464 = vrot.slane %v2441, %v2463
        %v2466 = vunpack.c.l.s4 1934713408
        %v2467 = vunpack.c.0.s8 %v2466
        %v2468 = vlaneseq
        %v2469 = vshrl.u32 %v2468, 7
        %v2470 = vsub.s32 %v2467, %v2469
        %v2471 = vrot.slane %v2457, %v2470
        %v2472 = vcombine.high %v2449, 0.0
        %v2473 = vcombine.high %v2456, 0.0
        %v2474 = vcombine.high %v2464, 0.0
        %v2475 = vcombine.high %v2471, 0.0
        %v2476 = vcombine.high %v2264, 0.0
        %v2478 = vunpack.c.l.s4 1983009808
        %v2479 = vunpack.c.0.s8 %v2478
        %v2480 = vlaneseq
        %v2481 = vshrl.u32 %v2480, 7
        %v2482 = vsub.s32 %v2479, %v2481
        %v2483 = vrot.slane %v2264, %v2482
        %v2485 = vunpack.c.l.s4 1983009808
        %v2486 = vunpack.c.0.s8 %v2485
        %v2487 = vlaneseq
        %v2488 = vshrl.u32 %v2487, 7
        %v2489 = vsub.s32 %v2486, %v2488
        %v2490 = vrot.slane %v2476, %v2489
        %v2491 = vcombine.high %v2483, 0.0
        %v2493 = vunpack.c.l.s4 1934713408
        %v2494 = vunpack.c.0.s8 %v2493
        %v2495 = vlaneseq
        %v2496 = vshrl.u32 %v2495, 7
        %v2497 = vsub.s32 %v2494, %v2496
        %v2498 = vrot.slane %v2483, %v2497
        %v2500 = vunpack.c.l.s4 1934713408
        %v2501 = vunpack.c.0.s8 %v2500
        %v2502 = vlaneseq
        %v2503 = vshrl.u32 %v2502, 7
        %v2504 = vsub.s32 %v2501, %v2503
        %v2505 = vrot.slane %v2491, %v2504
        %v2506 = vcombine.high %v2490, 0.0
        %v2508 = vunpack.c.l.s4 1934713408
        %v2509 = vunpack.c.0.s8 %v2508
        %v2510 = vlaneseq
        %v2511 = vshrl.u32 %v2510, 7
        %v2512 = vsub.s32 %v2509, %v2511
        %v2513 = vrot.slane %v2490, %v2512
        %v2515 = vunpack.c.l.s4 1934713408
        %v2516 = vunpack.c.0.s8 %v2515
        %v2517 = vlaneseq
        %v2518 = vshrl.u32 %v2517, 7
        %v2519 = vsub.s32 %v2516, %v2518
        %v2520 = vrot.slane %v2506, %v2519
        %v2521 = vcombine.high %v2498, 0.0
        %v2522 = vcombine.high %v2505, 0.0
        %v2523 = vcombine.high %v2513, 0.0
        %v2524 = vcombine.high %v2520, 0.0
        %v2525 = vcombine.high %v2266, 0.0
        %v2527 = vunpack.c.l.s4 1983009808
        %v2528 = vunpack.c.0.s8 %v2527
        %v2529 = vlaneseq
        %v2530 = vshrl.u32 %v2529, 7
        %v2531 = vsub.s32 %v2528, %v2530
        %v2532 = vrot.slane %v2266, %v2531
        %v2534 = vunpack.c.l.s4 1983009808
        %v2535 = vunpack.c.0.s8 %v2534
        %v2536 = vlaneseq
        %v2537 = vshrl.u32 %v2536, 7
        %v2538 = vsub.s32 %v2535, %v2537
        %v2539 = vrot.slane %v2525, %v2538
        %v2540 = vcombine.high %v2532, 0.0
        %v2542 = vunpack.c.l.s4 1934713408
        %v2543 = vunpack.c.0.s8 %v2542
        %v2544 = vlaneseq
        %v2545 = vshrl.u32 %v2544, 7
        %v2546 = vsub.s32 %v2543, %v2545
        %v2547 = vrot.slane %v2532, %v2546
        %v2549 = vunpack.c.l.s4 1934713408
        %v2550 = vunpack.c.0.s8 %v2549
        %v2551 = vlaneseq
        %v2552 = vshrl.u32 %v2551, 7
        %v2553 = vsub.s32 %v2550, %v2552
        %v2554 = vrot.slane %v2540, %v2553
        %v2555 = vcombine.high %v2539, 0.0
        %v2557 = vunpack.c.l.s4 1934713408
        %v2558 = vunpack.c.0.s8 %v2557
        %v2559 = vlaneseq
        %v2560 = vshrl.u32 %v2559, 7
        %v2561 = vsub.s32 %v2558, %v2560
        %v2562 = vrot.slane %v2539, %v2561
        %v2564 = vunpack.c.l.s4 1934713408
        %v2565 = vunpack.c.0.s8 %v2564
        %v2566 = vlaneseq
        %v2567 = vshrl.u32 %v2566, 7
        %v2568 = vsub.s32 %v2565, %v2567
        %v2569 = vrot.slane %v2555, %v2568
        %v2570 = vcombine.high %v2547, 0.0
        %v2571 = vcombine.high %v2554, 0.0
        %v2572 = vcombine.high %v2562, 0.0
        %v2573 = vcombine.high %v2569, 0.0
        %v2574 = vcombine.high %v2269, 0.0
        %v2576 = vunpack.c.l.s4 1983009808
        %v2577 = vunpack.c.0.s8 %v2576
        %v2578 = vlaneseq
        %v2579 = vshrl.u32 %v2578, 7
        %v2580 = vsub.s32 %v2577, %v2579
        %v2581 = vrot.slane %v2269, %v2580
        %v2583 = vunpack.c.l.s4 1983009808
        %v2584 = vunpack.c.0.s8 %v2583
        %v2585 = vlaneseq
        %v2586 = vshrl.u32 %v2585, 7
        %v2587 = vsub.s32 %v2584, %v2586
        %v2588 = vrot.slane %v2574, %v2587
        %v2589 = vcombine.high %v2581, 0.0
        %v2591 = vunpack.c.l.s4 1934713408
        %v2592 = vunpack.c.0.s8 %v2591
        %v2593 = vlaneseq
        %v2594 = vshrl.u32 %v2593, 7
        %v2595 = vsub.s32 %v2592, %v2594
        %v2596 = vrot.slane %v2581, %v2595
        %v2598 = vunpack.c.l.s4 1934713408
        %v2599 = vunpack.c.0.s8 %v2598
        %v2600 = vlaneseq
        %v2601 = vshrl.u32 %v2600, 7
        %v2602 = vsub.s32 %v2599, %v2601
        %v2603 = vrot.slane %v2589, %v2602
        %v2604 = vcombine.high %v2588, 0.0
        %v2606 = vunpack.c.l.s4 1934713408
        %v2607 = vunpack.c.0.s8 %v2606
        %v2608 = vlaneseq
        %v2609 = vshrl.u32 %v2608, 7
        %v2610 = vsub.s32 %v2607, %v2609
        %v2611 = vrot.slane %v2588, %v2610
        %v2613 = vunpack.c.l.s4 1934713408
        %v2614 = vunpack.c.0.s8 %v2613
        %v2615 = vlaneseq
        %v2616 = vshrl.u32 %v2615, 7
        %v2617 = vsub.s32 %v2614, %v2616
        %v2618 = vrot.slane %v2604, %v2617
        %v2619 = vcombine.high %v2596, 0.0
        %v2620 = vcombine.high %v2603, 0.0
        %v2621 = vcombine.high %v2611, 0.0
        %v2622 = vcombine.high %v2618, 0.0
        %v2623 = vcombine.high %v2271, 0.0
        %v2625 = vunpack.c.l.s4 1983009808
        %v2626 = vunpack.c.0.s8 %v2625
        %v2627 = vlaneseq
        %v2628 = vshrl.u32 %v2627, 7
        %v2629 = vsub.s32 %v2626, %v2628
        %v2630 = vrot.slane %v2271, %v2629
        %v2632 = vunpack.c.l.s4 1983009808
        %v2633 = vunpack.c.0.s8 %v2632
        %v2634 = vlaneseq
        %v2635 = vshrl.u32 %v2634, 7
        %v2636 = vsub.s32 %v2633, %v2635
        %v2637 = vrot.slane %v2623, %v2636
        %v2638 = vcombine.high %v2630, 0.0
        %v2640 = vunpack.c.l.s4 1934713408
        %v2641 = vunpack.c.0.s8 %v2640
        %v2642 = vlaneseq
        %v2643 = vshrl.u32 %v2642, 7
        %v2644 = vsub.s32 %v2641, %v2643
        %v2645 = vrot.slane %v2630, %v2644
        %v2647 = vunpack.c.l.s4 1934713408
        %v2648 = vunpack.c.0.s8 %v2647
        %v2649 = vlaneseq
        %v2650 = vshrl.u32 %v2649, 7
        %v2651 = vsub.s32 %v2648, %v2650
        %v2652 = vrot.slane %v2638, %v2651
        %v2653 = vcombine.high %v2637, 0.0
        %v2655 = vunpack.c.l.s4 1934713408
        %v2656 = vunpack.c.0.s8 %v2655
        %v2657 = vlaneseq
        %v2658 = vshrl.u32 %v2657, 7
        %v2659 = vsub.s32 %v2656, %v2658
        %v2660 = vrot.slane %v2637, %v2659
        %v2662 = vunpack.c.l.s4 1934713408
        %v2663 = vunpack.c.0.s8 %v2662
        %v2664 = vlaneseq
        %v2665 = vshrl.u32 %v2664, 7
        %v2666 = vsub.s32 %v2663, %v2665
        %v2667 = vrot.slane %v2653, %v2666
        %v2668 = vcombine.high %v2645, 0.0
        %v2669 = vcombine.high %v2652, 0.0
        %v2670 = vcombine.high %v2660, 0.0
        %v2671 = vcombine.high %v2667, 0.0
        %2676 = vrot.lane.b32.xlu0 %v2325, 16
        %v2677 = vpop.permute.xlu0 %2676
        %2678 = vrot.lane.b32.xlu0 %v2423, 16
        %v2679 = vpop.permute.xlu0 %2678
        %2680 = vrot.lane.b32.xlu0 %v2521, 16
        %v2681 = vpop.permute.xlu0 %2680
        %2682 = vrot.lane.b32.xlu0 %v2619, 16
        %v2683 = vpop.permute.xlu0 %2682
        %2692 = vrot.lane.b32.xlu0 %v2309, 32
        %v2693 = vpop.permute.xlu0 %2692
        %2694 = vrot.lane.b32.xlu0 %v2407, 32
        %v2695 = vpop.permute.xlu0 %2694
        %2696 = vrot.lane.b32.xlu0 %v2505, 32
        %v2697 = vpop.permute.xlu0 %2696
        %2698 = vrot.lane.b32.xlu0 %v2603, 32
        %v2699 = vpop.permute.xlu0 %2698
        %2708 = vrot.lane.b32.xlu0 %v2326, 48
        %v2709 = vpop.permute.xlu0 %2708
        %2710 = vrot.lane.b32.xlu0 %v2424, 48
        %v2711 = vpop.permute.xlu0 %2710
        %2712 = vrot.lane.b32.xlu0 %v2522, 48
        %v2713 = vpop.permute.xlu0 %2712
        %2714 = vrot.lane.b32.xlu0 %v2620, 48
        %v2715 = vpop.permute.xlu0 %2714
        %2724 = vrot.lane.b32.xlu0 %v2317, 64
        %v2725 = vpop.permute.xlu0 %2724
        %2726 = vrot.lane.b32.xlu0 %v2415, 64
        %v2727 = vpop.permute.xlu0 %2726
        %2728 = vrot.lane.b32.xlu0 %v2513, 64
        %v2729 = vpop.permute.xlu0 %2728
        %2730 = vrot.lane.b32.xlu0 %v2611, 64
        %v2731 = vpop.permute.xlu0 %2730
        %2740 = vrot.lane.b32.xlu0 %v2327, 80
        %v2741 = vpop.permute.xlu0 %2740
        %2742 = vrot.lane.b32.xlu0 %v2425, 80
        %v2743 = vpop.permute.xlu0 %2742
        %2744 = vrot.lane.b32.xlu0 %v2523, 80
        %v2745 = vpop.permute.xlu0 %2744
        %2746 = vrot.lane.b32.xlu0 %v2621, 80
        %v2747 = vpop.permute.xlu0 %2746
        %2756 = vrot.lane.b32.xlu0 %v2324, 96
        %v2757 = vpop.permute.xlu0 %2756
        %2758 = vrot.lane.b32.xlu0 %v2422, 96
        %v2759 = vpop.permute.xlu0 %2758
        %2760 = vrot.lane.b32.xlu0 %v2520, 96
        %v2761 = vpop.permute.xlu0 %2760
        %2762 = vrot.lane.b32.xlu0 %v2618, 96
        %v2763 = vpop.permute.xlu0 %2762
        %2772 = vrot.lane.b32.xlu0 %v2328, 112
        %v2773 = vpop.permute.xlu0 %2772
        %2774 = vrot.lane.b32.xlu0 %v2426, 112
        %v2775 = vpop.permute.xlu0 %2774
        %2776 = vrot.lane.b32.xlu0 %v2524, 112
        %v2777 = vpop.permute.xlu0 %2776
        %2778 = vrot.lane.b32.xlu0 %v2622, 112
        %v2779 = vpop.permute.xlu0 %2778
        %2788 = vrot.lane.b32.xlu0 %v2374, 16
        %v2789 = vpop.permute.xlu0 %2788
        %2790 = vrot.lane.b32.xlu0 %v2472, 16
        %v2791 = vpop.permute.xlu0 %2790
        %2792 = vrot.lane.b32.xlu0 %v2570, 16
        %v2793 = vpop.permute.xlu0 %2792
        %2794 = vrot.lane.b32.xlu0 %v2668, 16
        %v2795 = vpop.permute.xlu0 %2794
        %2804 = vrot.lane.b32.xlu0 %v2358, 32
        %v2805 = vpop.permute.xlu0 %2804
        %2806 = vrot.lane.b32.xlu0 %v2456, 32
        %v2807 = vpop.permute.xlu0 %2806
        %2808 = vrot.lane.b32.xlu0 %v2554, 32
        %v2809 = vpop.permute.xlu0 %2808
        %2810 = vrot.lane.b32.xlu0 %v2652, 32
        %v2811 = vpop.permute.xlu0 %2810
        %2820 = vrot.lane.b32.xlu0 %v2375, 48
        %v2821 = vpop.permute.xlu0 %2820
        %2822 = vrot.lane.b32.xlu0 %v2473, 48
        %v2823 = vpop.permute.xlu0 %2822
        %2824 = vrot.lane.b32.xlu0 %v2571, 48
        %v2825 = vpop.permute.xlu0 %2824
        %2826 = vrot.lane.b32.xlu0 %v2669, 48
        %v2827 = vpop.permute.xlu0 %2826
        %2836 = vrot.lane.b32.xlu0 %v2366, 64
        %v2837 = vpop.permute.xlu0 %2836
        %2838 = vrot.lane.b32.xlu0 %v2464, 64
        %v2839 = vpop.permute.xlu0 %2838
        %2840 = vrot.lane.b32.xlu0 %v2562, 64
        %v2841 = vpop.permute.xlu0 %2840
        %2842 = vrot.lane.b32.xlu0 %v2660, 64
        %v2843 = vpop.permute.xlu0 %2842
        %2852 = vrot.lane.b32.xlu0 %v2376, 80
        %v2853 = vpop.permute.xlu0 %2852
        %2854 = vrot.lane.b32.xlu0 %v2474, 80
        %v2855 = vpop.permute.xlu0 %2854
        %2856 = vrot.lane.b32.xlu0 %v2572, 80
        %v2857 = vpop.permute.xlu0 %2856
        %2858 = vrot.lane.b32.xlu0 %v2670, 80
        %v2859 = vpop.permute.xlu0 %2858
        %2868 = vrot.lane.b32.xlu0 %v2373, 96
        %v2869 = vpop.permute.xlu0 %2868
        %2870 = vrot.lane.b32.xlu0 %v2471, 96
        %v2871 = vpop.permute.xlu0 %2870
        %2872 = vrot.lane.b32.xlu0 %v2569, 96
        %v2873 = vpop.permute.xlu0 %2872
        %2874 = vrot.lane.b32.xlu0 %v2667, 96
        %v2875 = vpop.permute.xlu0 %2874
        %2884 = vrot.lane.b32.xlu0 %v2377, 112
        %v2885 = vpop.permute.xlu0 %2884
        %2886 = vrot.lane.b32.xlu0 %v2475, 112
        %v2887 = vpop.permute.xlu0 %2886
        %2888 = vrot.lane.b32.xlu0 %v2573, 112
        %v2889 = vpop.permute.xlu0 %2888
        %2890 = vrot.lane.b32.xlu0 %v2671, 112
        %v2891 = vpop.permute.xlu0 %2890
        %v2896 = vsel %vm784, %v2302, %v2677
        %v2897 = vsel %vm784, %v2400, %v2679
        %v2898 = vsel %vm784, %v2498, %v2681
        %v2899 = vsel %vm784, %v2596, %v2683
        %v2900 = vsel %vm789, %v2896, %v2693
        %v2901 = vsel %vm789, %v2897, %v2695
        %v2902 = vsel %vm789, %v2898, %v2697
        %v2903 = vsel %vm789, %v2899, %v2699
        %v2904 = vsel %vm794, %v2900, %v2709
        %v2905 = vsel %vm794, %v2901, %v2711
        %v2906 = vsel %vm794, %v2902, %v2713
        %v2907 = vsel %vm794, %v2903, %v2715
        %v2908 = vsel %vm799, %v2904, %v2725
        %v2909 = vsel %vm799, %v2905, %v2727
        %v2910 = vsel %vm799, %v2906, %v2729
        %v2911 = vsel %vm799, %v2907, %v2731
        %v2912 = vsel %vm804, %v2908, %v2741
        %v2913 = vsel %vm804, %v2909, %v2743
        %v2914 = vsel %vm804, %v2910, %v2745
        %v2915 = vsel %vm804, %v2911, %v2747
        %v2916 = vsel %vm809, %v2912, %v2757
        %v2917 = vsel %vm809, %v2913, %v2759
        %v2918 = vsel %vm809, %v2914, %v2761
        %v2919 = vsel %vm809, %v2915, %v2763
        %v2920 = vsel %vm814, %v2916, %v2773
        %v2921 = vsel %vm814, %v2917, %v2775
        %v2922 = vsel %vm814, %v2918, %v2777
        %v2923 = vsel %vm814, %v2919, %v2779
        %v2924 = vsel %vm784, %v2351, %v2789
        %v2925 = vsel %vm784, %v2449, %v2791
        %v2926 = vsel %vm784, %v2547, %v2793
        %v2927 = vsel %vm784, %v2645, %v2795
        %v2928 = vsel %vm789, %v2924, %v2805
        %v2929 = vsel %vm789, %v2925, %v2807
        %v2930 = vsel %vm789, %v2926, %v2809
        %v2931 = vsel %vm789, %v2927, %v2811
        %v2932 = vsel %vm794, %v2928, %v2821
        %v2933 = vsel %vm794, %v2929, %v2823
        %v2934 = vsel %vm794, %v2930, %v2825
        %v2935 = vsel %vm794, %v2931, %v2827
        %v2936 = vsel %vm799, %v2932, %v2837
        %v2937 = vsel %vm799, %v2933, %v2839
        %v2938 = vsel %vm799, %v2934, %v2841
        %v2939 = vsel %vm799, %v2935, %v2843
        %v2940 = vsel %vm804, %v2936, %v2853
        %v2941 = vsel %vm804, %v2937, %v2855
        %v2942 = vsel %vm804, %v2938, %v2857
        %v2943 = vsel %vm804, %v2939, %v2859
        %v2944 = vsel %vm809, %v2940, %v2869
        %v2945 = vsel %vm809, %v2941, %v2871
        %v2946 = vsel %vm809, %v2942, %v2873
        %v2947 = vsel %vm809, %v2943, %v2875
        %v2948 = vsel %vm814, %v2944, %v2885
        %v2949 = vsel %vm814, %v2945, %v2887
        %v2950 = vsel %vm814, %v2946, %v2889
        %v2951 = vsel %vm814, %v2947, %v2891
        %2952 = vrot.lane.b32.xlu0 %v2254, 127
        %v2953 = vpop.permute.xlu0 %2952
        %2954 = vrot.lane.b32.xlu0 %v2256, 127
        %v2955 = vpop.permute.xlu0 %2954
        %2956 = vrot.lane.b32.xlu0 %v2259, 127
        %v2957 = vpop.permute.xlu0 %2956
        %2958 = vrot.lane.b32.xlu0 %v2261, 127
        %v2959 = vpop.permute.xlu0 %2958
        %2960 = vrot.lane.b32.xlu0 %v2264, 127
        %v2961 = vpop.permute.xlu0 %2960
        %2962 = vrot.lane.b32.xlu0 %v2266, 127
        %v2963 = vpop.permute.xlu0 %2962
        %2964 = vrot.lane.b32.xlu0 %v2269, 127
        %v2965 = vpop.permute.xlu0 %2964
        %2966 = vrot.lane.b32.xlu0 %v2271, 127
        %v2967 = vpop.permute.xlu0 %2966
        %v2976 = vcombine.high %v2953, 0.0
        %v2978 = vunpack.c.l.s4 1983009808
        %v2979 = vunpack.c.0.s8 %v2978
        %v2980 = vlaneseq
        %v2981 = vshrl.u32 %v2980, 7
        %v2982 = vsub.s32 %v2979, %v2981
        %v2983 = vrot.slane %v2953, %v2982
        %v2985 = vunpack.c.l.s4 1983009808
        %v2986 = vunpack.c.0.s8 %v2985
        %v2987 = vlaneseq
        %v2988 = vshrl.u32 %v2987, 7
        %v2989 = vsub.s32 %v2986, %v2988
        %v2990 = vrot.slane %v2976, %v2989
        %v2991 = vcombine.high %v2983, 0.0
        %v2993 = vunpack.c.l.s4 1934713408
        %v2994 = vunpack.c.0.s8 %v2993
        %v2995 = vlaneseq
        %v2996 = vshrl.u32 %v2995, 7
        %v2997 = vsub.s32 %v2994, %v2996
        %v2998 = vrot.slane %v2983, %v2997
        %v3000 = vunpack.c.l.s4 1934713408
        %v3001 = vunpack.c.0.s8 %v3000
        %v3002 = vlaneseq
        %v3003 = vshrl.u32 %v3002, 7
        %v3004 = vsub.s32 %v3001, %v3003
        %v3005 = vrot.slane %v2991, %v3004
        %v3006 = vcombine.high %v2990, 0.0
        %v3008 = vunpack.c.l.s4 1934713408
        %v3009 = vunpack.c.0.s8 %v3008
        %v3010 = vlaneseq
        %v3011 = vshrl.u32 %v3010, 7
        %v3012 = vsub.s32 %v3009, %v3011
        %v3013 = vrot.slane %v2990, %v3012
        %v3015 = vunpack.c.l.s4 1934713408
        %v3016 = vunpack.c.0.s8 %v3015
        %v3017 = vlaneseq
        %v3018 = vshrl.u32 %v3017, 7
        %v3019 = vsub.s32 %v3016, %v3018
        %v3020 = vrot.slane %v3006, %v3019
        %v3021 = vcombine.high %v2998, 0.0
        %v3022 = vcombine.high %v3005, 0.0
        %v3023 = vcombine.high %v3013, 0.0
        %v3024 = vcombine.high %v3020, 0.0
        %v3025 = vcombine.high %v2955, 0.0
        %v3027 = vunpack.c.l.s4 1983009808
        %v3028 = vunpack.c.0.s8 %v3027
        %v3029 = vlaneseq
        %v3030 = vshrl.u32 %v3029, 7
        %v3031 = vsub.s32 %v3028, %v3030
        %v3032 = vrot.slane %v2955, %v3031
        %v3034 = vunpack.c.l.s4 1983009808
        %v3035 = vunpack.c.0.s8 %v3034
        %v3036 = vlaneseq
        %v3037 = vshrl.u32 %v3036, 7
        %v3038 = vsub.s32 %v3035, %v3037
        %v3039 = vrot.slane %v3025, %v3038
        %v3040 = vcombine.high %v3032, 0.0
        %v3042 = vunpack.c.l.s4 1934713408
        %v3043 = vunpack.c.0.s8 %v3042
        %v3044 = vlaneseq
        %v3045 = vshrl.u32 %v3044, 7
        %v3046 = vsub.s32 %v3043, %v3045
        %v3047 = vrot.slane %v3032, %v3046
        %v3049 = vunpack.c.l.s4 1934713408
        %v3050 = vunpack.c.0.s8 %v3049
        %v3051 = vlaneseq
        %v3052 = vshrl.u32 %v3051, 7
        %v3053 = vsub.s32 %v3050, %v3052
        %v3054 = vrot.slane %v3040, %v3053
        %v3055 = vcombine.high %v3039, 0.0
        %v3057 = vunpack.c.l.s4 1934713408
        %v3058 = vunpack.c.0.s8 %v3057
        %v3059 = vlaneseq
        %v3060 = vshrl.u32 %v3059, 7
        %v3061 = vsub.s32 %v3058, %v3060
        %v3062 = vrot.slane %v3039, %v3061
        %v3064 = vunpack.c.l.s4 1934713408
        %v3065 = vunpack.c.0.s8 %v3064
        %v3066 = vlaneseq
        %v3067 = vshrl.u32 %v3066, 7
        %v3068 = vsub.s32 %v3065, %v3067
        %v3069 = vrot.slane %v3055, %v3068
        %v3070 = vcombine.high %v3047, 0.0
        %v3071 = vcombine.high %v3054, 0.0
        %v3072 = vcombine.high %v3062, 0.0
        %v3073 = vcombine.high %v3069, 0.0
        %v3074 = vcombine.high %v2957, 0.0
        %v3076 = vunpack.c.l.s4 1983009808
        %v3077 = vunpack.c.0.s8 %v3076
        %v3078 = vlaneseq
        %v3079 = vshrl.u32 %v3078, 7
        %v3080 = vsub.s32 %v3077, %v3079
        %v3081 = vrot.slane %v2957, %v3080
        %v3083 = vunpack.c.l.s4 1983009808
        %v3084 = vunpack.c.0.s8 %v3083
        %v3085 = vlaneseq
        %v3086 = vshrl.u32 %v3085, 7
        %v3087 = vsub.s32 %v3084, %v3086
        %v3088 = vrot.slane %v3074, %v3087
        %v3089 = vcombine.high %v3081, 0.0
        %v3091 = vunpack.c.l.s4 1934713408
        %v3092 = vunpack.c.0.s8 %v3091
        %v3093 = vlaneseq
        %v3094 = vshrl.u32 %v3093, 7
        %v3095 = vsub.s32 %v3092, %v3094
        %v3096 = vrot.slane %v3081, %v3095
        %v3098 = vunpack.c.l.s4 1934713408
        %v3099 = vunpack.c.0.s8 %v3098
        %v3100 = vlaneseq
        %v3101 = vshrl.u32 %v3100, 7
        %v3102 = vsub.s32 %v3099, %v3101
        %v3103 = vrot.slane %v3089, %v3102
        %v3104 = vcombine.high %v3088, 0.0
        %v3106 = vunpack.c.l.s4 1934713408
        %v3107 = vunpack.c.0.s8 %v3106
        %v3108 = vlaneseq
        %v3109 = vshrl.u32 %v3108, 7
        %v3110 = vsub.s32 %v3107, %v3109
        %v3111 = vrot.slane %v3088, %v3110
        %v3113 = vunpack.c.l.s4 1934713408
        %v3114 = vunpack.c.0.s8 %v3113
        %v3115 = vlaneseq
        %v3116 = vshrl.u32 %v3115, 7
        %v3117 = vsub.s32 %v3114, %v3116
        %v3118 = vrot.slane %v3104, %v3117
        %v3119 = vcombine.high %v3096, 0.0
        %v3120 = vcombine.high %v3103, 0.0
        %v3121 = vcombine.high %v3111, 0.0
        %v3122 = vcombine.high %v3118, 0.0
        %v3123 = vcombine.high %v2959, 0.0
        %v3125 = vunpack.c.l.s4 1983009808
        %v3126 = vunpack.c.0.s8 %v3125
        %v3127 = vlaneseq
        %v3128 = vshrl.u32 %v3127, 7
        %v3129 = vsub.s32 %v3126, %v3128
        %v3130 = vrot.slane %v2959, %v3129
        %v3132 = vunpack.c.l.s4 1983009808
        %v3133 = vunpack.c.0.s8 %v3132
        %v3134 = vlaneseq
        %v3135 = vshrl.u32 %v3134, 7
        %v3136 = vsub.s32 %v3133, %v3135
        %v3137 = vrot.slane %v3123, %v3136
        %v3138 = vcombine.high %v3130, 0.0
        %v3140 = vunpack.c.l.s4 1934713408
        %v3141 = vunpack.c.0.s8 %v3140
        %v3142 = vlaneseq
        %v3143 = vshrl.u32 %v3142, 7
        %v3144 = vsub.s32 %v3141, %v3143
        %v3145 = vrot.slane %v3130, %v3144
        %v3147 = vunpack.c.l.s4 1934713408
        %v3148 = vunpack.c.0.s8 %v3147
        %v3149 = vlaneseq
        %v3150 = vshrl.u32 %v3149, 7
        %v3151 = vsub.s32 %v3148, %v3150
        %v3152 = vrot.slane %v3138, %v3151
        %v3153 = vcombine.high %v3137, 0.0
        %v3155 = vunpack.c.l.s4 1934713408
        %v3156 = vunpack.c.0.s8 %v3155
        %v3157 = vlaneseq
        %v3158 = vshrl.u32 %v3157, 7
        %v3159 = vsub.s32 %v3156, %v3158
        %v3160 = vrot.slane %v3137, %v3159
        %v3162 = vunpack.c.l.s4 1934713408
        %v3163 = vunpack.c.0.s8 %v3162
        %v3164 = vlaneseq
        %v3165 = vshrl.u32 %v3164, 7
        %v3166 = vsub.s32 %v3163, %v3165
        %v3167 = vrot.slane %v3153, %v3166
        %v3168 = vcombine.high %v3145, 0.0
        %v3169 = vcombine.high %v3152, 0.0
        %v3170 = vcombine.high %v3160, 0.0
        %v3171 = vcombine.high %v3167, 0.0
        %v3172 = vcombine.high %v2961, 0.0
        %v3174 = vunpack.c.l.s4 1983009808
        %v3175 = vunpack.c.0.s8 %v3174
        %v3176 = vlaneseq
        %v3177 = vshrl.u32 %v3176, 7
        %v3178 = vsub.s32 %v3175, %v3177
        %v3179 = vrot.slane %v2961, %v3178
        %v3181 = vunpack.c.l.s4 1983009808
        %v3182 = vunpack.c.0.s8 %v3181
        %v3183 = vlaneseq
        %v3184 = vshrl.u32 %v3183, 7
        %v3185 = vsub.s32 %v3182, %v3184
        %v3186 = vrot.slane %v3172, %v3185
        %v3187 = vcombine.high %v3179, 0.0
        %v3189 = vunpack.c.l.s4 1934713408
        %v3190 = vunpack.c.0.s8 %v3189
        %v3191 = vlaneseq
        %v3192 = vshrl.u32 %v3191, 7
        %v3193 = vsub.s32 %v3190, %v3192
        %v3194 = vrot.slane %v3179, %v3193
        %v3196 = vunpack.c.l.s4 1934713408
        %v3197 = vunpack.c.0.s8 %v3196
        %v3198 = vlaneseq
        %v3199 = vshrl.u32 %v3198, 7
        %v3200 = vsub.s32 %v3197, %v3199
        %v3201 = vrot.slane %v3187, %v3200
        %v3202 = vcombine.high %v3186, 0.0
        %v3204 = vunpack.c.l.s4 1934713408
        %v3205 = vunpack.c.0.s8 %v3204
        %v3206 = vlaneseq
        %v3207 = vshrl.u32 %v3206, 7
        %v3208 = vsub.s32 %v3205, %v3207
        %v3209 = vrot.slane %v3186, %v3208
        %v3211 = vunpack.c.l.s4 1934713408
        %v3212 = vunpack.c.0.s8 %v3211
        %v3213 = vlaneseq
        %v3214 = vshrl.u32 %v3213, 7
        %v3215 = vsub.s32 %v3212, %v3214
        %v3216 = vrot.slane %v3202, %v3215
        %v3217 = vcombine.high %v3194, 0.0
        %v3218 = vcombine.high %v3201, 0.0
        %v3219 = vcombine.high %v3209, 0.0
        %v3220 = vcombine.high %v3216, 0.0
        %v3221 = vcombine.high %v2963, 0.0
        %v3223 = vunpack.c.l.s4 1983009808
        %v3224 = vunpack.c.0.s8 %v3223
        %v3225 = vlaneseq
        %v3226 = vshrl.u32 %v3225, 7
        %v3227 = vsub.s32 %v3224, %v3226
        %v3228 = vrot.slane %v2963, %v3227
        %v3230 = vunpack.c.l.s4 1983009808
        %v3231 = vunpack.c.0.s8 %v3230
        %v3232 = vlaneseq
        %v3233 = vshrl.u32 %v3232, 7
        %v3234 = vsub.s32 %v3231, %v3233
        %v3235 = vrot.slane %v3221, %v3234
        %v3236 = vcombine.high %v3228, 0.0
        %v3238 = vunpack.c.l.s4 1934713408
        %v3239 = vunpack.c.0.s8 %v3238
        %v3240 = vlaneseq
        %v3241 = vshrl.u32 %v3240, 7
        %v3242 = vsub.s32 %v3239, %v3241
        %v3243 = vrot.slane %v3228, %v3242
        %v3245 = vunpack.c.l.s4 1934713408
        %v3246 = vunpack.c.0.s8 %v3245
        %v3247 = vlaneseq
        %v3248 = vshrl.u32 %v3247, 7
        %v3249 = vsub.s32 %v3246, %v3248
        %v3250 = vrot.slane %v3236, %v3249
        %v3251 = vcombine.high %v3235, 0.0
        %v3253 = vunpack.c.l.s4 1934713408
        %v3254 = vunpack.c.0.s8 %v3253
        %v3255 = vlaneseq
        %v3256 = vshrl.u32 %v3255, 7
        %v3257 = vsub.s32 %v3254, %v3256
        %v3258 = vrot.slane %v3235, %v3257
        %v3260 = vunpack.c.l.s4 1934713408
        %v3261 = vunpack.c.0.s8 %v3260
        %v3262 = vlaneseq
        %v3263 = vshrl.u32 %v3262, 7
        %v3264 = vsub.s32 %v3261, %v3263
        %v3265 = vrot.slane %v3251, %v3264
        %v3266 = vcombine.high %v3243, 0.0
        %v3267 = vcombine.high %v3250, 0.0
        %v3268 = vcombine.high %v3258, 0.0
        %v3269 = vcombine.high %v3265, 0.0
        %v3270 = vcombine.high %v2965, 0.0
        %v3272 = vunpack.c.l.s4 1983009808
        %v3273 = vunpack.c.0.s8 %v3272
        %v3274 = vlaneseq
        %v3275 = vshrl.u32 %v3274, 7
        %v3276 = vsub.s32 %v3273, %v3275
        %v3277 = vrot.slane %v2965, %v3276
        %v3279 = vunpack.c.l.s4 1983009808
        %v3280 = vunpack.c.0.s8 %v3279
        %v3281 = vlaneseq
        %v3282 = vshrl.u32 %v3281, 7
        %v3283 = vsub.s32 %v3280, %v3282
        %v3284 = vrot.slane %v3270, %v3283
        %v3285 = vcombine.high %v3277, 0.0
        %v3287 = vunpack.c.l.s4 1934713408
        %v3288 = vunpack.c.0.s8 %v3287
        %v3289 = vlaneseq
        %v3290 = vshrl.u32 %v3289, 7
        %v3291 = vsub.s32 %v3288, %v3290
        %v3292 = vrot.slane %v3277, %v3291
        %v3294 = vunpack.c.l.s4 1934713408
        %v3295 = vunpack.c.0.s8 %v3294
        %v3296 = vlaneseq
        %v3297 = vshrl.u32 %v3296, 7
        %v3298 = vsub.s32 %v3295, %v3297
        %v3299 = vrot.slane %v3285, %v3298
        %v3300 = vcombine.high %v3284, 0.0
        %v3302 = vunpack.c.l.s4 1934713408
        %v3303 = vunpack.c.0.s8 %v3302
        %v3304 = vlaneseq
        %v3305 = vshrl.u32 %v3304, 7
        %v3306 = vsub.s32 %v3303, %v3305
        %v3307 = vrot.slane %v3284, %v3306
        %v3309 = vunpack.c.l.s4 1934713408
        %v3310 = vunpack.c.0.s8 %v3309
        %v3311 = vlaneseq
        %v3312 = vshrl.u32 %v3311, 7
        %v3313 = vsub.s32 %v3310, %v3312
        %v3314 = vrot.slane %v3300, %v3313
        %v3315 = vcombine.high %v3292, 0.0
        %v3316 = vcombine.high %v3299, 0.0
        %v3317 = vcombine.high %v3307, 0.0
        %v3318 = vcombine.high %v3314, 0.0
        %v3319 = vcombine.high %v2967, 0.0
        %v3321 = vunpack.c.l.s4 1983009808
        %v3322 = vunpack.c.0.s8 %v3321
        %v3323 = vlaneseq
        %v3324 = vshrl.u32 %v3323, 7
        %v3325 = vsub.s32 %v3322, %v3324
        %v3326 = vrot.slane %v2967, %v3325
        %v3328 = vunpack.c.l.s4 1983009808
        %v3329 = vunpack.c.0.s8 %v3328
        %v3330 = vlaneseq
        %v3331 = vshrl.u32 %v3330, 7
        %v3332 = vsub.s32 %v3329, %v3331
        %v3333 = vrot.slane %v3319, %v3332
        %v3334 = vcombine.high %v3326, 0.0
        %v3336 = vunpack.c.l.s4 1934713408
        %v3337 = vunpack.c.0.s8 %v3336
        %v3338 = vlaneseq
        %v3339 = vshrl.u32 %v3338, 7
        %v3340 = vsub.s32 %v3337, %v3339
        %v3341 = vrot.slane %v3326, %v3340
        %v3343 = vunpack.c.l.s4 1934713408
        %v3344 = vunpack.c.0.s8 %v3343
        %v3345 = vlaneseq
        %v3346 = vshrl.u32 %v3345, 7
        %v3347 = vsub.s32 %v3344, %v3346
        %v3348 = vrot.slane %v3334, %v3347
        %v3349 = vcombine.high %v3333, 0.0
        %v3351 = vunpack.c.l.s4 1934713408
        %v3352 = vunpack.c.0.s8 %v3351
        %v3353 = vlaneseq
        %v3354 = vshrl.u32 %v3353, 7
        %v3355 = vsub.s32 %v3352, %v3354
        %v3356 = vrot.slane %v3333, %v3355
        %v3358 = vunpack.c.l.s4 1934713408
        %v3359 = vunpack.c.0.s8 %v3358
        %v3360 = vlaneseq
        %v3361 = vshrl.u32 %v3360, 7
        %v3362 = vsub.s32 %v3359, %v3361
        %v3363 = vrot.slane %v3349, %v3362
        %v3364 = vcombine.high %v3341, 0.0
        %v3365 = vcombine.high %v3348, 0.0
        %v3366 = vcombine.high %v3356, 0.0
        %v3367 = vcombine.high %v3363, 0.0
        %3372 = vrot.lane.b32.xlu0 %v3021, 16
        %v3373 = vpop.permute.xlu0 %3372
        %3374 = vrot.lane.b32.xlu0 %v3119, 16
        %v3375 = vpop.permute.xlu0 %3374
        %3376 = vrot.lane.b32.xlu0 %v3217, 16
        %v3377 = vpop.permute.xlu0 %3376
        %3378 = vrot.lane.b32.xlu0 %v3315, 16
        %v3379 = vpop.permute.xlu0 %3378
        %3388 = vrot.lane.b32.xlu0 %v3005, 32
        %v3389 = vpop.permute.xlu0 %3388
        %3390 = vrot.lane.b32.xlu0 %v3103, 32
        %v3391 = vpop.permute.xlu0 %3390
        %3392 = vrot.lane.b32.xlu0 %v3201, 32
        %v3393 = vpop.permute.xlu0 %3392
        %3394 = vrot.lane.b32.xlu0 %v3299, 32
        %v3395 = vpop.permute.xlu0 %3394
        %3404 = vrot.lane.b32.xlu0 %v3022, 48
        %v3405 = vpop.permute.xlu0 %3404
        %3406 = vrot.lane.b32.xlu0 %v3120, 48
        %v3407 = vpop.permute.xlu0 %3406
        %3408 = vrot.lane.b32.xlu0 %v3218, 48
        %v3409 = vpop.permute.xlu0 %3408
        %3410 = vrot.lane.b32.xlu0 %v3316, 48
        %v3411 = vpop.permute.xlu0 %3410
        %3420 = vrot.lane.b32.xlu0 %v3013, 64
        %v3421 = vpop.permute.xlu0 %3420
        %3422 = vrot.lane.b32.xlu0 %v3111, 64
        %v3423 = vpop.permute.xlu0 %3422
        %3424 = vrot.lane.b32.xlu0 %v3209, 64
        %v3425 = vpop.permute.xlu0 %3424
        %3426 = vrot.lane.b32.xlu0 %v3307, 64
        %v3427 = vpop.permute.xlu0 %3426
        %3436 = vrot.lane.b32.xlu0 %v3023, 80
        %v3437 = vpop.permute.xlu0 %3436
        %3438 = vrot.lane.b32.xlu0 %v3121, 80
        %v3439 = vpop.permute.xlu0 %3438
        %3440 = vrot.lane.b32.xlu0 %v3219, 80
        %v3441 = vpop.permute.xlu0 %3440
        %3442 = vrot.lane.b32.xlu0 %v3317, 80
        %v3443 = vpop.permute.xlu0 %3442
        %3452 = vrot.lane.b32.xlu0 %v3020, 96
        %v3453 = vpop.permute.xlu0 %3452
        %3454 = vrot.lane.b32.xlu0 %v3118, 96
        %v3455 = vpop.permute.xlu0 %3454
        %3456 = vrot.lane.b32.xlu0 %v3216, 96
        %v3457 = vpop.permute.xlu0 %3456
        %3458 = vrot.lane.b32.xlu0 %v3314, 96
        %v3459 = vpop.permute.xlu0 %3458
        %3468 = vrot.lane.b32.xlu0 %v3024, 112
        %v3469 = vpop.permute.xlu0 %3468
        %3470 = vrot.lane.b32.xlu0 %v3122, 112
        %v3471 = vpop.permute.xlu0 %3470
        %3472 = vrot.lane.b32.xlu0 %v3220, 112
        %v3473 = vpop.permute.xlu0 %3472
        %3474 = vrot.lane.b32.xlu0 %v3318, 112
        %v3475 = vpop.permute.xlu0 %3474
        %3484 = vrot.lane.b32.xlu0 %v3070, 16
        %v3485 = vpop.permute.xlu0 %3484
        %3486 = vrot.lane.b32.xlu0 %v3168, 16
        %v3487 = vpop.permute.xlu0 %3486
        %3488 = vrot.lane.b32.xlu0 %v3266, 16
        %v3489 = vpop.permute.xlu0 %3488
        %3490 = vrot.lane.b32.xlu0 %v3364, 16
        %v3491 = vpop.permute.xlu0 %3490
        %3500 = vrot.lane.b32.xlu0 %v3054, 32
        %v3501 = vpop.permute.xlu0 %3500
        %3502 = vrot.lane.b32.xlu0 %v3152, 32
        %v3503 = vpop.permute.xlu0 %3502
        %3504 = vrot.lane.b32.xlu0 %v3250, 32
        %v3505 = vpop.permute.xlu0 %3504
        %3506 = vrot.lane.b32.xlu0 %v3348, 32
        %v3507 = vpop.permute.xlu0 %3506
        %3516 = vrot.lane.b32.xlu0 %v3071, 48
        %v3517 = vpop.permute.xlu0 %3516
        %3518 = vrot.lane.b32.xlu0 %v3169, 48
        %v3519 = vpop.permute.xlu0 %3518
        %3520 = vrot.lane.b32.xlu0 %v3267, 48
        %v3521 = vpop.permute.xlu0 %3520
        %3522 = vrot.lane.b32.xlu0 %v3365, 48
        %v3523 = vpop.permute.xlu0 %3522
        %3532 = vrot.lane.b32.xlu0 %v3062, 64
        %v3533 = vpop.permute.xlu0 %3532
        %3534 = vrot.lane.b32.xlu0 %v3160, 64
        %v3535 = vpop.permute.xlu0 %3534
        %3536 = vrot.lane.b32.xlu0 %v3258, 64
        %v3537 = vpop.permute.xlu0 %3536
        %3538 = vrot.lane.b32.xlu0 %v3356, 64
        %v3539 = vpop.permute.xlu0 %3538
        %3548 = vrot.lane.b32.xlu0 %v3072, 80
        %v3549 = vpop.permute.xlu0 %3548
        %3550 = vrot.lane.b32.xlu0 %v3170, 80
        %v3551 = vpop.permute.xlu0 %3550
        %3552 = vrot.lane.b32.xlu0 %v3268, 80
        %v3553 = vpop.permute.xlu0 %3552
        %3554 = vrot.lane.b32.xlu0 %v3366, 80
        %v3555 = vpop.permute.xlu0 %3554
        %3564 = vrot.lane.b32.xlu0 %v3069, 96
        %v3565 = vpop.permute.xlu0 %3564
        %3566 = vrot.lane.b32.xlu0 %v3167, 96
        %v3567 = vpop.permute.xlu0 %3566
        %3568 = vrot.lane.b32.xlu0 %v3265, 96
        %v3569 = vpop.permute.xlu0 %3568
        %3570 = vrot.lane.b32.xlu0 %v3363, 96
        %v3571 = vpop.permute.xlu0 %3570
        %3580 = vrot.lane.b32.xlu0 %v3073, 112
        %v3581 = vpop.permute.xlu0 %3580
        %3582 = vrot.lane.b32.xlu0 %v3171, 112
        %v3583 = vpop.permute.xlu0 %3582
        %3584 = vrot.lane.b32.xlu0 %v3269, 112
        %v3585 = vpop.permute.xlu0 %3584
        %3586 = vrot.lane.b32.xlu0 %v3367, 112
        %v3587 = vpop.permute.xlu0 %3586
        %v3592 = vsel %vm784, %v2998, %v3373
        %v3593 = vsel %vm784, %v3096, %v3375
        %v3594 = vsel %vm784, %v3194, %v3377
        %v3595 = vsel %vm784, %v3292, %v3379
        %v3596 = vsel %vm789, %v3592, %v3389
        %v3597 = vsel %vm789, %v3593, %v3391
        %v3598 = vsel %vm789, %v3594, %v3393
        %v3599 = vsel %vm789, %v3595, %v3395
        %v3600 = vsel %vm794, %v3596, %v3405
        %v3601 = vsel %vm794, %v3597, %v3407
        %v3602 = vsel %vm794, %v3598, %v3409
        %v3603 = vsel %vm794, %v3599, %v3411
        %v3604 = vsel %vm799, %v3600, %v3421
        %v3605 = vsel %vm799, %v3601, %v3423
        %v3606 = vsel %vm799, %v3602, %v3425
        %v3607 = vsel %vm799, %v3603, %v3427
        %v3608 = vsel %vm804, %v3604, %v3437
        %v3609 = vsel %vm804, %v3605, %v3439
        %v3610 = vsel %vm804, %v3606, %v3441
        %v3611 = vsel %vm804, %v3607, %v3443
        %v3612 = vsel %vm809, %v3608, %v3453
        %v3613 = vsel %vm809, %v3609, %v3455
        %v3614 = vsel %vm809, %v3610, %v3457
        %v3615 = vsel %vm809, %v3611, %v3459
        %v3616 = vsel %vm814, %v3612, %v3469
        %v3617 = vsel %vm814, %v3613, %v3471
        %v3618 = vsel %vm814, %v3614, %v3473
        %v3619 = vsel %vm814, %v3615, %v3475
        %v3620 = vsel %vm784, %v3047, %v3485
        %v3621 = vsel %vm784, %v3145, %v3487
        %v3622 = vsel %vm784, %v3243, %v3489
        %v3623 = vsel %vm784, %v3341, %v3491
        %v3624 = vsel %vm789, %v3620, %v3501
        %v3625 = vsel %vm789, %v3621, %v3503
        %v3626 = vsel %vm789, %v3622, %v3505
        %v3627 = vsel %vm789, %v3623, %v3507
        %v3628 = vsel %vm794, %v3624, %v3517
        %v3629 = vsel %vm794, %v3625, %v3519
        %v3630 = vsel %vm794, %v3626, %v3521
        %v3631 = vsel %vm794, %v3627, %v3523
        %v3632 = vsel %vm799, %v3628, %v3533
        %v3633 = vsel %vm799, %v3629, %v3535
        %v3634 = vsel %vm799, %v3630, %v3537
        %v3635 = vsel %vm799, %v3631, %v3539
        %v3636 = vsel %vm804, %v3632, %v3549
        %v3637 = vsel %vm804, %v3633, %v3551
        %v3638 = vsel %vm804, %v3634, %v3553
        %v3639 = vsel %vm804, %v3635, %v3555
        %v3640 = vsel %vm809, %v3636, %v3565
        %v3641 = vsel %vm809, %v3637, %v3567
        %v3642 = vsel %vm809, %v3638, %v3569
        %v3643 = vsel %vm809, %v3639, %v3571
        %v3644 = vsel %vm814, %v3640, %v3581
        %v3645 = vsel %vm814, %v3641, %v3583
        %v3646 = vsel %vm814, %v3642, %v3585
        %v3647 = vsel %vm814, %v3643, %v3587
        %3648 = vrot.lane.b32.xlu0 %v2254, 126
        %v3649 = vpop.permute.xlu0 %3648
        %3650 = vrot.lane.b32.xlu0 %v2256, 126
        %v3651 = vpop.permute.xlu0 %3650
        %3652 = vrot.lane.b32.xlu0 %v2259, 126
        %v3653 = vpop.permute.xlu0 %3652
        %3654 = vrot.lane.b32.xlu0 %v2261, 126
        %v3655 = vpop.permute.xlu0 %3654
        %3656 = vrot.lane.b32.xlu0 %v2264, 126
        %v3657 = vpop.permute.xlu0 %3656
        %3658 = vrot.lane.b32.xlu0 %v2266, 126
        %v3659 = vpop.permute.xlu0 %3658
        %3660 = vrot.lane.b32.xlu0 %v2269, 126
        %v3661 = vpop.permute.xlu0 %3660
        %3662 = vrot.lane.b32.xlu0 %v2271, 126
        %v3663 = vpop.permute.xlu0 %3662
        %v3672 = vcombine.high %v3649, 0.0
        %v3674 = vunpack.c.l.s4 1983009808
        %v3675 = vunpack.c.0.s8 %v3674
        %v3676 = vlaneseq
        %v3677 = vshrl.u32 %v3676, 7
        %v3678 = vsub.s32 %v3675, %v3677
        %v3679 = vrot.slane %v3649, %v3678
        %v3681 = vunpack.c.l.s4 1983009808
        %v3682 = vunpack.c.0.s8 %v3681
        %v3683 = vlaneseq
        %v3684 = vshrl.u32 %v3683, 7
        %v3685 = vsub.s32 %v3682, %v3684
        %v3686 = vrot.slane %v3672, %v3685
        %v3687 = vcombine.high %v3679, 0.0
        %v3689 = vunpack.c.l.s4 1934713408
        %v3690 = vunpack.c.0.s8 %v3689
        %v3691 = vlaneseq
        %v3692 = vshrl.u32 %v3691, 7
        %v3693 = vsub.s32 %v3690, %v3692
        %v3694 = vrot.slane %v3679, %v3693
        %v3696 = vunpack.c.l.s4 1934713408
        %v3697 = vunpack.c.0.s8 %v3696
        %v3698 = vlaneseq
        %v3699 = vshrl.u32 %v3698, 7
        %v3700 = vsub.s32 %v3697, %v3699
        %v3701 = vrot.slane %v3687, %v3700
        %v3702 = vcombine.high %v3686, 0.0
        %v3704 = vunpack.c.l.s4 1934713408
        %v3705 = vunpack.c.0.s8 %v3704
        %v3706 = vlaneseq
        %v3707 = vshrl.u32 %v3706, 7
        %v3708 = vsub.s32 %v3705, %v3707
        %v3709 = vrot.slane %v3686, %v3708
        %v3711 = vunpack.c.l.s4 1934713408
        %v3712 = vunpack.c.0.s8 %v3711
        %v3713 = vlaneseq
        %v3714 = vshrl.u32 %v3713, 7
        %v3715 = vsub.s32 %v3712, %v3714
        %v3716 = vrot.slane %v3702, %v3715
        %v3717 = vcombine.high %v3694, 0.0
        %v3718 = vcombine.high %v3701, 0.0
        %v3719 = vcombine.high %v3709, 0.0
        %v3720 = vcombine.high %v3716, 0.0
        %v3721 = vcombine.high %v3651, 0.0
        %v3723 = vunpack.c.l.s4 1983009808
        %v3724 = vunpack.c.0.s8 %v3723
        %v3725 = vlaneseq
        %v3726 = vshrl.u32 %v3725, 7
        %v3727 = vsub.s32 %v3724, %v3726
        %v3728 = vrot.slane %v3651, %v3727
        %v3730 = vunpack.c.l.s4 1983009808
        %v3731 = vunpack.c.0.s8 %v3730
        %v3732 = vlaneseq
        %v3733 = vshrl.u32 %v3732, 7
        %v3734 = vsub.s32 %v3731, %v3733
        %v3735 = vrot.slane %v3721, %v3734
        %v3736 = vcombine.high %v3728, 0.0
        %v3738 = vunpack.c.l.s4 1934713408
        %v3739 = vunpack.c.0.s8 %v3738
        %v3740 = vlaneseq
        %v3741 = vshrl.u32 %v3740, 7
        %v3742 = vsub.s32 %v3739, %v3741
        %v3743 = vrot.slane %v3728, %v3742
        %v3745 = vunpack.c.l.s4 1934713408
        %v3746 = vunpack.c.0.s8 %v3745
        %v3747 = vlaneseq
        %v3748 = vshrl.u32 %v3747, 7
        %v3749 = vsub.s32 %v3746, %v3748
        %v3750 = vrot.slane %v3736, %v3749
        %v3751 = vcombine.high %v3735, 0.0
        %v3753 = vunpack.c.l.s4 1934713408
        %v3754 = vunpack.c.0.s8 %v3753
        %v3755 = vlaneseq
        %v3756 = vshrl.u32 %v3755, 7
        %v3757 = vsub.s32 %v3754, %v3756
        %v3758 = vrot.slane %v3735, %v3757
        %v3760 = vunpack.c.l.s4 1934713408
        %v3761 = vunpack.c.0.s8 %v3760
        %v3762 = vlaneseq
        %v3763 = vshrl.u32 %v3762, 7
        %v3764 = vsub.s32 %v3761, %v3763
        %v3765 = vrot.slane %v3751, %v3764
        %v3766 = vcombine.high %v3743, 0.0
        %v3767 = vcombine.high %v3750, 0.0
        %v3768 = vcombine.high %v3758, 0.0
        %v3769 = vcombine.high %v3765, 0.0
        %v3770 = vcombine.high %v3653, 0.0
        %v3772 = vunpack.c.l.s4 1983009808
        %v3773 = vunpack.c.0.s8 %v3772
        %v3774 = vlaneseq
        %v3775 = vshrl.u32 %v3774, 7
        %v3776 = vsub.s32 %v3773, %v3775
        %v3777 = vrot.slane %v3653, %v3776
        %v3779 = vunpack.c.l.s4 1983009808
        %v3780 = vunpack.c.0.s8 %v3779
        %v3781 = vlaneseq
        %v3782 = vshrl.u32 %v3781, 7
        %v3783 = vsub.s32 %v3780, %v3782
        %v3784 = vrot.slane %v3770, %v3783
        %v3785 = vcombine.high %v3777, 0.0
        %v3787 = vunpack.c.l.s4 1934713408
        %v3788 = vunpack.c.0.s8 %v3787
        %v3789 = vlaneseq
        %v3790 = vshrl.u32 %v3789, 7
        %v3791 = vsub.s32 %v3788, %v3790
        %v3792 = vrot.slane %v3777, %v3791
        %v3794 = vunpack.c.l.s4 1934713408
        %v3795 = vunpack.c.0.s8 %v3794
        %v3796 = vlaneseq
        %v3797 = vshrl.u32 %v3796, 7
        %v3798 = vsub.s32 %v3795, %v3797
        %v3799 = vrot.slane %v3785, %v3798
        %v3800 = vcombine.high %v3784, 0.0
        %v3802 = vunpack.c.l.s4 1934713408
        %v3803 = vunpack.c.0.s8 %v3802
        %v3804 = vlaneseq
        %v3805 = vshrl.u32 %v3804, 7
        %v3806 = vsub.s32 %v3803, %v3805
        %v3807 = vrot.slane %v3784, %v3806
        %v3809 = vunpack.c.l.s4 1934713408
        %v3810 = vunpack.c.0.s8 %v3809
        %v3811 = vlaneseq
        %v3812 = vshrl.u32 %v3811, 7
        %v3813 = vsub.s32 %v3810, %v3812
        %v3814 = vrot.slane %v3800, %v3813
        %v3815 = vcombine.high %v3792, 0.0
        %v3816 = vcombine.high %v3799, 0.0
        %v3817 = vcombine.high %v3807, 0.0
        %v3818 = vcombine.high %v3814, 0.0
        %v3819 = vcombine.high %v3655, 0.0
        %v3821 = vunpack.c.l.s4 1983009808
        %v3822 = vunpack.c.0.s8 %v3821
        %v3823 = vlaneseq
        %v3824 = vshrl.u32 %v3823, 7
        %v3825 = vsub.s32 %v3822, %v3824
        %v3826 = vrot.slane %v3655, %v3825
        %v3828 = vunpack.c.l.s4 1983009808
        %v3829 = vunpack.c.0.s8 %v3828
        %v3830 = vlaneseq
        %v3831 = vshrl.u32 %v3830, 7
        %v3832 = vsub.s32 %v3829, %v3831
        %v3833 = vrot.slane %v3819, %v3832
        %v3834 = vcombine.high %v3826, 0.0
        %v3836 = vunpack.c.l.s4 1934713408
        %v3837 = vunpack.c.0.s8 %v3836
        %v3838 = vlaneseq
        %v3839 = vshrl.u32 %v3838, 7
        %v3840 = vsub.s32 %v3837, %v3839
        %v3841 = vrot.slane %v3826, %v3840
        %v3843 = vunpack.c.l.s4 1934713408
        %v3844 = vunpack.c.0.s8 %v3843
        %v3845 = vlaneseq
        %v3846 = vshrl.u32 %v3845, 7
        %v3847 = vsub.s32 %v3844, %v3846
        %v3848 = vrot.slane %v3834, %v3847
        %v3849 = vcombine.high %v3833, 0.0
        %v3851 = vunpack.c.l.s4 1934713408
        %v3852 = vunpack.c.0.s8 %v3851
        %v3853 = vlaneseq
        %v3854 = vshrl.u32 %v3853, 7
        %v3855 = vsub.s32 %v3852, %v3854
        %v3856 = vrot.slane %v3833, %v3855
        %v3858 = vunpack.c.l.s4 1934713408
        %v3859 = vunpack.c.0.s8 %v3858
        %v3860 = vlaneseq
        %v3861 = vshrl.u32 %v3860, 7
        %v3862 = vsub.s32 %v3859, %v3861
        %v3863 = vrot.slane %v3849, %v3862
        %v3864 = vcombine.high %v3841, 0.0
        %v3865 = vcombine.high %v3848, 0.0
        %v3866 = vcombine.high %v3856, 0.0
        %v3867 = vcombine.high %v3863, 0.0
        %v3868 = vcombine.high %v3657, 0.0
        %v3870 = vunpack.c.l.s4 1983009808
        %v3871 = vunpack.c.0.s8 %v3870
        %v3872 = vlaneseq
        %v3873 = vshrl.u32 %v3872, 7
        %v3874 = vsub.s32 %v3871, %v3873
        %v3875 = vrot.slane %v3657, %v3874
        %v3877 = vunpack.c.l.s4 1983009808
        %v3878 = vunpack.c.0.s8 %v3877
        %v3879 = vlaneseq
        %v3880 = vshrl.u32 %v3879, 7
        %v3881 = vsub.s32 %v3878, %v3880
        %v3882 = vrot.slane %v3868, %v3881
        %v3883 = vcombine.high %v3875, 0.0
        %v3885 = vunpack.c.l.s4 1934713408
        %v3886 = vunpack.c.0.s8 %v3885
        %v3887 = vlaneseq
        %v3888 = vshrl.u32 %v3887, 7
        %v3889 = vsub.s32 %v3886, %v3888
        %v3890 = vrot.slane %v3875, %v3889
        %v3892 = vunpack.c.l.s4 1934713408
        %v3893 = vunpack.c.0.s8 %v3892
        %v3894 = vlaneseq
        %v3895 = vshrl.u32 %v3894, 7
        %v3896 = vsub.s32 %v3893, %v3895
        %v3897 = vrot.slane %v3883, %v3896
        %v3898 = vcombine.high %v3882, 0.0
        %v3900 = vunpack.c.l.s4 1934713408
        %v3901 = vunpack.c.0.s8 %v3900
        %v3902 = vlaneseq
        %v3903 = vshrl.u32 %v3902, 7
        %v3904 = vsub.s32 %v3901, %v3903
        %v3905 = vrot.slane %v3882, %v3904
        %v3907 = vunpack.c.l.s4 1934713408
        %v3908 = vunpack.c.0.s8 %v3907
        %v3909 = vlaneseq
        %v3910 = vshrl.u32 %v3909, 7
        %v3911 = vsub.s32 %v3908, %v3910
        %v3912 = vrot.slane %v3898, %v3911
        %v3913 = vcombine.high %v3890, 0.0
        %v3914 = vcombine.high %v3897, 0.0
        %v3915 = vcombine.high %v3905, 0.0
        %v3916 = vcombine.high %v3912, 0.0
        %v3917 = vcombine.high %v3659, 0.0
        %v3919 = vunpack.c.l.s4 1983009808
        %v3920 = vunpack.c.0.s8 %v3919
        %v3921 = vlaneseq
        %v3922 = vshrl.u32 %v3921, 7
        %v3923 = vsub.s32 %v3920, %v3922
        %v3924 = vrot.slane %v3659, %v3923
        %v3926 = vunpack.c.l.s4 1983009808
        %v3927 = vunpack.c.0.s8 %v3926
        %v3928 = vlaneseq
        %v3929 = vshrl.u32 %v3928, 7
        %v3930 = vsub.s32 %v3927, %v3929
        %v3931 = vrot.slane %v3917, %v3930
        %v3932 = vcombine.high %v3924, 0.0
        %v3934 = vunpack.c.l.s4 1934713408
        %v3935 = vunpack.c.0.s8 %v3934
        %v3936 = vlaneseq
        %v3937 = vshrl.u32 %v3936, 7
        %v3938 = vsub.s32 %v3935, %v3937
        %v3939 = vrot.slane %v3924, %v3938
        %v3941 = vunpack.c.l.s4 1934713408
        %v3942 = vunpack.c.0.s8 %v3941
        %v3943 = vlaneseq
        %v3944 = vshrl.u32 %v3943, 7
        %v3945 = vsub.s32 %v3942, %v3944
        %v3946 = vrot.slane %v3932, %v3945
        %v3947 = vcombine.high %v3931, 0.0
        %v3949 = vunpack.c.l.s4 1934713408
        %v3950 = vunpack.c.0.s8 %v3949
        %v3951 = vlaneseq
        %v3952 = vshrl.u32 %v3951, 7
        %v3953 = vsub.s32 %v3950, %v3952
        %v3954 = vrot.slane %v3931, %v3953
        %v3956 = vunpack.c.l.s4 1934713408
        %v3957 = vunpack.c.0.s8 %v3956
        %v3958 = vlaneseq
        %v3959 = vshrl.u32 %v3958, 7
        %v3960 = vsub.s32 %v3957, %v3959
        %v3961 = vrot.slane %v3947, %v3960
        %v3962 = vcombine.high %v3939, 0.0
        %v3963 = vcombine.high %v3946, 0.0
        %v3964 = vcombine.high %v3954, 0.0
        %v3965 = vcombine.high %v3961, 0.0
        %v3966 = vcombine.high %v3661, 0.0
        %v3968 = vunpack.c.l.s4 1983009808
        %v3969 = vunpack.c.0.s8 %v3968
        %v3970 = vlaneseq
        %v3971 = vshrl.u32 %v3970, 7
        %v3972 = vsub.s32 %v3969, %v3971
        %v3973 = vrot.slane %v3661, %v3972
        %v3975 = vunpack.c.l.s4 1983009808
        %v3976 = vunpack.c.0.s8 %v3975
        %v3977 = vlaneseq
        %v3978 = vshrl.u32 %v3977, 7
        %v3979 = vsub.s32 %v3976, %v3978
        %v3980 = vrot.slane %v3966, %v3979
        %v3981 = vcombine.high %v3973, 0.0
        %v3983 = vunpack.c.l.s4 1934713408
        %v3984 = vunpack.c.0.s8 %v3983
        %v3985 = vlaneseq
        %v3986 = vshrl.u32 %v3985, 7
        %v3987 = vsub.s32 %v3984, %v3986
        %v3988 = vrot.slane %v3973, %v3987
        %v3990 = vunpack.c.l.s4 1934713408
        %v3991 = vunpack.c.0.s8 %v3990
        %v3992 = vlaneseq
        %v3993 = vshrl.u32 %v3992, 7
        %v3994 = vsub.s32 %v3991, %v3993
        %v3995 = vrot.slane %v3981, %v3994
        %v3996 = vcombine.high %v3980, 0.0
        %v3998 = vunpack.c.l.s4 1934713408
        %v3999 = vunpack.c.0.s8 %v3998
        %v4000 = vlaneseq
        %v4001 = vshrl.u32 %v4000, 7
        %v4002 = vsub.s32 %v3999, %v4001
        %v4003 = vrot.slane %v3980, %v4002
        %v4005 = vunpack.c.l.s4 1934713408
        %v4006 = vunpack.c.0.s8 %v4005
        %v4007 = vlaneseq
        %v4008 = vshrl.u32 %v4007, 7
        %v4009 = vsub.s32 %v4006, %v4008
        %v4010 = vrot.slane %v3996, %v4009
        %v4011 = vcombine.high %v3988, 0.0
        %v4012 = vcombine.high %v3995, 0.0
        %v4013 = vcombine.high %v4003, 0.0
        %v4014 = vcombine.high %v4010, 0.0
        %v4015 = vcombine.high %v3663, 0.0
        %v4017 = vunpack.c.l.s4 1983009808
        %v4018 = vunpack.c.0.s8 %v4017
        %v4019 = vlaneseq
        %v4020 = vshrl.u32 %v4019, 7
        %v4021 = vsub.s32 %v4018, %v4020
        %v4022 = vrot.slane %v3663, %v4021
        %v4024 = vunpack.c.l.s4 1983009808
        %v4025 = vunpack.c.0.s8 %v4024
        %v4026 = vlaneseq
        %v4027 = vshrl.u32 %v4026, 7
        %v4028 = vsub.s32 %v4025, %v4027
        %v4029 = vrot.slane %v4015, %v4028
        %v4030 = vcombine.high %v4022, 0.0
        %v4032 = vunpack.c.l.s4 1934713408
        %v4033 = vunpack.c.0.s8 %v4032
        %v4034 = vlaneseq
        %v4035 = vshrl.u32 %v4034, 7
        %v4036 = vsub.s32 %v4033, %v4035
        %v4037 = vrot.slane %v4022, %v4036
        %v4039 = vunpack.c.l.s4 1934713408
        %v4040 = vunpack.c.0.s8 %v4039
        %v4041 = vlaneseq
        %v4042 = vshrl.u32 %v4041, 7
        %v4043 = vsub.s32 %v4040, %v4042
        %v4044 = vrot.slane %v4030, %v4043
        %v4045 = vcombine.high %v4029, 0.0
        %v4047 = vunpack.c.l.s4 1934713408
        %v4048 = vunpack.c.0.s8 %v4047
        %v4049 = vlaneseq
        %v4050 = vshrl.u32 %v4049, 7
        %v4051 = vsub.s32 %v4048, %v4050
        %v4052 = vrot.slane %v4029, %v4051
        %v4054 = vunpack.c.l.s4 1934713408
        %v4055 = vunpack.c.0.s8 %v4054
        %v4056 = vlaneseq
        %v4057 = vshrl.u32 %v4056, 7
        %v4058 = vsub.s32 %v4055, %v4057
        %v4059 = vrot.slane %v4045, %v4058
        %v4060 = vcombine.high %v4037, 0.0
        %v4061 = vcombine.high %v4044, 0.0
        %v4062 = vcombine.high %v4052, 0.0
        %v4063 = vcombine.high %v4059, 0.0
        %4068 = vrot.lane.b32.xlu0 %v3717, 16
        %v4069 = vpop.permute.xlu0 %4068
        %4070 = vrot.lane.b32.xlu0 %v3815, 16
        %v4071 = vpop.permute.xlu0 %4070
        %4072 = vrot.lane.b32.xlu0 %v3913, 16
        %v4073 = vpop.permute.xlu0 %4072
        %4074 = vrot.lane.b32.xlu0 %v4011, 16
        %v4075 = vpop.permute.xlu0 %4074
        %4084 = vrot.lane.b32.xlu0 %v3701, 32
        %v4085 = vpop.permute.xlu0 %4084
        %4086 = vrot.lane.b32.xlu0 %v3799, 32
        %v4087 = vpop.permute.xlu0 %4086
        %4088 = vrot.lane.b32.xlu0 %v3897, 32
        %v4089 = vpop.permute.xlu0 %4088
        %4090 = vrot.lane.b32.xlu0 %v3995, 32
        %v4091 = vpop.permute.xlu0 %4090
        %4100 = vrot.lane.b32.xlu0 %v3718, 48
        %v4101 = vpop.permute.xlu0 %4100
        %4102 = vrot.lane.b32.xlu0 %v3816, 48
        %v4103 = vpop.permute.xlu0 %4102
        %4104 = vrot.lane.b32.xlu0 %v3914, 48
        %v4105 = vpop.permute.xlu0 %4104
        %4106 = vrot.lane.b32.xlu0 %v4012, 48
        %v4107 = vpop.permute.xlu0 %4106
        %4116 = vrot.lane.b32.xlu0 %v3709, 64
        %v4117 = vpop.permute.xlu0 %4116
        %4118 = vrot.lane.b32.xlu0 %v3807, 64
        %v4119 = vpop.permute.xlu0 %4118
        %4120 = vrot.lane.b32.xlu0 %v3905, 64
        %v4121 = vpop.permute.xlu0 %4120
        %4122 = vrot.lane.b32.xlu0 %v4003, 64
        %v4123 = vpop.permute.xlu0 %4122
        %4132 = vrot.lane.b32.xlu0 %v3719, 80
        %v4133 = vpop.permute.xlu0 %4132
        %4134 = vrot.lane.b32.xlu0 %v3817, 80
        %v4135 = vpop.permute.xlu0 %4134
        %4136 = vrot.lane.b32.xlu0 %v3915, 80
        %v4137 = vpop.permute.xlu0 %4136
        %4138 = vrot.lane.b32.xlu0 %v4013, 80
        %v4139 = vpop.permute.xlu0 %4138
        %4148 = vrot.lane.b32.xlu0 %v3716, 96
        %v4149 = vpop.permute.xlu0 %4148
        %4150 = vrot.lane.b32.xlu0 %v3814, 96
        %v4151 = vpop.permute.xlu0 %4150
        %4152 = vrot.lane.b32.xlu0 %v3912, 96
        %v4153 = vpop.permute.xlu0 %4152
        %4154 = vrot.lane.b32.xlu0 %v4010, 96
        %v4155 = vpop.permute.xlu0 %4154
        %4164 = vrot.lane.b32.xlu0 %v3720, 112
        %v4165 = vpop.permute.xlu0 %4164
        %4166 = vrot.lane.b32.xlu0 %v3818, 112
        %v4167 = vpop.permute.xlu0 %4166
        %4168 = vrot.lane.b32.xlu0 %v3916, 112
        %v4169 = vpop.permute.xlu0 %4168
        %4170 = vrot.lane.b32.xlu0 %v4014, 112
        %v4171 = vpop.permute.xlu0 %4170
        %4180 = vrot.lane.b32.xlu0 %v3766, 16
        %v4181 = vpop.permute.xlu0 %4180
        %4182 = vrot.lane.b32.xlu0 %v3864, 16
        %v4183 = vpop.permute.xlu0 %4182
        %4184 = vrot.lane.b32.xlu0 %v3962, 16
        %v4185 = vpop.permute.xlu0 %4184
        %4186 = vrot.lane.b32.xlu0 %v4060, 16
        %v4187 = vpop.permute.xlu0 %4186
        %4196 = vrot.lane.b32.xlu0 %v3750, 32
        %v4197 = vpop.permute.xlu0 %4196
        %4198 = vrot.lane.b32.xlu0 %v3848, 32
        %v4199 = vpop.permute.xlu0 %4198
        %4200 = vrot.lane.b32.xlu0 %v3946, 32
        %v4201 = vpop.permute.xlu0 %4200
        %4202 = vrot.lane.b32.xlu0 %v4044, 32
        %v4203 = vpop.permute.xlu0 %4202
        %4212 = vrot.lane.b32.xlu0 %v3767, 48
        %v4213 = vpop.permute.xlu0 %4212
        %4214 = vrot.lane.b32.xlu0 %v3865, 48
        %v4215 = vpop.permute.xlu0 %4214
        %4216 = vrot.lane.b32.xlu0 %v3963, 48
        %v4217 = vpop.permute.xlu0 %4216
        %4218 = vrot.lane.b32.xlu0 %v4061, 48
        %v4219 = vpop.permute.xlu0 %4218
        %4228 = vrot.lane.b32.xlu0 %v3758, 64
        %v4229 = vpop.permute.xlu0 %4228
        %4230 = vrot.lane.b32.xlu0 %v3856, 64
        %v4231 = vpop.permute.xlu0 %4230
        %4232 = vrot.lane.b32.xlu0 %v3954, 64
        %v4233 = vpop.permute.xlu0 %4232
        %4234 = vrot.lane.b32.xlu0 %v4052, 64
        %v4235 = vpop.permute.xlu0 %4234
        %4244 = vrot.lane.b32.xlu0 %v3768, 80
        %v4245 = vpop.permute.xlu0 %4244
        %4246 = vrot.lane.b32.xlu0 %v3866, 80
        %v4247 = vpop.permute.xlu0 %4246
        %4248 = vrot.lane.b32.xlu0 %v3964, 80
        %v4249 = vpop.permute.xlu0 %4248
        %4250 = vrot.lane.b32.xlu0 %v4062, 80
        %v4251 = vpop.permute.xlu0 %4250
        %4260 = vrot.lane.b32.xlu0 %v3765, 96
        %v4261 = vpop.permute.xlu0 %4260
        %4262 = vrot.lane.b32.xlu0 %v3863, 96
        %v4263 = vpop.permute.xlu0 %4262
        %4264 = vrot.lane.b32.xlu0 %v3961, 96
        %v4265 = vpop.permute.xlu0 %4264
        %4266 = vrot.lane.b32.xlu0 %v4059, 96
        %v4267 = vpop.permute.xlu0 %4266
        %4276 = vrot.lane.b32.xlu0 %v3769, 112
        %v4277 = vpop.permute.xlu0 %4276
        %4278 = vrot.lane.b32.xlu0 %v3867, 112
        %v4279 = vpop.permute.xlu0 %4278
        %4280 = vrot.lane.b32.xlu0 %v3965, 112
        %v4281 = vpop.permute.xlu0 %4280
        %4282 = vrot.lane.b32.xlu0 %v4063, 112
        %v4283 = vpop.permute.xlu0 %4282
        %v4288 = vsel %vm784, %v3694, %v4069
        %v4289 = vsel %vm784, %v3792, %v4071
        %v4290 = vsel %vm784, %v3890, %v4073
        %v4291 = vsel %vm784, %v3988, %v4075
        %v4292 = vsel %vm789, %v4288, %v4085
        %v4293 = vsel %vm789, %v4289, %v4087
        %v4294 = vsel %vm789, %v4290, %v4089
        %v4295 = vsel %vm789, %v4291, %v4091
        %v4296 = vsel %vm794, %v4292, %v4101
        %v4297 = vsel %vm794, %v4293, %v4103
        %v4298 = vsel %vm794, %v4294, %v4105
        %v4299 = vsel %vm794, %v4295, %v4107
        %v4300 = vsel %vm799, %v4296, %v4117
        %v4301 = vsel %vm799, %v4297, %v4119
        %v4302 = vsel %vm799, %v4298, %v4121
        %v4303 = vsel %vm799, %v4299, %v4123
        %v4304 = vsel %vm804, %v4300, %v4133
        %v4305 = vsel %vm804, %v4301, %v4135
        %v4306 = vsel %vm804, %v4302, %v4137
        %v4307 = vsel %vm804, %v4303, %v4139
        %v4308 = vsel %vm809, %v4304, %v4149
        %v4309 = vsel %vm809, %v4305, %v4151
        %v4310 = vsel %vm809, %v4306, %v4153
        %v4311 = vsel %vm809, %v4307, %v4155
        %v4312 = vsel %vm814, %v4308, %v4165
        %v4313 = vsel %vm814, %v4309, %v4167
        %v4314 = vsel %vm814, %v4310, %v4169
        %v4315 = vsel %vm814, %v4311, %v4171
        %v4316 = vsel %vm784, %v3743, %v4181
        %v4317 = vsel %vm784, %v3841, %v4183
        %v4318 = vsel %vm784, %v3939, %v4185
        %v4319 = vsel %vm784, %v4037, %v4187
        %v4320 = vsel %vm789, %v4316, %v4197
        %v4321 = vsel %vm789, %v4317, %v4199
        %v4322 = vsel %vm789, %v4318, %v4201
        %v4323 = vsel %vm789, %v4319, %v4203
        %v4324 = vsel %vm794, %v4320, %v4213
        %v4325 = vsel %vm794, %v4321, %v4215
        %v4326 = vsel %vm794, %v4322, %v4217
        %v4327 = vsel %vm794, %v4323, %v4219
        %v4328 = vsel %vm799, %v4324, %v4229
        %v4329 = vsel %vm799, %v4325, %v4231
        %v4330 = vsel %vm799, %v4326, %v4233
        %v4331 = vsel %vm799, %v4327, %v4235
        %v4332 = vsel %vm804, %v4328, %v4245
        %v4333 = vsel %vm804, %v4329, %v4247
        %v4334 = vsel %vm804, %v4330, %v4249
        %v4335 = vsel %vm804, %v4331, %v4251
        %v4336 = vsel %vm809, %v4332, %v4261
        %v4337 = vsel %vm809, %v4333, %v4263
        %v4338 = vsel %vm809, %v4334, %v4265
        %v4339 = vsel %vm809, %v4335, %v4267
        %v4340 = vsel %vm814, %v4336, %v4277
        %v4341 = vsel %vm814, %v4337, %v4279
        %v4342 = vsel %vm814, %v4338, %v4281
        %v4343 = vsel %vm814, %v4339, %v4283
        %vm4344 = vcmask 1045504
        %v4345 = vrot.slane %v156, 2
        %v4346 = vrot.slane %v157, 2
        %v4347 = vsel %vm4344, %v4345, %v4346
        %v4348 = vrot.slane %v158, 2
        %v4349 = vsel %vm4344, %v4346, %v4348
        %v4350 = vrot.slane %v159, 2
        %v4351 = vrot.slane %v160, 2
        %v4352 = vsel %vm4344, %v4350, %v4351
        %v4353 = vrot.slane %v161, 2
        %v4354 = vsel %vm4344, %v4351, %v4353
        %v4355 = vrot.slane %v162, 2
        %v4356 = vrot.slane %v163, 2
        %v4357 = vsel %vm4344, %v4355, %v4356
        %v4358 = vrot.slane %v164, 2
        %v4359 = vsel %vm4344, %v4356, %v4358
        %v4360 = vrot.slane %v165, 2
        %v4361 = vrot.slane %v166, 2
        %v4362 = vsel %vm4344, %v4360, %v4361
        %v4363 = vrot.slane %v167, 2
        %v4364 = vsel %vm4344, %v4361, %v4363
        %v4373 = vcombine.high %v4347, 0.0
        %v4375 = vunpack.c.l.s4 1983009808
        %v4376 = vunpack.c.0.s8 %v4375
        %v4377 = vlaneseq
        %v4378 = vshrl.u32 %v4377, 7
        %v4379 = vsub.s32 %v4376, %v4378
        %v4380 = vrot.slane %v4347, %v4379
        %v4382 = vunpack.c.l.s4 1983009808
        %v4383 = vunpack.c.0.s8 %v4382
        %v4384 = vlaneseq
        %v4385 = vshrl.u32 %v4384, 7
        %v4386 = vsub.s32 %v4383, %v4385
        %v4387 = vrot.slane %v4373, %v4386
        %v4388 = vcombine.high %v4380, 0.0
        %v4390 = vunpack.c.l.s4 1934713408
        %v4391 = vunpack.c.0.s8 %v4390
        %v4392 = vlaneseq
        %v4393 = vshrl.u32 %v4392, 7
        %v4394 = vsub.s32 %v4391, %v4393
        %v4395 = vrot.slane %v4380, %v4394
        %v4397 = vunpack.c.l.s4 1934713408
        %v4398 = vunpack.c.0.s8 %v4397
        %v4399 = vlaneseq
        %v4400 = vshrl.u32 %v4399, 7
        %v4401 = vsub.s32 %v4398, %v4400
        %v4402 = vrot.slane %v4388, %v4401
        %v4403 = vcombine.high %v4387, 0.0
        %v4405 = vunpack.c.l.s4 1934713408
        %v4406 = vunpack.c.0.s8 %v4405
        %v4407 = vlaneseq
        %v4408 = vshrl.u32 %v4407, 7
        %v4409 = vsub.s32 %v4406, %v4408
        %v4410 = vrot.slane %v4387, %v4409
        %v4412 = vunpack.c.l.s4 1934713408
        %v4413 = vunpack.c.0.s8 %v4412
        %v4414 = vlaneseq
        %v4415 = vshrl.u32 %v4414, 7
        %v4416 = vsub.s32 %v4413, %v4415
        %v4417 = vrot.slane %v4403, %v4416
        %v4418 = vcombine.high %v4395, 0.0
        %v4419 = vcombine.high %v4402, 0.0
        %v4420 = vcombine.high %v4410, 0.0
        %v4421 = vcombine.high %v4417, 0.0
        %v4422 = vcombine.high %v4349, 0.0
        %v4424 = vunpack.c.l.s4 1983009808
        %v4425 = vunpack.c.0.s8 %v4424
        %v4426 = vlaneseq
        %v4427 = vshrl.u32 %v4426, 7
        %v4428 = vsub.s32 %v4425, %v4427
        %v4429 = vrot.slane %v4349, %v4428
        %v4431 = vunpack.c.l.s4 1983009808
        %v4432 = vunpack.c.0.s8 %v4431
        %v4433 = vlaneseq
        %v4434 = vshrl.u32 %v4433, 7
        %v4435 = vsub.s32 %v4432, %v4434
        %v4436 = vrot.slane %v4422, %v4435
        %v4437 = vcombine.high %v4429, 0.0
        %v4439 = vunpack.c.l.s4 1934713408
        %v4440 = vunpack.c.0.s8 %v4439
        %v4441 = vlaneseq
        %v4442 = vshrl.u32 %v4441, 7
        %v4443 = vsub.s32 %v4440, %v4442
        %v4444 = vrot.slane %v4429, %v4443
        %v4446 = vunpack.c.l.s4 1934713408
        %v4447 = vunpack.c.0.s8 %v4446
        %v4448 = vlaneseq
        %v4449 = vshrl.u32 %v4448, 7
        %v4450 = vsub.s32 %v4447, %v4449
        %v4451 = vrot.slane %v4437, %v4450
        %v4452 = vcombine.high %v4436, 0.0
        %v4454 = vunpack.c.l.s4 1934713408
        %v4455 = vunpack.c.0.s8 %v4454
        %v4456 = vlaneseq
        %v4457 = vshrl.u32 %v4456, 7
        %v4458 = vsub.s32 %v4455, %v4457
        %v4459 = vrot.slane %v4436, %v4458
        %v4461 = vunpack.c.l.s4 1934713408
        %v4462 = vunpack.c.0.s8 %v4461
        %v4463 = vlaneseq
        %v4464 = vshrl.u32 %v4463, 7
        %v4465 = vsub.s32 %v4462, %v4464
        %v4466 = vrot.slane %v4452, %v4465
        %v4467 = vcombine.high %v4444, 0.0
        %v4468 = vcombine.high %v4451, 0.0
        %v4469 = vcombine.high %v4459, 0.0
        %v4470 = vcombine.high %v4466, 0.0
        %v4471 = vcombine.high %v4352, 0.0
        %v4473 = vunpack.c.l.s4 1983009808
        %v4474 = vunpack.c.0.s8 %v4473
        %v4475 = vlaneseq
        %v4476 = vshrl.u32 %v4475, 7
        %v4477 = vsub.s32 %v4474, %v4476
        %v4478 = vrot.slane %v4352, %v4477
        %v4480 = vunpack.c.l.s4 1983009808
        %v4481 = vunpack.c.0.s8 %v4480
        %v4482 = vlaneseq
        %v4483 = vshrl.u32 %v4482, 7
        %v4484 = vsub.s32 %v4481, %v4483
        %v4485 = vrot.slane %v4471, %v4484
        %v4486 = vcombine.high %v4478, 0.0
        %v4488 = vunpack.c.l.s4 1934713408
        %v4489 = vunpack.c.0.s8 %v4488
        %v4490 = vlaneseq
        %v4491 = vshrl.u32 %v4490, 7
        %v4492 = vsub.s32 %v4489, %v4491
        %v4493 = vrot.slane %v4478, %v4492
        %v4495 = vunpack.c.l.s4 1934713408
        %v4496 = vunpack.c.0.s8 %v4495
        %v4497 = vlaneseq
        %v4498 = vshrl.u32 %v4497, 7
        %v4499 = vsub.s32 %v4496, %v4498
        %v4500 = vrot.slane %v4486, %v4499
        %v4501 = vcombine.high %v4485, 0.0
        %v4503 = vunpack.c.l.s4 1934713408
        %v4504 = vunpack.c.0.s8 %v4503
        %v4505 = vlaneseq
        %v4506 = vshrl.u32 %v4505, 7
        %v4507 = vsub.s32 %v4504, %v4506
        %v4508 = vrot.slane %v4485, %v4507
        %v4510 = vunpack.c.l.s4 1934713408
        %v4511 = vunpack.c.0.s8 %v4510
        %v4512 = vlaneseq
        %v4513 = vshrl.u32 %v4512, 7
        %v4514 = vsub.s32 %v4511, %v4513
        %v4515 = vrot.slane %v4501, %v4514
        %v4516 = vcombine.high %v4493, 0.0
        %v4517 = vcombine.high %v4500, 0.0
        %v4518 = vcombine.high %v4508, 0.0
        %v4519 = vcombine.high %v4515, 0.0
        %v4520 = vcombine.high %v4354, 0.0
        %v4522 = vunpack.c.l.s4 1983009808
        %v4523 = vunpack.c.0.s8 %v4522
        %v4524 = vlaneseq
        %v4525 = vshrl.u32 %v4524, 7
        %v4526 = vsub.s32 %v4523, %v4525
        %v4527 = vrot.slane %v4354, %v4526
        %v4529 = vunpack.c.l.s4 1983009808
        %v4530 = vunpack.c.0.s8 %v4529
        %v4531 = vlaneseq
        %v4532 = vshrl.u32 %v4531, 7
        %v4533 = vsub.s32 %v4530, %v4532
        %v4534 = vrot.slane %v4520, %v4533
        %v4535 = vcombine.high %v4527, 0.0
        %v4537 = vunpack.c.l.s4 1934713408
        %v4538 = vunpack.c.0.s8 %v4537
        %v4539 = vlaneseq
        %v4540 = vshrl.u32 %v4539, 7
        %v4541 = vsub.s32 %v4538, %v4540
        %v4542 = vrot.slane %v4527, %v4541
        %v4544 = vunpack.c.l.s4 1934713408
        %v4545 = vunpack.c.0.s8 %v4544
        %v4546 = vlaneseq
        %v4547 = vshrl.u32 %v4546, 7
        %v4548 = vsub.s32 %v4545, %v4547
        %v4549 = vrot.slane %v4535, %v4548
        %v4550 = vcombine.high %v4534, 0.0
        %v4552 = vunpack.c.l.s4 1934713408
        %v4553 = vunpack.c.0.s8 %v4552
        %v4554 = vlaneseq
        %v4555 = vshrl.u32 %v4554, 7
        %v4556 = vsub.s32 %v4553, %v4555
        %v4557 = vrot.slane %v4534, %v4556
        %v4559 = vunpack.c.l.s4 1934713408
        %v4560 = vunpack.c.0.s8 %v4559
        %v4561 = vlaneseq
        %v4562 = vshrl.u32 %v4561, 7
        %v4563 = vsub.s32 %v4560, %v4562
        %v4564 = vrot.slane %v4550, %v4563
        %v4565 = vcombine.high %v4542, 0.0
        %v4566 = vcombine.high %v4549, 0.0
        %v4567 = vcombine.high %v4557, 0.0
        %v4568 = vcombine.high %v4564, 0.0
        %v4569 = vcombine.high %v4357, 0.0
        %v4571 = vunpack.c.l.s4 1983009808
        %v4572 = vunpack.c.0.s8 %v4571
        %v4573 = vlaneseq
        %v4574 = vshrl.u32 %v4573, 7
        %v4575 = vsub.s32 %v4572, %v4574
        %v4576 = vrot.slane %v4357, %v4575
        %v4578 = vunpack.c.l.s4 1983009808
        %v4579 = vunpack.c.0.s8 %v4578
        %v4580 = vlaneseq
        %v4581 = vshrl.u32 %v4580, 7
        %v4582 = vsub.s32 %v4579, %v4581
        %v4583 = vrot.slane %v4569, %v4582
        %v4584 = vcombine.high %v4576, 0.0
        %v4586 = vunpack.c.l.s4 1934713408
        %v4587 = vunpack.c.0.s8 %v4586
        %v4588 = vlaneseq
        %v4589 = vshrl.u32 %v4588, 7
        %v4590 = vsub.s32 %v4587, %v4589
        %v4591 = vrot.slane %v4576, %v4590
        %v4593 = vunpack.c.l.s4 1934713408
        %v4594 = vunpack.c.0.s8 %v4593
        %v4595 = vlaneseq
        %v4596 = vshrl.u32 %v4595, 7
        %v4597 = vsub.s32 %v4594, %v4596
        %v4598 = vrot.slane %v4584, %v4597
        %v4599 = vcombine.high %v4583, 0.0
        %v4601 = vunpack.c.l.s4 1934713408
        %v4602 = vunpack.c.0.s8 %v4601
        %v4603 = vlaneseq
        %v4604 = vshrl.u32 %v4603, 7
        %v4605 = vsub.s32 %v4602, %v4604
        %v4606 = vrot.slane %v4583, %v4605
        %v4608 = vunpack.c.l.s4 1934713408
        %v4609 = vunpack.c.0.s8 %v4608
        %v4610 = vlaneseq
        %v4611 = vshrl.u32 %v4610, 7
        %v4612 = vsub.s32 %v4609, %v4611
        %v4613 = vrot.slane %v4599, %v4612
        %v4614 = vcombine.high %v4591, 0.0
        %v4615 = vcombine.high %v4598, 0.0
        %v4616 = vcombine.high %v4606, 0.0
        %v4617 = vcombine.high %v4613, 0.0
        %v4618 = vcombine.high %v4359, 0.0
        %v4620 = vunpack.c.l.s4 1983009808
        %v4621 = vunpack.c.0.s8 %v4620
        %v4622 = vlaneseq
        %v4623 = vshrl.u32 %v4622, 7
        %v4624 = vsub.s32 %v4621, %v4623
        %v4625 = vrot.slane %v4359, %v4624
        %v4627 = vunpack.c.l.s4 1983009808
        %v4628 = vunpack.c.0.s8 %v4627
        %v4629 = vlaneseq
        %v4630 = vshrl.u32 %v4629, 7
        %v4631 = vsub.s32 %v4628, %v4630
        %v4632 = vrot.slane %v4618, %v4631
        %v4633 = vcombine.high %v4625, 0.0
        %v4635 = vunpack.c.l.s4 1934713408
        %v4636 = vunpack.c.0.s8 %v4635
        %v4637 = vlaneseq
        %v4638 = vshrl.u32 %v4637, 7
        %v4639 = vsub.s32 %v4636, %v4638
        %v4640 = vrot.slane %v4625, %v4639
        %v4642 = vunpack.c.l.s4 1934713408
        %v4643 = vunpack.c.0.s8 %v4642
        %v4644 = vlaneseq
        %v4645 = vshrl.u32 %v4644, 7
        %v4646 = vsub.s32 %v4643, %v4645
        %v4647 = vrot.slane %v4633, %v4646
        %v4648 = vcombine.high %v4632, 0.0
        %v4650 = vunpack.c.l.s4 1934713408
        %v4651 = vunpack.c.0.s8 %v4650
        %v4652 = vlaneseq
        %v4653 = vshrl.u32 %v4652, 7
        %v4654 = vsub.s32 %v4651, %v4653
        %v4655 = vrot.slane %v4632, %v4654
        %v4657 = vunpack.c.l.s4 1934713408
        %v4658 = vunpack.c.0.s8 %v4657
        %v4659 = vlaneseq
        %v4660 = vshrl.u32 %v4659, 7
        %v4661 = vsub.s32 %v4658, %v4660
        %v4662 = vrot.slane %v4648, %v4661
        %v4663 = vcombine.high %v4640, 0.0
        %v4664 = vcombine.high %v4647, 0.0
        %v4665 = vcombine.high %v4655, 0.0
        %v4666 = vcombine.high %v4662, 0.0
        %v4667 = vcombine.high %v4362, 0.0
        %v4669 = vunpack.c.l.s4 1983009808
        %v4670 = vunpack.c.0.s8 %v4669
        %v4671 = vlaneseq
        %v4672 = vshrl.u32 %v4671, 7
        %v4673 = vsub.s32 %v4670, %v4672
        %v4674 = vrot.slane %v4362, %v4673
        %v4676 = vunpack.c.l.s4 1983009808
        %v4677 = vunpack.c.0.s8 %v4676
        %v4678 = vlaneseq
        %v4679 = vshrl.u32 %v4678, 7
        %v4680 = vsub.s32 %v4677, %v4679
        %v4681 = vrot.slane %v4667, %v4680
        %v4682 = vcombine.high %v4674, 0.0
        %v4684 = vunpack.c.l.s4 1934713408
        %v4685 = vunpack.c.0.s8 %v4684
        %v4686 = vlaneseq
        %v4687 = vshrl.u32 %v4686, 7
        %v4688 = vsub.s32 %v4685, %v4687
        %v4689 = vrot.slane %v4674, %v4688
        %v4691 = vunpack.c.l.s4 1934713408
        %v4692 = vunpack.c.0.s8 %v4691
        %v4693 = vlaneseq
        %v4694 = vshrl.u32 %v4693, 7
        %v4695 = vsub.s32 %v4692, %v4694
        %v4696 = vrot.slane %v4682, %v4695
        %v4697 = vcombine.high %v4681, 0.0
        %v4699 = vunpack.c.l.s4 1934713408
        %v4700 = vunpack.c.0.s8 %v4699
        %v4701 = vlaneseq
        %v4702 = vshrl.u32 %v4701, 7
        %v4703 = vsub.s32 %v4700, %v4702
        %v4704 = vrot.slane %v4681, %v4703
        %v4706 = vunpack.c.l.s4 1934713408
        %v4707 = vunpack.c.0.s8 %v4706
        %v4708 = vlaneseq
        %v4709 = vshrl.u32 %v4708, 7
        %v4710 = vsub.s32 %v4707, %v4709
        %v4711 = vrot.slane %v4697, %v4710
        %v4712 = vcombine.high %v4689, 0.0
        %v4713 = vcombine.high %v4696, 0.0
        %v4714 = vcombine.high %v4704, 0.0
        %v4715 = vcombine.high %v4711, 0.0
        %v4716 = vcombine.high %v4364, 0.0
        %v4718 = vunpack.c.l.s4 1983009808
        %v4719 = vunpack.c.0.s8 %v4718
        %v4720 = vlaneseq
        %v4721 = vshrl.u32 %v4720, 7
        %v4722 = vsub.s32 %v4719, %v4721
        %v4723 = vrot.slane %v4364, %v4722
        %v4725 = vunpack.c.l.s4 1983009808
        %v4726 = vunpack.c.0.s8 %v4725
        %v4727 = vlaneseq
        %v4728 = vshrl.u32 %v4727, 7
        %v4729 = vsub.s32 %v4726, %v4728
        %v4730 = vrot.slane %v4716, %v4729
        %v4731 = vcombine.high %v4723, 0.0
        %v4733 = vunpack.c.l.s4 1934713408
        %v4734 = vunpack.c.0.s8 %v4733
        %v4735 = vlaneseq
        %v4736 = vshrl.u32 %v4735, 7
        %v4737 = vsub.s32 %v4734, %v4736
        %v4738 = vrot.slane %v4723, %v4737
        %v4740 = vunpack.c.l.s4 1934713408
        %v4741 = vunpack.c.0.s8 %v4740
        %v4742 = vlaneseq
        %v4743 = vshrl.u32 %v4742, 7
        %v4744 = vsub.s32 %v4741, %v4743
        %v4745 = vrot.slane %v4731, %v4744
        %v4746 = vcombine.high %v4730, 0.0
        %v4748 = vunpack.c.l.s4 1934713408
        %v4749 = vunpack.c.0.s8 %v4748
        %v4750 = vlaneseq
        %v4751 = vshrl.u32 %v4750, 7
        %v4752 = vsub.s32 %v4749, %v4751
        %v4753 = vrot.slane %v4730, %v4752
        %v4755 = vunpack.c.l.s4 1934713408
        %v4756 = vunpack.c.0.s8 %v4755
        %v4757 = vlaneseq
        %v4758 = vshrl.u32 %v4757, 7
        %v4759 = vsub.s32 %v4756, %v4758
        %v4760 = vrot.slane %v4746, %v4759
        %v4761 = vcombine.high %v4738, 0.0
        %v4762 = vcombine.high %v4745, 0.0
        %v4763 = vcombine.high %v4753, 0.0
        %v4764 = vcombine.high %v4760, 0.0
        %4769 = vrot.lane.b32.xlu0 %v4418, 16
        %v4770 = vpop.permute.xlu0 %4769
        %4771 = vrot.lane.b32.xlu0 %v4516, 16
        %v4772 = vpop.permute.xlu0 %4771
        %4773 = vrot.lane.b32.xlu0 %v4614, 16
        %v4774 = vpop.permute.xlu0 %4773
        %4775 = vrot.lane.b32.xlu0 %v4712, 16
        %v4776 = vpop.permute.xlu0 %4775
        %4785 = vrot.lane.b32.xlu0 %v4402, 32
        %v4786 = vpop.permute.xlu0 %4785
        %4787 = vrot.lane.b32.xlu0 %v4500, 32
        %v4788 = vpop.permute.xlu0 %4787
        %4789 = vrot.lane.b32.xlu0 %v4598, 32
        %v4790 = vpop.permute.xlu0 %4789
        %4791 = vrot.lane.b32.xlu0 %v4696, 32
        %v4792 = vpop.permute.xlu0 %4791
        %4801 = vrot.lane.b32.xlu0 %v4419, 48
        %v4802 = vpop.permute.xlu0 %4801
        %4803 = vrot.lane.b32.xlu0 %v4517, 48
        %v4804 = vpop.permute.xlu0 %4803
        %4805 = vrot.lane.b32.xlu0 %v4615, 48
        %v4806 = vpop.permute.xlu0 %4805
        %4807 = vrot.lane.b32.xlu0 %v4713, 48
        %v4808 = vpop.permute.xlu0 %4807
        %4817 = vrot.lane.b32.xlu0 %v4410, 64
        %v4818 = vpop.permute.xlu0 %4817
        %4819 = vrot.lane.b32.xlu0 %v4508, 64
        %v4820 = vpop.permute.xlu0 %4819
        %4821 = vrot.lane.b32.xlu0 %v4606, 64
        %v4822 = vpop.permute.xlu0 %4821
        %4823 = vrot.lane.b32.xlu0 %v4704, 64
        %v4824 = vpop.permute.xlu0 %4823
        %4833 = vrot.lane.b32.xlu0 %v4420, 80
        %v4834 = vpop.permute.xlu0 %4833
        %4835 = vrot.lane.b32.xlu0 %v4518, 80
        %v4836 = vpop.permute.xlu0 %4835
        %4837 = vrot.lane.b32.xlu0 %v4616, 80
        %v4838 = vpop.permute.xlu0 %4837
        %4839 = vrot.lane.b32.xlu0 %v4714, 80
        %v4840 = vpop.permute.xlu0 %4839
        %4849 = vrot.lane.b32.xlu0 %v4417, 96
        %v4850 = vpop.permute.xlu0 %4849
        %4851 = vrot.lane.b32.xlu0 %v4515, 96
        %v4852 = vpop.permute.xlu0 %4851
        %4853 = vrot.lane.b32.xlu0 %v4613, 96
        %v4854 = vpop.permute.xlu0 %4853
        %4855 = vrot.lane.b32.xlu0 %v4711, 96
        %v4856 = vpop.permute.xlu0 %4855
        %4865 = vrot.lane.b32.xlu0 %v4421, 112
        %v4866 = vpop.permute.xlu0 %4865
        %4867 = vrot.lane.b32.xlu0 %v4519, 112
        %v4868 = vpop.permute.xlu0 %4867
        %4869 = vrot.lane.b32.xlu0 %v4617, 112
        %v4870 = vpop.permute.xlu0 %4869
        %4871 = vrot.lane.b32.xlu0 %v4715, 112
        %v4872 = vpop.permute.xlu0 %4871
        %4881 = vrot.lane.b32.xlu0 %v4467, 16
        %v4882 = vpop.permute.xlu0 %4881
        %4883 = vrot.lane.b32.xlu0 %v4565, 16
        %v4884 = vpop.permute.xlu0 %4883
        %4885 = vrot.lane.b32.xlu0 %v4663, 16
        %v4886 = vpop.permute.xlu0 %4885
        %4887 = vrot.lane.b32.xlu0 %v4761, 16
        %v4888 = vpop.permute.xlu0 %4887
        %4897 = vrot.lane.b32.xlu0 %v4451, 32
        %v4898 = vpop.permute.xlu0 %4897
        %4899 = vrot.lane.b32.xlu0 %v4549, 32
        %v4900 = vpop.permute.xlu0 %4899
        %4901 = vrot.lane.b32.xlu0 %v4647, 32
        %v4902 = vpop.permute.xlu0 %4901
        %4903 = vrot.lane.b32.xlu0 %v4745, 32
        %v4904 = vpop.permute.xlu0 %4903
        %4913 = vrot.lane.b32.xlu0 %v4468, 48
        %v4914 = vpop.permute.xlu0 %4913
        %4915 = vrot.lane.b32.xlu0 %v4566, 48
        %v4916 = vpop.permute.xlu0 %4915
        %4917 = vrot.lane.b32.xlu0 %v4664, 48
        %v4918 = vpop.permute.xlu0 %4917
        %4919 = vrot.lane.b32.xlu0 %v4762, 48
        %v4920 = vpop.permute.xlu0 %4919
        %4929 = vrot.lane.b32.xlu0 %v4459, 64
        %v4930 = vpop.permute.xlu0 %4929
        %4931 = vrot.lane.b32.xlu0 %v4557, 64
        %v4932 = vpop.permute.xlu0 %4931
        %4933 = vrot.lane.b32.xlu0 %v4655, 64
        %v4934 = vpop.permute.xlu0 %4933
        %4935 = vrot.lane.b32.xlu0 %v4753, 64
        %v4936 = vpop.permute.xlu0 %4935
        %4945 = vrot.lane.b32.xlu0 %v4469, 80
        %v4946 = vpop.permute.xlu0 %4945
        %4947 = vrot.lane.b32.xlu0 %v4567, 80
        %v4948 = vpop.permute.xlu0 %4947
        %4949 = vrot.lane.b32.xlu0 %v4665, 80
        %v4950 = vpop.permute.xlu0 %4949
        %4951 = vrot.lane.b32.xlu0 %v4763, 80
        %v4952 = vpop.permute.xlu0 %4951
        %4961 = vrot.lane.b32.xlu0 %v4466, 96
        %v4962 = vpop.permute.xlu0 %4961
        %4963 = vrot.lane.b32.xlu0 %v4564, 96
        %v4964 = vpop.permute.xlu0 %4963
        %4965 = vrot.lane.b32.xlu0 %v4662, 96
        %v4966 = vpop.permute.xlu0 %4965
        %4967 = vrot.lane.b32.xlu0 %v4760, 96
        %v4968 = vpop.permute.xlu0 %4967
        %4977 = vrot.lane.b32.xlu0 %v4470, 112
        %v4978 = vpop.permute.xlu0 %4977
        %4979 = vrot.lane.b32.xlu0 %v4568, 112
        %v4980 = vpop.permute.xlu0 %4979
        %4981 = vrot.lane.b32.xlu0 %v4666, 112
        %v4982 = vpop.permute.xlu0 %4981
        %4983 = vrot.lane.b32.xlu0 %v4764, 112
        %v4984 = vpop.permute.xlu0 %4983
        %v4989 = vsel %vm784, %v4395, %v4770
        %v4990 = vsel %vm784, %v4493, %v4772
        %v4991 = vsel %vm784, %v4591, %v4774
        %v4992 = vsel %vm784, %v4689, %v4776
        %v4993 = vsel %vm789, %v4989, %v4786
        %v4994 = vsel %vm789, %v4990, %v4788
        %v4995 = vsel %vm789, %v4991, %v4790
        %v4996 = vsel %vm789, %v4992, %v4792
        %v4997 = vsel %vm794, %v4993, %v4802
        %v4998 = vsel %vm794, %v4994, %v4804
        %v4999 = vsel %vm794, %v4995, %v4806
        %v5000 = vsel %vm794, %v4996, %v4808
        %v5001 = vsel %vm799, %v4997, %v4818
        %v5002 = vsel %vm799, %v4998, %v4820
        %v5003 = vsel %vm799, %v4999, %v4822
        %v5004 = vsel %vm799, %v5000, %v4824
        %v5005 = vsel %vm804, %v5001, %v4834
        %v5006 = vsel %vm804, %v5002, %v4836
        %v5007 = vsel %vm804, %v5003, %v4838
        %v5008 = vsel %vm804, %v5004, %v4840
        %v5009 = vsel %vm809, %v5005, %v4850
        %v5010 = vsel %vm809, %v5006, %v4852
        %v5011 = vsel %vm809, %v5007, %v4854
        %v5012 = vsel %vm809, %v5008, %v4856
        %v5013 = vsel %vm814, %v5009, %v4866
        %v5014 = vsel %vm814, %v5010, %v4868
        %v5015 = vsel %vm814, %v5011, %v4870
        %v5016 = vsel %vm814, %v5012, %v4872
        %v5017 = vsel %vm784, %v4444, %v4882
        %v5018 = vsel %vm784, %v4542, %v4884
        %v5019 = vsel %vm784, %v4640, %v4886
        %v5020 = vsel %vm784, %v4738, %v4888
        %v5021 = vsel %vm789, %v5017, %v4898
        %v5022 = vsel %vm789, %v5018, %v4900
        %v5023 = vsel %vm789, %v5019, %v4902
        %v5024 = vsel %vm789, %v5020, %v4904
        %v5025 = vsel %vm794, %v5021, %v4914
        %v5026 = vsel %vm794, %v5022, %v4916
        %v5027 = vsel %vm794, %v5023, %v4918
        %v5028 = vsel %vm794, %v5024, %v4920
        %v5029 = vsel %vm799, %v5025, %v4930
        %v5030 = vsel %vm799, %v5026, %v4932
        %v5031 = vsel %vm799, %v5027, %v4934
        %v5032 = vsel %vm799, %v5028, %v4936
        %v5033 = vsel %vm804, %v5029, %v4946
        %v5034 = vsel %vm804, %v5030, %v4948
        %v5035 = vsel %vm804, %v5031, %v4950
        %v5036 = vsel %vm804, %v5032, %v4952
        %v5037 = vsel %vm809, %v5033, %v4962
        %v5038 = vsel %vm809, %v5034, %v4964
        %v5039 = vsel %vm809, %v5035, %v4966
        %v5040 = vsel %vm809, %v5036, %v4968
        %v5041 = vsel %vm814, %v5037, %v4978
        %v5042 = vsel %vm814, %v5038, %v4980
        %v5043 = vsel %vm814, %v5039, %v4982
        %v5044 = vsel %vm814, %v5040, %v4984
        %5045 = vrot.lane.b32.xlu0 %v4347, 127
        %v5046 = vpop.permute.xlu0 %5045
        %5047 = vrot.lane.b32.xlu0 %v4349, 127
        %v5048 = vpop.permute.xlu0 %5047
        %5049 = vrot.lane.b32.xlu0 %v4352, 127
        %v5050 = vpop.permute.xlu0 %5049
        %5051 = vrot.lane.b32.xlu0 %v4354, 127
        %v5052 = vpop.permute.xlu0 %5051
        %5053 = vrot.lane.b32.xlu0 %v4357, 127
        %v5054 = vpop.permute.xlu0 %5053
        %5055 = vrot.lane.b32.xlu0 %v4359, 127
        %v5056 = vpop.permute.xlu0 %5055
        %5057 = vrot.lane.b32.xlu0 %v4362, 127
        %v5058 = vpop.permute.xlu0 %5057
        %5059 = vrot.lane.b32.xlu0 %v4364, 127
        %v5060 = vpop.permute.xlu0 %5059
        %v5069 = vcombine.high %v5046, 0.0
        %v5071 = vunpack.c.l.s4 1983009808
        %v5072 = vunpack.c.0.s8 %v5071
        %v5073 = vlaneseq
        %v5074 = vshrl.u32 %v5073, 7
        %v5075 = vsub.s32 %v5072, %v5074
        %v5076 = vrot.slane %v5046, %v5075
        %v5078 = vunpack.c.l.s4 1983009808
        %v5079 = vunpack.c.0.s8 %v5078
        %v5080 = vlaneseq
        %v5081 = vshrl.u32 %v5080, 7
        %v5082 = vsub.s32 %v5079, %v5081
        %v5083 = vrot.slane %v5069, %v5082
        %v5084 = vcombine.high %v5076, 0.0
        %v5086 = vunpack.c.l.s4 1934713408
        %v5087 = vunpack.c.0.s8 %v5086
        %v5088 = vlaneseq
        %v5089 = vshrl.u32 %v5088, 7
        %v5090 = vsub.s32 %v5087, %v5089
        %v5091 = vrot.slane %v5076, %v5090
        %v5093 = vunpack.c.l.s4 1934713408
        %v5094 = vunpack.c.0.s8 %v5093
        %v5095 = vlaneseq
        %v5096 = vshrl.u32 %v5095, 7
        %v5097 = vsub.s32 %v5094, %v5096
        %v5098 = vrot.slane %v5084, %v5097
        %v5099 = vcombine.high %v5083, 0.0
        %v5101 = vunpack.c.l.s4 1934713408
        %v5102 = vunpack.c.0.s8 %v5101
        %v5103 = vlaneseq
        %v5104 = vshrl.u32 %v5103, 7
        %v5105 = vsub.s32 %v5102, %v5104
        %v5106 = vrot.slane %v5083, %v5105
        %v5108 = vunpack.c.l.s4 1934713408
        %v5109 = vunpack.c.0.s8 %v5108
        %v5110 = vlaneseq
        %v5111 = vshrl.u32 %v5110, 7
        %v5112 = vsub.s32 %v5109, %v5111
        %v5113 = vrot.slane %v5099, %v5112
        %v5114 = vcombine.high %v5091, 0.0
        %v5115 = vcombine.high %v5098, 0.0
        %v5116 = vcombine.high %v5106, 0.0
        %v5117 = vcombine.high %v5113, 0.0
        %v5118 = vcombine.high %v5048, 0.0
        %v5120 = vunpack.c.l.s4 1983009808
        %v5121 = vunpack.c.0.s8 %v5120
        %v5122 = vlaneseq
        %v5123 = vshrl.u32 %v5122, 7
        %v5124 = vsub.s32 %v5121, %v5123
        %v5125 = vrot.slane %v5048, %v5124
        %v5127 = vunpack.c.l.s4 1983009808
        %v5128 = vunpack.c.0.s8 %v5127
        %v5129 = vlaneseq
        %v5130 = vshrl.u32 %v5129, 7
        %v5131 = vsub.s32 %v5128, %v5130
        %v5132 = vrot.slane %v5118, %v5131
        %v5133 = vcombine.high %v5125, 0.0
        %v5135 = vunpack.c.l.s4 1934713408
        %v5136 = vunpack.c.0.s8 %v5135
        %v5137 = vlaneseq
        %v5138 = vshrl.u32 %v5137, 7
        %v5139 = vsub.s32 %v5136, %v5138
        %v5140 = vrot.slane %v5125, %v5139
        %v5142 = vunpack.c.l.s4 1934713408
        %v5143 = vunpack.c.0.s8 %v5142
        %v5144 = vlaneseq
        %v5145 = vshrl.u32 %v5144, 7
        %v5146 = vsub.s32 %v5143, %v5145
        %v5147 = vrot.slane %v5133, %v5146
        %v5148 = vcombine.high %v5132, 0.0
        %v5150 = vunpack.c.l.s4 1934713408
        %v5151 = vunpack.c.0.s8 %v5150
        %v5152 = vlaneseq
        %v5153 = vshrl.u32 %v5152, 7
        %v5154 = vsub.s32 %v5151, %v5153
        %v5155 = vrot.slane %v5132, %v5154
        %v5157 = vunpack.c.l.s4 1934713408
        %v5158 = vunpack.c.0.s8 %v5157
        %v5159 = vlaneseq
        %v5160 = vshrl.u32 %v5159, 7
        %v5161 = vsub.s32 %v5158, %v5160
        %v5162 = vrot.slane %v5148, %v5161
        %v5163 = vcombine.high %v5140, 0.0
        %v5164 = vcombine.high %v5147, 0.0
        %v5165 = vcombine.high %v5155, 0.0
        %v5166 = vcombine.high %v5162, 0.0
        %v5167 = vcombine.high %v5050, 0.0
        %v5169 = vunpack.c.l.s4 1983009808
        %v5170 = vunpack.c.0.s8 %v5169
        %v5171 = vlaneseq
        %v5172 = vshrl.u32 %v5171, 7
        %v5173 = vsub.s32 %v5170, %v5172
        %v5174 = vrot.slane %v5050, %v5173
        %v5176 = vunpack.c.l.s4 1983009808
        %v5177 = vunpack.c.0.s8 %v5176
        %v5178 = vlaneseq
        %v5179 = vshrl.u32 %v5178, 7
        %v5180 = vsub.s32 %v5177, %v5179
        %v5181 = vrot.slane %v5167, %v5180
        %v5182 = vcombine.high %v5174, 0.0
        %v5184 = vunpack.c.l.s4 1934713408
        %v5185 = vunpack.c.0.s8 %v5184
        %v5186 = vlaneseq
        %v5187 = vshrl.u32 %v5186, 7
        %v5188 = vsub.s32 %v5185, %v5187
        %v5189 = vrot.slane %v5174, %v5188
        %v5191 = vunpack.c.l.s4 1934713408
        %v5192 = vunpack.c.0.s8 %v5191
        %v5193 = vlaneseq
        %v5194 = vshrl.u32 %v5193, 7
        %v5195 = vsub.s32 %v5192, %v5194
        %v5196 = vrot.slane %v5182, %v5195
        %v5197 = vcombine.high %v5181, 0.0
        %v5199 = vunpack.c.l.s4 1934713408
        %v5200 = vunpack.c.0.s8 %v5199
        %v5201 = vlaneseq
        %v5202 = vshrl.u32 %v5201, 7
        %v5203 = vsub.s32 %v5200, %v5202
        %v5204 = vrot.slane %v5181, %v5203
        %v5206 = vunpack.c.l.s4 1934713408
        %v5207 = vunpack.c.0.s8 %v5206
        %v5208 = vlaneseq
        %v5209 = vshrl.u32 %v5208, 7
        %v5210 = vsub.s32 %v5207, %v5209
        %v5211 = vrot.slane %v5197, %v5210
        %v5212 = vcombine.high %v5189, 0.0
        %v5213 = vcombine.high %v5196, 0.0
        %v5214 = vcombine.high %v5204, 0.0
        %v5215 = vcombine.high %v5211, 0.0
        %v5216 = vcombine.high %v5052, 0.0
        %v5218 = vunpack.c.l.s4 1983009808
        %v5219 = vunpack.c.0.s8 %v5218
        %v5220 = vlaneseq
        %v5221 = vshrl.u32 %v5220, 7
        %v5222 = vsub.s32 %v5219, %v5221
        %v5223 = vrot.slane %v5052, %v5222
        %v5225 = vunpack.c.l.s4 1983009808
        %v5226 = vunpack.c.0.s8 %v5225
        %v5227 = vlaneseq
        %v5228 = vshrl.u32 %v5227, 7
        %v5229 = vsub.s32 %v5226, %v5228
        %v5230 = vrot.slane %v5216, %v5229
        %v5231 = vcombine.high %v5223, 0.0
        %v5233 = vunpack.c.l.s4 1934713408
        %v5234 = vunpack.c.0.s8 %v5233
        %v5235 = vlaneseq
        %v5236 = vshrl.u32 %v5235, 7
        %v5237 = vsub.s32 %v5234, %v5236
        %v5238 = vrot.slane %v5223, %v5237
        %v5240 = vunpack.c.l.s4 1934713408
        %v5241 = vunpack.c.0.s8 %v5240
        %v5242 = vlaneseq
        %v5243 = vshrl.u32 %v5242, 7
        %v5244 = vsub.s32 %v5241, %v5243
        %v5245 = vrot.slane %v5231, %v5244
        %v5246 = vcombine.high %v5230, 0.0
        %v5248 = vunpack.c.l.s4 1934713408
        %v5249 = vunpack.c.0.s8 %v5248
        %v5250 = vlaneseq
        %v5251 = vshrl.u32 %v5250, 7
        %v5252 = vsub.s32 %v5249, %v5251
        %v5253 = vrot.slane %v5230, %v5252
        %v5255 = vunpack.c.l.s4 1934713408
        %v5256 = vunpack.c.0.s8 %v5255
        %v5257 = vlaneseq
        %v5258 = vshrl.u32 %v5257, 7
        %v5259 = vsub.s32 %v5256, %v5258
        %v5260 = vrot.slane %v5246, %v5259
        %v5261 = vcombine.high %v5238, 0.0
        %v5262 = vcombine.high %v5245, 0.0
        %v5263 = vcombine.high %v5253, 0.0
        %v5264 = vcombine.high %v5260, 0.0
        %v5265 = vcombine.high %v5054, 0.0
        %v5267 = vunpack.c.l.s4 1983009808
        %v5268 = vunpack.c.0.s8 %v5267
        %v5269 = vlaneseq
        %v5270 = vshrl.u32 %v5269, 7
        %v5271 = vsub.s32 %v5268, %v5270
        %v5272 = vrot.slane %v5054, %v5271
        %v5274 = vunpack.c.l.s4 1983009808
        %v5275 = vunpack.c.0.s8 %v5274
        %v5276 = vlaneseq
        %v5277 = vshrl.u32 %v5276, 7
        %v5278 = vsub.s32 %v5275, %v5277
        %v5279 = vrot.slane %v5265, %v5278
        %v5280 = vcombine.high %v5272, 0.0
        %v5282 = vunpack.c.l.s4 1934713408
        %v5283 = vunpack.c.0.s8 %v5282
        %v5284 = vlaneseq
        %v5285 = vshrl.u32 %v5284, 7
        %v5286 = vsub.s32 %v5283, %v5285
        %v5287 = vrot.slane %v5272, %v5286
        %v5289 = vunpack.c.l.s4 1934713408
        %v5290 = vunpack.c.0.s8 %v5289
        %v5291 = vlaneseq
        %v5292 = vshrl.u32 %v5291, 7
        %v5293 = vsub.s32 %v5290, %v5292
        %v5294 = vrot.slane %v5280, %v5293
        %v5295 = vcombine.high %v5279, 0.0
        %v5297 = vunpack.c.l.s4 1934713408
        %v5298 = vunpack.c.0.s8 %v5297
        %v5299 = vlaneseq
        %v5300 = vshrl.u32 %v5299, 7
        %v5301 = vsub.s32 %v5298, %v5300
        %v5302 = vrot.slane %v5279, %v5301
        %v5304 = vunpack.c.l.s4 1934713408
        %v5305 = vunpack.c.0.s8 %v5304
        %v5306 = vlaneseq
        %v5307 = vshrl.u32 %v5306, 7
        %v5308 = vsub.s32 %v5305, %v5307
        %v5309 = vrot.slane %v5295, %v5308
        %v5310 = vcombine.high %v5287, 0.0
        %v5311 = vcombine.high %v5294, 0.0
        %v5312 = vcombine.high %v5302, 0.0
        %v5313 = vcombine.high %v5309, 0.0
        %v5314 = vcombine.high %v5056, 0.0
        %v5316 = vunpack.c.l.s4 1983009808
        %v5317 = vunpack.c.0.s8 %v5316
        %v5318 = vlaneseq
        %v5319 = vshrl.u32 %v5318, 7
        %v5320 = vsub.s32 %v5317, %v5319
        %v5321 = vrot.slane %v5056, %v5320
        %v5323 = vunpack.c.l.s4 1983009808
        %v5324 = vunpack.c.0.s8 %v5323
        %v5325 = vlaneseq
        %v5326 = vshrl.u32 %v5325, 7
        %v5327 = vsub.s32 %v5324, %v5326
        %v5328 = vrot.slane %v5314, %v5327
        %v5329 = vcombine.high %v5321, 0.0
        %v5331 = vunpack.c.l.s4 1934713408
        %v5332 = vunpack.c.0.s8 %v5331
        %v5333 = vlaneseq
        %v5334 = vshrl.u32 %v5333, 7
        %v5335 = vsub.s32 %v5332, %v5334
        %v5336 = vrot.slane %v5321, %v5335
        %v5338 = vunpack.c.l.s4 1934713408
        %v5339 = vunpack.c.0.s8 %v5338
        %v5340 = vlaneseq
        %v5341 = vshrl.u32 %v5340, 7
        %v5342 = vsub.s32 %v5339, %v5341
        %v5343 = vrot.slane %v5329, %v5342
        %v5344 = vcombine.high %v5328, 0.0
        %v5346 = vunpack.c.l.s4 1934713408
        %v5347 = vunpack.c.0.s8 %v5346
        %v5348 = vlaneseq
        %v5349 = vshrl.u32 %v5348, 7
        %v5350 = vsub.s32 %v5347, %v5349
        %v5351 = vrot.slane %v5328, %v5350
        %v5353 = vunpack.c.l.s4 1934713408
        %v5354 = vunpack.c.0.s8 %v5353
        %v5355 = vlaneseq
        %v5356 = vshrl.u32 %v5355, 7
        %v5357 = vsub.s32 %v5354, %v5356
        %v5358 = vrot.slane %v5344, %v5357
        %v5359 = vcombine.high %v5336, 0.0
        %v5360 = vcombine.high %v5343, 0.0
        %v5361 = vcombine.high %v5351, 0.0
        %v5362 = vcombine.high %v5358, 0.0
        %v5363 = vcombine.high %v5058, 0.0
        %v5365 = vunpack.c.l.s4 1983009808
        %v5366 = vunpack.c.0.s8 %v5365
        %v5367 = vlaneseq
        %v5368 = vshrl.u32 %v5367, 7
        %v5369 = vsub.s32 %v5366, %v5368
        %v5370 = vrot.slane %v5058, %v5369
        %v5372 = vunpack.c.l.s4 1983009808
        %v5373 = vunpack.c.0.s8 %v5372
        %v5374 = vlaneseq
        %v5375 = vshrl.u32 %v5374, 7
        %v5376 = vsub.s32 %v5373, %v5375
        %v5377 = vrot.slane %v5363, %v5376
        %v5378 = vcombine.high %v5370, 0.0
        %v5380 = vunpack.c.l.s4 1934713408
        %v5381 = vunpack.c.0.s8 %v5380
        %v5382 = vlaneseq
        %v5383 = vshrl.u32 %v5382, 7
        %v5384 = vsub.s32 %v5381, %v5383
        %v5385 = vrot.slane %v5370, %v5384
        %v5387 = vunpack.c.l.s4 1934713408
        %v5388 = vunpack.c.0.s8 %v5387
        %v5389 = vlaneseq
        %v5390 = vshrl.u32 %v5389, 7
        %v5391 = vsub.s32 %v5388, %v5390
        %v5392 = vrot.slane %v5378, %v5391
        %v5393 = vcombine.high %v5377, 0.0
        %v5395 = vunpack.c.l.s4 1934713408
        %v5396 = vunpack.c.0.s8 %v5395
        %v5397 = vlaneseq
        %v5398 = vshrl.u32 %v5397, 7
        %v5399 = vsub.s32 %v5396, %v5398
        %v5400 = vrot.slane %v5377, %v5399
        %v5402 = vunpack.c.l.s4 1934713408
        %v5403 = vunpack.c.0.s8 %v5402
        %v5404 = vlaneseq
        %v5405 = vshrl.u32 %v5404, 7
        %v5406 = vsub.s32 %v5403, %v5405
        %v5407 = vrot.slane %v5393, %v5406
        %v5408 = vcombine.high %v5385, 0.0
        %v5409 = vcombine.high %v5392, 0.0
        %v5410 = vcombine.high %v5400, 0.0
        %v5411 = vcombine.high %v5407, 0.0
        %v5412 = vcombine.high %v5060, 0.0
        %v5414 = vunpack.c.l.s4 1983009808
        %v5415 = vunpack.c.0.s8 %v5414
        %v5416 = vlaneseq
        %v5417 = vshrl.u32 %v5416, 7
        %v5418 = vsub.s32 %v5415, %v5417
        %v5419 = vrot.slane %v5060, %v5418
        %v5421 = vunpack.c.l.s4 1983009808
        %v5422 = vunpack.c.0.s8 %v5421
        %v5423 = vlaneseq
        %v5424 = vshrl.u32 %v5423, 7
        %v5425 = vsub.s32 %v5422, %v5424
        %v5426 = vrot.slane %v5412, %v5425
        %v5427 = vcombine.high %v5419, 0.0
        %v5429 = vunpack.c.l.s4 1934713408
        %v5430 = vunpack.c.0.s8 %v5429
        %v5431 = vlaneseq
        %v5432 = vshrl.u32 %v5431, 7
        %v5433 = vsub.s32 %v5430, %v5432
        %v5434 = vrot.slane %v5419, %v5433
        %v5436 = vunpack.c.l.s4 1934713408
        %v5437 = vunpack.c.0.s8 %v5436
        %v5438 = vlaneseq
        %v5439 = vshrl.u32 %v5438, 7
        %v5440 = vsub.s32 %v5437, %v5439
        %v5441 = vrot.slane %v5427, %v5440
        %v5442 = vcombine.high %v5426, 0.0
        %v5444 = vunpack.c.l.s4 1934713408
        %v5445 = vunpack.c.0.s8 %v5444
        %v5446 = vlaneseq
        %v5447 = vshrl.u32 %v5446, 7
        %v5448 = vsub.s32 %v5445, %v5447
        %v5449 = vrot.slane %v5426, %v5448
        %v5451 = vunpack.c.l.s4 1934713408
        %v5452 = vunpack.c.0.s8 %v5451
        %v5453 = vlaneseq
        %v5454 = vshrl.u32 %v5453, 7
        %v5455 = vsub.s32 %v5452, %v5454
        %v5456 = vrot.slane %v5442, %v5455
        %v5457 = vcombine.high %v5434, 0.0
        %v5458 = vcombine.high %v5441, 0.0
        %v5459 = vcombine.high %v5449, 0.0
        %v5460 = vcombine.high %v5456, 0.0
        %5465 = vrot.lane.b32.xlu0 %v5114, 16
        %v5466 = vpop.permute.xlu0 %5465
        %5467 = vrot.lane.b32.xlu0 %v5212, 16
        %v5468 = vpop.permute.xlu0 %5467
        %5469 = vrot.lane.b32.xlu0 %v5310, 16
        %v5470 = vpop.permute.xlu0 %5469
        %5471 = vrot.lane.b32.xlu0 %v5408, 16
        %v5472 = vpop.permute.xlu0 %5471
        %5481 = vrot.lane.b32.xlu0 %v5098, 32
        %v5482 = vpop.permute.xlu0 %5481
        %5483 = vrot.lane.b32.xlu0 %v5196, 32
        %v5484 = vpop.permute.xlu0 %5483
        %5485 = vrot.lane.b32.xlu0 %v5294, 32
        %v5486 = vpop.permute.xlu0 %5485
        %5487 = vrot.lane.b32.xlu0 %v5392, 32
        %v5488 = vpop.permute.xlu0 %5487
        %5497 = vrot.lane.b32.xlu0 %v5115, 48
        %v5498 = vpop.permute.xlu0 %5497
        %5499 = vrot.lane.b32.xlu0 %v5213, 48
        %v5500 = vpop.permute.xlu0 %5499
        %5501 = vrot.lane.b32.xlu0 %v5311, 48
        %v5502 = vpop.permute.xlu0 %5501
        %5503 = vrot.lane.b32.xlu0 %v5409, 48
        %v5504 = vpop.permute.xlu0 %5503
        %5513 = vrot.lane.b32.xlu0 %v5106, 64
        %v5514 = vpop.permute.xlu0 %5513
        %5515 = vrot.lane.b32.xlu0 %v5204, 64
        %v5516 = vpop.permute.xlu0 %5515
        %5517 = vrot.lane.b32.xlu0 %v5302, 64
        %v5518 = vpop.permute.xlu0 %5517
        %5519 = vrot.lane.b32.xlu0 %v5400, 64
        %v5520 = vpop.permute.xlu0 %5519
        %5529 = vrot.lane.b32.xlu0 %v5116, 80
        %v5530 = vpop.permute.xlu0 %5529
        %5531 = vrot.lane.b32.xlu0 %v5214, 80
        %v5532 = vpop.permute.xlu0 %5531
        %5533 = vrot.lane.b32.xlu0 %v5312, 80
        %v5534 = vpop.permute.xlu0 %5533
        %5535 = vrot.lane.b32.xlu0 %v5410, 80
        %v5536 = vpop.permute.xlu0 %5535
        %5545 = vrot.lane.b32.xlu0 %v5113, 96
        %v5546 = vpop.permute.xlu0 %5545
        %5547 = vrot.lane.b32.xlu0 %v5211, 96
        %v5548 = vpop.permute.xlu0 %5547
        %5549 = vrot.lane.b32.xlu0 %v5309, 96
        %v5550 = vpop.permute.xlu0 %5549
        %5551 = vrot.lane.b32.xlu0 %v5407, 96
        %v5552 = vpop.permute.xlu0 %5551
        %5561 = vrot.lane.b32.xlu0 %v5117, 112
        %v5562 = vpop.permute.xlu0 %5561
        %5563 = vrot.lane.b32.xlu0 %v5215, 112
        %v5564 = vpop.permute.xlu0 %5563
        %5565 = vrot.lane.b32.xlu0 %v5313, 112
        %v5566 = vpop.permute.xlu0 %5565
        %5567 = vrot.lane.b32.xlu0 %v5411, 112
        %v5568 = vpop.permute.xlu0 %5567
        %5577 = vrot.lane.b32.xlu0 %v5163, 16
        %v5578 = vpop.permute.xlu0 %5577
        %5579 = vrot.lane.b32.xlu0 %v5261, 16
        %v5580 = vpop.permute.xlu0 %5579
        %5581 = vrot.lane.b32.xlu0 %v5359, 16
        %v5582 = vpop.permute.xlu0 %5581
        %5583 = vrot.lane.b32.xlu0 %v5457, 16
        %v5584 = vpop.permute.xlu0 %5583
        %5593 = vrot.lane.b32.xlu0 %v5147, 32
        %v5594 = vpop.permute.xlu0 %5593
        %5595 = vrot.lane.b32.xlu0 %v5245, 32
        %v5596 = vpop.permute.xlu0 %5595
        %5597 = vrot.lane.b32.xlu0 %v5343, 32
        %v5598 = vpop.permute.xlu0 %5597
        %5599 = vrot.lane.b32.xlu0 %v5441, 32
        %v5600 = vpop.permute.xlu0 %5599
        %5609 = vrot.lane.b32.xlu0 %v5164, 48
        %v5610 = vpop.permute.xlu0 %5609
        %5611 = vrot.lane.b32.xlu0 %v5262, 48
        %v5612 = vpop.permute.xlu0 %5611
        %5613 = vrot.lane.b32.xlu0 %v5360, 48
        %v5614 = vpop.permute.xlu0 %5613
        %5615 = vrot.lane.b32.xlu0 %v5458, 48
        %v5616 = vpop.permute.xlu0 %5615
        %5625 = vrot.lane.b32.xlu0 %v5155, 64
        %v5626 = vpop.permute.xlu0 %5625
        %5627 = vrot.lane.b32.xlu0 %v5253, 64
        %v5628 = vpop.permute.xlu0 %5627
        %5629 = vrot.lane.b32.xlu0 %v5351, 64
        %v5630 = vpop.permute.xlu0 %5629
        %5631 = vrot.lane.b32.xlu0 %v5449, 64
        %v5632 = vpop.permute.xlu0 %5631
        %5641 = vrot.lane.b32.xlu0 %v5165, 80
        %v5642 = vpop.permute.xlu0 %5641
        %5643 = vrot.lane.b32.xlu0 %v5263, 80
        %v5644 = vpop.permute.xlu0 %5643
        %5645 = vrot.lane.b32.xlu0 %v5361, 80
        %v5646 = vpop.permute.xlu0 %5645
        %5647 = vrot.lane.b32.xlu0 %v5459, 80
        %v5648 = vpop.permute.xlu0 %5647
        %5657 = vrot.lane.b32.xlu0 %v5162, 96
        %v5658 = vpop.permute.xlu0 %5657
        %5659 = vrot.lane.b32.xlu0 %v5260, 96
        %v5660 = vpop.permute.xlu0 %5659
        %5661 = vrot.lane.b32.xlu0 %v5358, 96
        %v5662 = vpop.permute.xlu0 %5661
        %5663 = vrot.lane.b32.xlu0 %v5456, 96
        %v5664 = vpop.permute.xlu0 %5663
        %5673 = vrot.lane.b32.xlu0 %v5166, 112
        %v5674 = vpop.permute.xlu0 %5673
        %5675 = vrot.lane.b32.xlu0 %v5264, 112
        %v5676 = vpop.permute.xlu0 %5675
        %5677 = vrot.lane.b32.xlu0 %v5362, 112
        %v5678 = vpop.permute.xlu0 %5677
        %5679 = vrot.lane.b32.xlu0 %v5460, 112
        %v5680 = vpop.permute.xlu0 %5679
        %v5685 = vsel %vm784, %v5091, %v5466
        %v5686 = vsel %vm784, %v5189, %v5468
        %v5687 = vsel %vm784, %v5287, %v5470
        %v5688 = vsel %vm784, %v5385, %v5472
        %v5689 = vsel %vm789, %v5685, %v5482
        %v5690 = vsel %vm789, %v5686, %v5484
        %v5691 = vsel %vm789, %v5687, %v5486
        %v5692 = vsel %vm789, %v5688, %v5488
        %v5693 = vsel %vm794, %v5689, %v5498
        %v5694 = vsel %vm794, %v5690, %v5500
        %v5695 = vsel %vm794, %v5691, %v5502
        %v5696 = vsel %vm794, %v5692, %v5504
        %v5697 = vsel %vm799, %v5693, %v5514
        %v5698 = vsel %vm799, %v5694, %v5516
        %v5699 = vsel %vm799, %v5695, %v5518
        %v5700 = vsel %vm799, %v5696, %v5520
        %v5701 = vsel %vm804, %v5697, %v5530
        %v5702 = vsel %vm804, %v5698, %v5532
        %v5703 = vsel %vm804, %v5699, %v5534
        %v5704 = vsel %vm804, %v5700, %v5536
        %v5705 = vsel %vm809, %v5701, %v5546
        %v5706 = vsel %vm809, %v5702, %v5548
        %v5707 = vsel %vm809, %v5703, %v5550
        %v5708 = vsel %vm809, %v5704, %v5552
        %v5709 = vsel %vm814, %v5705, %v5562
        %v5710 = vsel %vm814, %v5706, %v5564
        %v5711 = vsel %vm814, %v5707, %v5566
        %v5712 = vsel %vm814, %v5708, %v5568
        %v5713 = vsel %vm784, %v5140, %v5578
        %v5714 = vsel %vm784, %v5238, %v5580
        %v5715 = vsel %vm784, %v5336, %v5582
        %v5716 = vsel %vm784, %v5434, %v5584
        %v5717 = vsel %vm789, %v5713, %v5594
        %v5718 = vsel %vm789, %v5714, %v5596
        %v5719 = vsel %vm789, %v5715, %v5598
        %v5720 = vsel %vm789, %v5716, %v5600
        %v5721 = vsel %vm794, %v5717, %v5610
        %v5722 = vsel %vm794, %v5718, %v5612
        %v5723 = vsel %vm794, %v5719, %v5614
        %v5724 = vsel %vm794, %v5720, %v5616
        %v5725 = vsel %vm799, %v5721, %v5626
        %v5726 = vsel %vm799, %v5722, %v5628
        %v5727 = vsel %vm799, %v5723, %v5630
        %v5728 = vsel %vm799, %v5724, %v5632
        %v5729 = vsel %vm804, %v5725, %v5642
        %v5730 = vsel %vm804, %v5726, %v5644
        %v5731 = vsel %vm804, %v5727, %v5646
        %v5732 = vsel %vm804, %v5728, %v5648
        %v5733 = vsel %vm809, %v5729, %v5658
        %v5734 = vsel %vm809, %v5730, %v5660
        %v5735 = vsel %vm809, %v5731, %v5662
        %v5736 = vsel %vm809, %v5732, %v5664
        %v5737 = vsel %vm814, %v5733, %v5674
        %v5738 = vsel %vm814, %v5734, %v5676
        %v5739 = vsel %vm814, %v5735, %v5678
        %v5740 = vsel %vm814, %v5736, %v5680
        %5741 = vrot.lane.b32.xlu0 %v4347, 126
        %v5742 = vpop.permute.xlu0 %5741
        %5743 = vrot.lane.b32.xlu0 %v4349, 126
        %v5744 = vpop.permute.xlu0 %5743
        %5745 = vrot.lane.b32.xlu0 %v4352, 126
        %v5746 = vpop.permute.xlu0 %5745
        %5747 = vrot.lane.b32.xlu0 %v4354, 126
        %v5748 = vpop.permute.xlu0 %5747
        %5749 = vrot.lane.b32.xlu0 %v4357, 126
        %v5750 = vpop.permute.xlu0 %5749
        %5751 = vrot.lane.b32.xlu0 %v4359, 126
        %v5752 = vpop.permute.xlu0 %5751
        %5753 = vrot.lane.b32.xlu0 %v4362, 126
        %v5754 = vpop.permute.xlu0 %5753
        %5755 = vrot.lane.b32.xlu0 %v4364, 126
        %v5756 = vpop.permute.xlu0 %5755
        %v5765 = vcombine.high %v5742, 0.0
        %v5767 = vunpack.c.l.s4 1983009808
        %v5768 = vunpack.c.0.s8 %v5767
        %v5769 = vlaneseq
        %v5770 = vshrl.u32 %v5769, 7
        %v5771 = vsub.s32 %v5768, %v5770
        %v5772 = vrot.slane %v5742, %v5771
        %v5774 = vunpack.c.l.s4 1983009808
        %v5775 = vunpack.c.0.s8 %v5774
        %v5776 = vlaneseq
        %v5777 = vshrl.u32 %v5776, 7
        %v5778 = vsub.s32 %v5775, %v5777
        %v5779 = vrot.slane %v5765, %v5778
        %v5780 = vcombine.high %v5772, 0.0
        %v5782 = vunpack.c.l.s4 1934713408
        %v5783 = vunpack.c.0.s8 %v5782
        %v5784 = vlaneseq
        %v5785 = vshrl.u32 %v5784, 7
        %v5786 = vsub.s32 %v5783, %v5785
        %v5787 = vrot.slane %v5772, %v5786
        %v5789 = vunpack.c.l.s4 1934713408
        %v5790 = vunpack.c.0.s8 %v5789
        %v5791 = vlaneseq
        %v5792 = vshrl.u32 %v5791, 7
        %v5793 = vsub.s32 %v5790, %v5792
        %v5794 = vrot.slane %v5780, %v5793
        %v5795 = vcombine.high %v5779, 0.0
        %v5797 = vunpack.c.l.s4 1934713408
        %v5798 = vunpack.c.0.s8 %v5797
        %v5799 = vlaneseq
        %v5800 = vshrl.u32 %v5799, 7
        %v5801 = vsub.s32 %v5798, %v5800
        %v5802 = vrot.slane %v5779, %v5801
        %v5804 = vunpack.c.l.s4 1934713408
        %v5805 = vunpack.c.0.s8 %v5804
        %v5806 = vlaneseq
        %v5807 = vshrl.u32 %v5806, 7
        %v5808 = vsub.s32 %v5805, %v5807
        %v5809 = vrot.slane %v5795, %v5808
        %v5810 = vcombine.high %v5787, 0.0
        %v5811 = vcombine.high %v5794, 0.0
        %v5812 = vcombine.high %v5802, 0.0
        %v5813 = vcombine.high %v5809, 0.0
        %v5814 = vcombine.high %v5744, 0.0
        %v5816 = vunpack.c.l.s4 1983009808
        %v5817 = vunpack.c.0.s8 %v5816
        %v5818 = vlaneseq
        %v5819 = vshrl.u32 %v5818, 7
        %v5820 = vsub.s32 %v5817, %v5819
        %v5821 = vrot.slane %v5744, %v5820
        %v5823 = vunpack.c.l.s4 1983009808
        %v5824 = vunpack.c.0.s8 %v5823
        %v5825 = vlaneseq
        %v5826 = vshrl.u32 %v5825, 7
        %v5827 = vsub.s32 %v5824, %v5826
        %v5828 = vrot.slane %v5814, %v5827
        %v5829 = vcombine.high %v5821, 0.0
        %v5831 = vunpack.c.l.s4 1934713408
        %v5832 = vunpack.c.0.s8 %v5831
        %v5833 = vlaneseq
        %v5834 = vshrl.u32 %v5833, 7
        %v5835 = vsub.s32 %v5832, %v5834
        %v5836 = vrot.slane %v5821, %v5835
        %v5838 = vunpack.c.l.s4 1934713408
        %v5839 = vunpack.c.0.s8 %v5838
        %v5840 = vlaneseq
        %v5841 = vshrl.u32 %v5840, 7
        %v5842 = vsub.s32 %v5839, %v5841
        %v5843 = vrot.slane %v5829, %v5842
        %v5844 = vcombine.high %v5828, 0.0
        %v5846 = vunpack.c.l.s4 1934713408
        %v5847 = vunpack.c.0.s8 %v5846
        %v5848 = vlaneseq
        %v5849 = vshrl.u32 %v5848, 7
        %v5850 = vsub.s32 %v5847, %v5849
        %v5851 = vrot.slane %v5828, %v5850
        %v5853 = vunpack.c.l.s4 1934713408
        %v5854 = vunpack.c.0.s8 %v5853
        %v5855 = vlaneseq
        %v5856 = vshrl.u32 %v5855, 7
        %v5857 = vsub.s32 %v5854, %v5856
        %v5858 = vrot.slane %v5844, %v5857
        %v5859 = vcombine.high %v5836, 0.0
        %v5860 = vcombine.high %v5843, 0.0
        %v5861 = vcombine.high %v5851, 0.0
        %v5862 = vcombine.high %v5858, 0.0
        %v5863 = vcombine.high %v5746, 0.0
        %v5865 = vunpack.c.l.s4 1983009808
        %v5866 = vunpack.c.0.s8 %v5865
        %v5867 = vlaneseq
        %v5868 = vshrl.u32 %v5867, 7
        %v5869 = vsub.s32 %v5866, %v5868
        %v5870 = vrot.slane %v5746, %v5869
        %v5872 = vunpack.c.l.s4 1983009808
        %v5873 = vunpack.c.0.s8 %v5872
        %v5874 = vlaneseq
        %v5875 = vshrl.u32 %v5874, 7
        %v5876 = vsub.s32 %v5873, %v5875
        %v5877 = vrot.slane %v5863, %v5876
        %v5878 = vcombine.high %v5870, 0.0
        %v5880 = vunpack.c.l.s4 1934713408
        %v5881 = vunpack.c.0.s8 %v5880
        %v5882 = vlaneseq
        %v5883 = vshrl.u32 %v5882, 7
        %v5884 = vsub.s32 %v5881, %v5883
        %v5885 = vrot.slane %v5870, %v5884
        %v5887 = vunpack.c.l.s4 1934713408
        %v5888 = vunpack.c.0.s8 %v5887
        %v5889 = vlaneseq
        %v5890 = vshrl.u32 %v5889, 7
        %v5891 = vsub.s32 %v5888, %v5890
        %v5892 = vrot.slane %v5878, %v5891
        %v5893 = vcombine.high %v5877, 0.0
        %v5895 = vunpack.c.l.s4 1934713408
        %v5896 = vunpack.c.0.s8 %v5895
        %v5897 = vlaneseq
        %v5898 = vshrl.u32 %v5897, 7
        %v5899 = vsub.s32 %v5896, %v5898
        %v5900 = vrot.slane %v5877, %v5899
        %v5902 = vunpack.c.l.s4 1934713408
        %v5903 = vunpack.c.0.s8 %v5902
        %v5904 = vlaneseq
        %v5905 = vshrl.u32 %v5904, 7
        %v5906 = vsub.s32 %v5903, %v5905
        %v5907 = vrot.slane %v5893, %v5906
        %v5908 = vcombine.high %v5885, 0.0
        %v5909 = vcombine.high %v5892, 0.0
        %v5910 = vcombine.high %v5900, 0.0
        %v5911 = vcombine.high %v5907, 0.0
        %v5912 = vcombine.high %v5748, 0.0
        %v5914 = vunpack.c.l.s4 1983009808
        %v5915 = vunpack.c.0.s8 %v5914
        %v5916 = vlaneseq
        %v5917 = vshrl.u32 %v5916, 7
        %v5918 = vsub.s32 %v5915, %v5917
        %v5919 = vrot.slane %v5748, %v5918
        %v5921 = vunpack.c.l.s4 1983009808
        %v5922 = vunpack.c.0.s8 %v5921
        %v5923 = vlaneseq
        %v5924 = vshrl.u32 %v5923, 7
        %v5925 = vsub.s32 %v5922, %v5924
        %v5926 = vrot.slane %v5912, %v5925
        %v5927 = vcombine.high %v5919, 0.0
        %v5929 = vunpack.c.l.s4 1934713408
        %v5930 = vunpack.c.0.s8 %v5929
        %v5931 = vlaneseq
        %v5932 = vshrl.u32 %v5931, 7
        %v5933 = vsub.s32 %v5930, %v5932
        %v5934 = vrot.slane %v5919, %v5933
        %v5936 = vunpack.c.l.s4 1934713408
        %v5937 = vunpack.c.0.s8 %v5936
        %v5938 = vlaneseq
        %v5939 = vshrl.u32 %v5938, 7
        %v5940 = vsub.s32 %v5937, %v5939
        %v5941 = vrot.slane %v5927, %v5940
        %v5942 = vcombine.high %v5926, 0.0
        %v5944 = vunpack.c.l.s4 1934713408
        %v5945 = vunpack.c.0.s8 %v5944
        %v5946 = vlaneseq
        %v5947 = vshrl.u32 %v5946, 7
        %v5948 = vsub.s32 %v5945, %v5947
        %v5949 = vrot.slane %v5926, %v5948
        %v5951 = vunpack.c.l.s4 1934713408
        %v5952 = vunpack.c.0.s8 %v5951
        %v5953 = vlaneseq
        %v5954 = vshrl.u32 %v5953, 7
        %v5955 = vsub.s32 %v5952, %v5954
        %v5956 = vrot.slane %v5942, %v5955
        %v5957 = vcombine.high %v5934, 0.0
        %v5958 = vcombine.high %v5941, 0.0
        %v5959 = vcombine.high %v5949, 0.0
        %v5960 = vcombine.high %v5956, 0.0
        %v5961 = vcombine.high %v5750, 0.0
        %v5963 = vunpack.c.l.s4 1983009808
        %v5964 = vunpack.c.0.s8 %v5963
        %v5965 = vlaneseq
        %v5966 = vshrl.u32 %v5965, 7
        %v5967 = vsub.s32 %v5964, %v5966
        %v5968 = vrot.slane %v5750, %v5967
        %v5970 = vunpack.c.l.s4 1983009808
        %v5971 = vunpack.c.0.s8 %v5970
        %v5972 = vlaneseq
        %v5973 = vshrl.u32 %v5972, 7
        %v5974 = vsub.s32 %v5971, %v5973
        %v5975 = vrot.slane %v5961, %v5974
        %v5976 = vcombine.high %v5968, 0.0
        %v5978 = vunpack.c.l.s4 1934713408
        %v5979 = vunpack.c.0.s8 %v5978
        %v5980 = vlaneseq
        %v5981 = vshrl.u32 %v5980, 7
        %v5982 = vsub.s32 %v5979, %v5981
        %v5983 = vrot.slane %v5968, %v5982
        %v5985 = vunpack.c.l.s4 1934713408
        %v5986 = vunpack.c.0.s8 %v5985
        %v5987 = vlaneseq
        %v5988 = vshrl.u32 %v5987, 7
        %v5989 = vsub.s32 %v5986, %v5988
        %v5990 = vrot.slane %v5976, %v5989
        %v5991 = vcombine.high %v5975, 0.0
        %v5993 = vunpack.c.l.s4 1934713408
        %v5994 = vunpack.c.0.s8 %v5993
        %v5995 = vlaneseq
        %v5996 = vshrl.u32 %v5995, 7
        %v5997 = vsub.s32 %v5994, %v5996
        %v5998 = vrot.slane %v5975, %v5997
        %v6000 = vunpack.c.l.s4 1934713408
        %v6001 = vunpack.c.0.s8 %v6000
        %v6002 = vlaneseq
        %v6003 = vshrl.u32 %v6002, 7
        %v6004 = vsub.s32 %v6001, %v6003
        %v6005 = vrot.slane %v5991, %v6004
        %v6006 = vcombine.high %v5983, 0.0
        %v6007 = vcombine.high %v5990, 0.0
        %v6008 = vcombine.high %v5998, 0.0
        %v6009 = vcombine.high %v6005, 0.0
        %v6010 = vcombine.high %v5752, 0.0
        %v6012 = vunpack.c.l.s4 1983009808
        %v6013 = vunpack.c.0.s8 %v6012
        %v6014 = vlaneseq
        %v6015 = vshrl.u32 %v6014, 7
        %v6016 = vsub.s32 %v6013, %v6015
        %v6017 = vrot.slane %v5752, %v6016
        %v6019 = vunpack.c.l.s4 1983009808
        %v6020 = vunpack.c.0.s8 %v6019
        %v6021 = vlaneseq
        %v6022 = vshrl.u32 %v6021, 7
        %v6023 = vsub.s32 %v6020, %v6022
        %v6024 = vrot.slane %v6010, %v6023
        %v6025 = vcombine.high %v6017, 0.0
        %v6027 = vunpack.c.l.s4 1934713408
        %v6028 = vunpack.c.0.s8 %v6027
        %v6029 = vlaneseq
        %v6030 = vshrl.u32 %v6029, 7
        %v6031 = vsub.s32 %v6028, %v6030
        %v6032 = vrot.slane %v6017, %v6031
        %v6034 = vunpack.c.l.s4 1934713408
        %v6035 = vunpack.c.0.s8 %v6034
        %v6036 = vlaneseq
        %v6037 = vshrl.u32 %v6036, 7
        %v6038 = vsub.s32 %v6035, %v6037
        %v6039 = vrot.slane %v6025, %v6038
        %v6040 = vcombine.high %v6024, 0.0
        %v6042 = vunpack.c.l.s4 1934713408
        %v6043 = vunpack.c.0.s8 %v6042
        %v6044 = vlaneseq
        %v6045 = vshrl.u32 %v6044, 7
        %v6046 = vsub.s32 %v6043, %v6045
        %v6047 = vrot.slane %v6024, %v6046
        %v6049 = vunpack.c.l.s4 1934713408
        %v6050 = vunpack.c.0.s8 %v6049
        %v6051 = vlaneseq
        %v6052 = vshrl.u32 %v6051, 7
        %v6053 = vsub.s32 %v6050, %v6052
        %v6054 = vrot.slane %v6040, %v6053
        %v6055 = vcombine.high %v6032, 0.0
        %v6056 = vcombine.high %v6039, 0.0
        %v6057 = vcombine.high %v6047, 0.0
        %v6058 = vcombine.high %v6054, 0.0
        %v6059 = vcombine.high %v5754, 0.0
        %v6061 = vunpack.c.l.s4 1983009808
        %v6062 = vunpack.c.0.s8 %v6061
        %v6063 = vlaneseq
        %v6064 = vshrl.u32 %v6063, 7
        %v6065 = vsub.s32 %v6062, %v6064
        %v6066 = vrot.slane %v5754, %v6065
        %v6068 = vunpack.c.l.s4 1983009808
        %v6069 = vunpack.c.0.s8 %v6068
        %v6070 = vlaneseq
        %v6071 = vshrl.u32 %v6070, 7
        %v6072 = vsub.s32 %v6069, %v6071
        %v6073 = vrot.slane %v6059, %v6072
        %v6074 = vcombine.high %v6066, 0.0
        %v6076 = vunpack.c.l.s4 1934713408
        %v6077 = vunpack.c.0.s8 %v6076
        %v6078 = vlaneseq
        %v6079 = vshrl.u32 %v6078, 7
        %v6080 = vsub.s32 %v6077, %v6079
        %v6081 = vrot.slane %v6066, %v6080
        %v6083 = vunpack.c.l.s4 1934713408
        %v6084 = vunpack.c.0.s8 %v6083
        %v6085 = vlaneseq
        %v6086 = vshrl.u32 %v6085, 7
        %v6087 = vsub.s32 %v6084, %v6086
        %v6088 = vrot.slane %v6074, %v6087
        %v6089 = vcombine.high %v6073, 0.0
        %v6091 = vunpack.c.l.s4 1934713408
        %v6092 = vunpack.c.0.s8 %v6091
        %v6093 = vlaneseq
        %v6094 = vshrl.u32 %v6093, 7
        %v6095 = vsub.s32 %v6092, %v6094
        %v6096 = vrot.slane %v6073, %v6095
        %v6098 = vunpack.c.l.s4 1934713408
        %v6099 = vunpack.c.0.s8 %v6098
        %v6100 = vlaneseq
        %v6101 = vshrl.u32 %v6100, 7
        %v6102 = vsub.s32 %v6099, %v6101
        %v6103 = vrot.slane %v6089, %v6102
        %v6104 = vcombine.high %v6081, 0.0
        %v6105 = vcombine.high %v6088, 0.0
        %v6106 = vcombine.high %v6096, 0.0
        %v6107 = vcombine.high %v6103, 0.0
        %v6108 = vcombine.high %v5756, 0.0
        %v6110 = vunpack.c.l.s4 1983009808
        %v6111 = vunpack.c.0.s8 %v6110
        %v6112 = vlaneseq
        %v6113 = vshrl.u32 %v6112, 7
        %v6114 = vsub.s32 %v6111, %v6113
        %v6115 = vrot.slane %v5756, %v6114
        %v6117 = vunpack.c.l.s4 1983009808
        %v6118 = vunpack.c.0.s8 %v6117
        %v6119 = vlaneseq
        %v6120 = vshrl.u32 %v6119, 7
        %v6121 = vsub.s32 %v6118, %v6120
        %v6122 = vrot.slane %v6108, %v6121
        %v6123 = vcombine.high %v6115, 0.0
        %v6125 = vunpack.c.l.s4 1934713408
        %v6126 = vunpack.c.0.s8 %v6125
        %v6127 = vlaneseq
        %v6128 = vshrl.u32 %v6127, 7
        %v6129 = vsub.s32 %v6126, %v6128
        %v6130 = vrot.slane %v6115, %v6129
        %v6132 = vunpack.c.l.s4 1934713408
        %v6133 = vunpack.c.0.s8 %v6132
        %v6134 = vlaneseq
        %v6135 = vshrl.u32 %v6134, 7
        %v6136 = vsub.s32 %v6133, %v6135
        %v6137 = vrot.slane %v6123, %v6136
        %v6138 = vcombine.high %v6122, 0.0
        %v6140 = vunpack.c.l.s4 1934713408
        %v6141 = vunpack.c.0.s8 %v6140
        %v6142 = vlaneseq
        %v6143 = vshrl.u32 %v6142, 7
        %v6144 = vsub.s32 %v6141, %v6143
        %v6145 = vrot.slane %v6122, %v6144
        %v6147 = vunpack.c.l.s4 1934713408
        %v6148 = vunpack.c.0.s8 %v6147
        %v6149 = vlaneseq
        %v6150 = vshrl.u32 %v6149, 7
        %v6151 = vsub.s32 %v6148, %v6150
        %v6152 = vrot.slane %v6138, %v6151
        %v6153 = vcombine.high %v6130, 0.0
        %v6154 = vcombine.high %v6137, 0.0
        %v6155 = vcombine.high %v6145, 0.0
        %v6156 = vcombine.high %v6152, 0.0
        %6161 = vrot.lane.b32.xlu0 %v5810, 16
        %v6162 = vpop.permute.xlu0 %6161
        %6163 = vrot.lane.b32.xlu0 %v5908, 16
        %v6164 = vpop.permute.xlu0 %6163
        %6165 = vrot.lane.b32.xlu0 %v6006, 16
        %v6166 = vpop.permute.xlu0 %6165
        %6167 = vrot.lane.b32.xlu0 %v6104, 16
        %v6168 = vpop.permute.xlu0 %6167
        %6177 = vrot.lane.b32.xlu0 %v5794, 32
        %v6178 = vpop.permute.xlu0 %6177
        %6179 = vrot.lane.b32.xlu0 %v5892, 32
        %v6180 = vpop.permute.xlu0 %6179
        %6181 = vrot.lane.b32.xlu0 %v5990, 32
        %v6182 = vpop.permute.xlu0 %6181
        %6183 = vrot.lane.b32.xlu0 %v6088, 32
        %v6184 = vpop.permute.xlu0 %6183
        %6193 = vrot.lane.b32.xlu0 %v5811, 48
        %v6194 = vpop.permute.xlu0 %6193
        %6195 = vrot.lane.b32.xlu0 %v5909, 48
        %v6196 = vpop.permute.xlu0 %6195
        %6197 = vrot.lane.b32.xlu0 %v6007, 48
        %v6198 = vpop.permute.xlu0 %6197
        %6199 = vrot.lane.b32.xlu0 %v6105, 48
        %v6200 = vpop.permute.xlu0 %6199
        %6209 = vrot.lane.b32.xlu0 %v5802, 64
        %v6210 = vpop.permute.xlu0 %6209
        %6211 = vrot.lane.b32.xlu0 %v5900, 64
        %v6212 = vpop.permute.xlu0 %6211
        %6213 = vrot.lane.b32.xlu0 %v5998, 64
        %v6214 = vpop.permute.xlu0 %6213
        %6215 = vrot.lane.b32.xlu0 %v6096, 64
        %v6216 = vpop.permute.xlu0 %6215
        %6225 = vrot.lane.b32.xlu0 %v5812, 80
        %v6226 = vpop.permute.xlu0 %6225
        %6227 = vrot.lane.b32.xlu0 %v5910, 80
        %v6228 = vpop.permute.xlu0 %6227
        %6229 = vrot.lane.b32.xlu0 %v6008, 80
        %v6230 = vpop.permute.xlu0 %6229
        %6231 = vrot.lane.b32.xlu0 %v6106, 80
        %v6232 = vpop.permute.xlu0 %6231
        %6241 = vrot.lane.b32.xlu0 %v5809, 96
        %v6242 = vpop.permute.xlu0 %6241
        %6243 = vrot.lane.b32.xlu0 %v5907, 96
        %v6244 = vpop.permute.xlu0 %6243
        %6245 = vrot.lane.b32.xlu0 %v6005, 96
        %v6246 = vpop.permute.xlu0 %6245
        %6247 = vrot.lane.b32.xlu0 %v6103, 96
        %v6248 = vpop.permute.xlu0 %6247
        %6257 = vrot.lane.b32.xlu0 %v5813, 112
        %v6258 = vpop.permute.xlu0 %6257
        %6259 = vrot.lane.b32.xlu0 %v5911, 112
        %v6260 = vpop.permute.xlu0 %6259
        %6261 = vrot.lane.b32.xlu0 %v6009, 112
        %v6262 = vpop.permute.xlu0 %6261
        %6263 = vrot.lane.b32.xlu0 %v6107, 112
        %v6264 = vpop.permute.xlu0 %6263
        %6273 = vrot.lane.b32.xlu0 %v5859, 16
        %v6274 = vpop.permute.xlu0 %6273
        %6275 = vrot.lane.b32.xlu0 %v5957, 16
        %v6276 = vpop.permute.xlu0 %6275
        %6277 = vrot.lane.b32.xlu0 %v6055, 16
        %v6278 = vpop.permute.xlu0 %6277
        %6279 = vrot.lane.b32.xlu0 %v6153, 16
        %v6280 = vpop.permute.xlu0 %6279
        %6289 = vrot.lane.b32.xlu0 %v5843, 32
        %v6290 = vpop.permute.xlu0 %6289
        %6291 = vrot.lane.b32.xlu0 %v5941, 32
        %v6292 = vpop.permute.xlu0 %6291
        %6293 = vrot.lane.b32.xlu0 %v6039, 32
        %v6294 = vpop.permute.xlu0 %6293
        %6295 = vrot.lane.b32.xlu0 %v6137, 32
        %v6296 = vpop.permute.xlu0 %6295
        %6305 = vrot.lane.b32.xlu0 %v5860, 48
        %v6306 = vpop.permute.xlu0 %6305
        %6307 = vrot.lane.b32.xlu0 %v5958, 48
        %v6308 = vpop.permute.xlu0 %6307
        %6309 = vrot.lane.b32.xlu0 %v6056, 48
        %v6310 = vpop.permute.xlu0 %6309
        %6311 = vrot.lane.b32.xlu0 %v6154, 48
        %v6312 = vpop.permute.xlu0 %6311
        %6321 = vrot.lane.b32.xlu0 %v5851, 64
        %v6322 = vpop.permute.xlu0 %6321
        %6323 = vrot.lane.b32.xlu0 %v5949, 64
        %v6324 = vpop.permute.xlu0 %6323
        %6325 = vrot.lane.b32.xlu0 %v6047, 64
        %v6326 = vpop.permute.xlu0 %6325
        %6327 = vrot.lane.b32.xlu0 %v6145, 64
        %v6328 = vpop.permute.xlu0 %6327
        %6337 = vrot.lane.b32.xlu0 %v5861, 80
        %v6338 = vpop.permute.xlu0 %6337
        %6339 = vrot.lane.b32.xlu0 %v5959, 80
        %v6340 = vpop.permute.xlu0 %6339
        %6341 = vrot.lane.b32.xlu0 %v6057, 80
        %v6342 = vpop.permute.xlu0 %6341
        %6343 = vrot.lane.b32.xlu0 %v6155, 80
        %v6344 = vpop.permute.xlu0 %6343
        %6353 = vrot.lane.b32.xlu0 %v5858, 96
        %v6354 = vpop.permute.xlu0 %6353
        %6355 = vrot.lane.b32.xlu0 %v5956, 96
        %v6356 = vpop.permute.xlu0 %6355
        %6357 = vrot.lane.b32.xlu0 %v6054, 96
        %v6358 = vpop.permute.xlu0 %6357
        %6359 = vrot.lane.b32.xlu0 %v6152, 96
        %v6360 = vpop.permute.xlu0 %6359
        %6369 = vrot.lane.b32.xlu0 %v5862, 112
        %v6370 = vpop.permute.xlu0 %6369
        %6371 = vrot.lane.b32.xlu0 %v5960, 112
        %v6372 = vpop.permute.xlu0 %6371
        %6373 = vrot.lane.b32.xlu0 %v6058, 112
        %v6374 = vpop.permute.xlu0 %6373
        %6375 = vrot.lane.b32.xlu0 %v6156, 112
        %v6376 = vpop.permute.xlu0 %6375
        %v6381 = vsel %vm784, %v5787, %v6162
        %v6382 = vsel %vm784, %v5885, %v6164
        %v6383 = vsel %vm784, %v5983, %v6166
        %v6384 = vsel %vm784, %v6081, %v6168
        %v6385 = vsel %vm789, %v6381, %v6178
        %v6386 = vsel %vm789, %v6382, %v6180
        %v6387 = vsel %vm789, %v6383, %v6182
        %v6388 = vsel %vm789, %v6384, %v6184
        %v6389 = vsel %vm794, %v6385, %v6194
        %v6390 = vsel %vm794, %v6386, %v6196
        %v6391 = vsel %vm794, %v6387, %v6198
        %v6392 = vsel %vm794, %v6388, %v6200
        %v6393 = vsel %vm799, %v6389, %v6210
        %v6394 = vsel %vm799, %v6390, %v6212
        %v6395 = vsel %vm799, %v6391, %v6214
        %v6396 = vsel %vm799, %v6392, %v6216
        %v6397 = vsel %vm804, %v6393, %v6226
        %v6398 = vsel %vm804, %v6394, %v6228
        %v6399 = vsel %vm804, %v6395, %v6230
        %v6400 = vsel %vm804, %v6396, %v6232
        %v6401 = vsel %vm809, %v6397, %v6242
        %v6402 = vsel %vm809, %v6398, %v6244
        %v6403 = vsel %vm809, %v6399, %v6246
        %v6404 = vsel %vm809, %v6400, %v6248
        %v6405 = vsel %vm814, %v6401, %v6258
        %v6406 = vsel %vm814, %v6402, %v6260
        %v6407 = vsel %vm814, %v6403, %v6262
        %v6408 = vsel %vm814, %v6404, %v6264
        %v6409 = vsel %vm784, %v5836, %v6274
        %v6410 = vsel %vm784, %v5934, %v6276
        %v6411 = vsel %vm784, %v6032, %v6278
        %v6412 = vsel %vm784, %v6130, %v6280
        %v6413 = vsel %vm789, %v6409, %v6290
        %v6414 = vsel %vm789, %v6410, %v6292
        %v6415 = vsel %vm789, %v6411, %v6294
        %v6416 = vsel %vm789, %v6412, %v6296
        %v6417 = vsel %vm794, %v6413, %v6306
        %v6418 = vsel %vm794, %v6414, %v6308
        %v6419 = vsel %vm794, %v6415, %v6310
        %v6420 = vsel %vm794, %v6416, %v6312
        %v6421 = vsel %vm799, %v6417, %v6322
        %v6422 = vsel %vm799, %v6418, %v6324
        %v6423 = vsel %vm799, %v6419, %v6326
        %v6424 = vsel %vm799, %v6420, %v6328
        %v6425 = vsel %vm804, %v6421, %v6338
        %v6426 = vsel %vm804, %v6422, %v6340
        %v6427 = vsel %vm804, %v6423, %v6342
        %v6428 = vsel %vm804, %v6424, %v6344
        %v6429 = vsel %vm809, %v6425, %v6354
        %v6430 = vsel %vm809, %v6426, %v6356
        %v6431 = vsel %vm809, %v6427, %v6358
        %v6432 = vsel %vm809, %v6428, %v6360
        %v6433 = vsel %vm814, %v6429, %v6370
        %v6434 = vsel %vm814, %v6430, %v6372
        %v6435 = vsel %vm814, %v6431, %v6374
        %v6436 = vsel %vm814, %v6432, %v6376
        %v6445 = vrot.slane %v1519, 7
        %v6446 = vrot.slane %v1547, 7
        %v6447 = vrot.slane %v1520, 7
        %v6448 = vrot.slane %v1548, 7
        %v6449 = vrot.slane %v1521, 7
        %v6450 = vrot.slane %v1549, 7
        %v6451 = vrot.slane %v1522, 7
        %v6452 = vrot.slane %v1550, 7
        %v6469 = vrot.slane %v2215, 6
        %v6470 = vrot.slane %v2243, 6
        %v6471 = vrot.slane %v2216, 6
        %v6472 = vrot.slane %v2244, 6
        %v6473 = vrot.slane %v2217, 6
        %v6474 = vrot.slane %v2245, 6
        %v6475 = vrot.slane %v2218, 6
        %v6476 = vrot.slane %v2246, 6
        %v6493 = vrot.slane %v2920, 5
        %v6494 = vrot.slane %v2948, 5
        %v6495 = vrot.slane %v2921, 5
        %v6496 = vrot.slane %v2949, 5
        %v6497 = vrot.slane %v2922, 5
        %v6498 = vrot.slane %v2950, 5
        %v6499 = vrot.slane %v2923, 5
        %v6500 = vrot.slane %v2951, 5
        %v6517 = vrot.slane %v3616, 4
        %v6518 = vrot.slane %v3644, 4
        %v6519 = vrot.slane %v3617, 4
        %v6520 = vrot.slane %v3645, 4
        %v6521 = vrot.slane %v3618, 4
        %v6522 = vrot.slane %v3646, 4
        %v6523 = vrot.slane %v3619, 4
        %v6524 = vrot.slane %v3647, 4
        %v6541 = vrot.slane %v4312, 3
        %v6542 = vrot.slane %v4340, 3
        %v6543 = vrot.slane %v4313, 3
        %v6544 = vrot.slane %v4341, 3
        %v6545 = vrot.slane %v4314, 3
        %v6546 = vrot.slane %v4342, 3
        %v6547 = vrot.slane %v4315, 3
        %v6548 = vrot.slane %v4343, 3
        %v6565 = vrot.slane %v5013, 2
        %v6566 = vrot.slane %v5041, 2
        %v6567 = vrot.slane %v5014, 2
        %v6568 = vrot.slane %v5042, 2
        %v6569 = vrot.slane %v5015, 2
        %v6570 = vrot.slane %v5043, 2
        %v6571 = vrot.slane %v5016, 2
        %v6572 = vrot.slane %v5044, 2
        %v6589 = vrot.slane %v5709, 1
        %v6590 = vrot.slane %v5737, 1
        %v6591 = vrot.slane %v5710, 1
        %v6592 = vrot.slane %v5738, 1
        %v6593 = vrot.slane %v5711, 1
        %v6594 = vrot.slane %v5739, 1
        %v6595 = vrot.slane %v5712, 1
        %v6596 = vrot.slane %v5740, 1
        %vm6605 = vcmask 1040384
        %v6606 = vsel %vm6605, %v815, %v6445
        %v6607 = vsel %vm6605, %v843, %v6446
        %v6608 = vsel %vm6605, %v816, %v6447
        %v6609 = vsel %vm6605, %v844, %v6448
        %v6610 = vsel %vm6605, %v817, %v6449
        %v6611 = vsel %vm6605, %v845, %v6450
        %v6612 = vsel %vm6605, %v818, %v6451
        %v6613 = vsel %vm6605, %v846, %v6452
        %vm6614 = vcmask 1041408
        %v6615 = vsel %vm6614, %v6606, %v6469
        %v6616 = vsel %vm6614, %v6607, %v6470
        %v6617 = vsel %vm6614, %v6608, %v6471
        %v6618 = vsel %vm6614, %v6609, %v6472
        %v6619 = vsel %vm6614, %v6610, %v6473
        %v6620 = vsel %vm6614, %v6611, %v6474
        %v6621 = vsel %vm6614, %v6612, %v6475
        %v6622 = vsel %vm6614, %v6613, %v6476
        %vm6623 = vcmask 1042432
        %v6624 = vsel %vm6623, %v6615, %v6493
        %v6625 = vsel %vm6623, %v6616, %v6494
        %v6626 = vsel %vm6623, %v6617, %v6495
        %v6627 = vsel %vm6623, %v6618, %v6496
        %v6628 = vsel %vm6623, %v6619, %v6497
        %v6629 = vsel %vm6623, %v6620, %v6498
        %v6630 = vsel %vm6623, %v6621, %v6499
        %v6631 = vsel %vm6623, %v6622, %v6500
        %vm6632 = vcmask 1043456
        %v6633 = vsel %vm6632, %v6624, %v6517
        %v6634 = vsel %vm6632, %v6625, %v6518
        %v6635 = vsel %vm6632, %v6626, %v6519
        %v6636 = vsel %vm6632, %v6627, %v6520
        %v6637 = vsel %vm6632, %v6628, %v6521
        %v6638 = vsel %vm6632, %v6629, %v6522
        %v6639 = vsel %vm6632, %v6630, %v6523
        %v6640 = vsel %vm6632, %v6631, %v6524
        %vm6641 = vcmask 1044480
        %v6642 = vsel %vm6641, %v6633, %v6541
        %v6643 = vsel %vm6641, %v6634, %v6542
        %v6644 = vsel %vm6641, %v6635, %v6543
        %v6645 = vsel %vm6641, %v6636, %v6544
        %v6646 = vsel %vm6641, %v6637, %v6545
        %v6647 = vsel %vm6641, %v6638, %v6546
        %v6648 = vsel %vm6641, %v6639, %v6547
        %v6649 = vsel %vm6641, %v6640, %v6548
        %v6650 = vsel %vm4344, %v6642, %v6565
        %v6651 = vsel %vm4344, %v6643, %v6566
        %v6652 = vsel %vm4344, %v6644, %v6567
        %v6653 = vsel %vm4344, %v6645, %v6568
        %v6654 = vsel %vm4344, %v6646, %v6569
        %v6655 = vsel %vm4344, %v6647, %v6570
        %v6656 = vsel %vm4344, %v6648, %v6571
        %v6657 = vsel %vm4344, %v6649, %v6572
        %v6658 = vsel %vm2251, %v6650, %v6589
        %v6659 = vsel %vm2251, %v6651, %v6590
        %v6660 = vsel %vm2251, %v6652, %v6591
        %v6661 = vsel %vm2251, %v6653, %v6592
        %v6662 = vsel %vm2251, %v6654, %v6593
        %v6663 = vsel %vm2251, %v6655, %v6594
        %v6664 = vsel %vm2251, %v6656, %v6595
        %v6665 = vsel %vm2251, %v6657, %v6596
        %6666 = vst [vmem:[%s153] sm:$0xff] %v6658
        %6667 = vst [vmem:[%s153 + $0x8] sm:$0xff] %v6659
        %6668 = vst [vmem:[%s153 + $0x10] sm:$0x1] %v6405
        %6669 = vst [vmem:[%s153 + $0x18] sm:$0x1] %v6433
        %6670 = vst [vmem:[%s153 + $0x20] sm:$0xff] %v6660
        %6671 = vst [vmem:[%s153 + $0x28] sm:$0xff] %v6661
        %6672 = vst [vmem:[%s153 + $0x30] sm:$0x1] %v6406
        %6673 = vst [vmem:[%s153 + $0x38] sm:$0x1] %v6434
        %6674 = vst [vmem:[%s153 + $0x40] sm:$0xff] %v6662
        %6675 = vst [vmem:[%s153 + $0x48] sm:$0xff] %v6663
        %6676 = vst [vmem:[%s153 + $0x50] sm:$0x1] %v6407
        %6677 = vst [vmem:[%s153 + $0x58] sm:$0x1] %v6435
        %6678 = vst [vmem:[%s153 + $0x60] sm:$0xff] %v6664
        %6679 = vst [vmem:[%s153 + $0x68] sm:$0xff] %v6665
        %6680 = vst [vmem:[%s153 + $0x70] sm:$0x1] %v6408
        %6681 = vst [vmem:[%s153 + $0x78] sm:$0x1] %v6436
        %s6682 = sand.u32 %s68, 1
        %s6683 = scalar_lea.sflag [#allocation4], %s6682
        %s6684 = sand.u32 %s68, 1
        %s6685 = smul.addr %s6684, 128
        %s6686 = scalar_lea.vmem [#allocation5], %s6685
        // Predicated region
        $region29: #{tpu_custom_call.1} parent=23 // pred_check
          %p6687 = pneg %p78
        $region30: #{tpu_custom_call.1} parent=23 // pred_check_branch
          %6689 = sbr.rel (%p6687) target = $region32
        $region31: #{tpu_custom_call.1} parent=23 // pred_region
          %s6690 = smul.u32 4, %s23
          %s6692 = ssub.s32 2048, 2048
          %6693 = vsyncadd %s6683, %s6692
          %s6694 = smul.addr %s6690, 4
          %s6695 = smul.addr %s22, 16
          %s6696 = sadd.s32 %s6694, %s6695
          %s6697 = smul.addr %s6696, 128
          %s6698 = scalar_lea.hbm %s1, %s6697
          %s6699 = sshll.u32 %s6686, 4
          %s6700 = int_to_ptr.vmem [resolvable:$true] %s6699
          %6705 = dma.vmem_to_hbm [thread:$0]  %s6700, 2048, %s6698, %s6683, 256, 256, 16
        $region32: #{tpu_custom_call.1} parent=23 // pred_fallthru
          _
      $region24: #{tpu_custom_call.1} parent=5 // pred_fallthru
        _
      %p6706 = scmp.le.s32.totalorder 2, %s13
      // Predicated region
      $region33: #{tpu_custom_call.1} parent=5 // pred_check
        %p6707 = pneg %p6706
      $region34: #{tpu_custom_call.1} parent=5 // pred_check_branch
        %6709 = sbr.rel (%p6707) target = $region36
      $region35: #{tpu_custom_call.1} parent=5 // pred_region
        %s6710 = ssub.s32 %s13, 2
        // Predicated region
        $region37: #{tpu_custom_call.1} parent=35 // pred_check
          %p6711 = pneg %p84
        $region38: #{tpu_custom_call.1} parent=35 // pred_check_branch
          %6713 = sbr.rel (%p6711) target = $region40
        $region39: #{tpu_custom_call.1} parent=35 // pred_region
          %s6714 = sand.u32 %s69, 1
          %s6715 = scalar_lea.sflag [#allocation4], %s6714
          %s6716 = sand.u32 %s69, 1
          %s6717 = smul.addr %s6716, 128
          %s6718 = scalar_lea.vmem [#allocation5], %s6717
          %6719 = dma.done %s6715, 2048
        $region40: #{tpu_custom_call.1} parent=35 // pred_fallthru
          _
      $region36: #{tpu_custom_call.1} parent=5 // pred_fallthru
        _
    $region6: #{tpu_custom_call.1} parent=1 // loop_footer
      %s17 = sadd.s32 1, %s13
    $region7: #{tpu_custom_call.1} parent=1 // loop_footer_branch
      %12 = sbr.rel target = $region3
    $region8: #{tpu_custom_call.1} parent=1 // loop_exit
      _
    %6720 = vsyncpa [#allocation3], 1
    %s6721 = scalar_lea.sflag [#allocation3], 1
    %6722 = vsyncpa %s6721, 1
    %6723 = vsyncpa [#allocation4], 1
    %s6724 = scalar_lea.sflag [#allocation4], 1
    %6725 = vsyncpa %s6724, 1

</llo_original>
